<compile_context>
chip_gen: v5e
topology: v5e:2x2
jax: 0.10.0
libtpu: 0.0.40
codegen_flags: <defaults>
</compile_context>

<pallas_src>
from math import sqrt

import jax
import jax.numpy as jnp
from jax.experimental import pallas as pl
from jax.experimental.pallas import tpu as pltpu  # noqa: F401  (kept per template)

# ---------------- model config (small, consistent with the module) ----------
B = 2          # batch
TS_D = 4       # Data_dim (number of time series / channels)
SEG_NUM = 8    # Seg_num (L)
D_MODEL = 32
N_HEADS = 2
FACTOR = 3     # router factor
D_FF = 4 * D_MODEL
D_HEAD = D_MODEL // N_HEADS

NR = B * TS_D * SEG_NUM        # 64  activation rows, ordered (b, ts_d, seg)
RT = B * SEG_NUM * FACTOR      # 48  router rows,     ordered (b, seg, factor)
SLAB_LANES = 128               # lane width of the packed constant slabs

# ---------------- packed-slab layouts (shared by host packing & kernel) ------
_W_ORDER = (
    "time_wq", "time_wk", "time_wv", "time_wo",
    "snd_wq", "snd_wk", "snd_wv", "snd_wo",
    "rcv_wq", "rcv_wk", "rcv_wv", "rcv_wo",
    "w1a", "w2a", "w1b", "w2b", "router",
)
_W_SHAPES = {
    **{f"{p}_w{q}": (D_MODEL, D_MODEL)
       for p in ("time", "snd", "rcv") for q in "qkvo"},
    "w1a": (D_MODEL, D_FF), "w2a": (D_MODEL, D_FF),
    "w1b": (D_FF, D_MODEL), "w2b": (D_FF, D_MODEL),
    "router": (RT, D_MODEL),
}
_W_OFF = {}
_off = 0
for _n in _W_ORDER:
    _r, _c = _W_SHAPES[_n]
    _W_OFF[_n] = (_off, _r, _c)
    _off += _r
W_ROWS = _off                                         # 752 (multiple of 8)

_V_ORDER = (
    "time_bq", "time_bk", "time_bv", "time_bo",
    "snd_bq", "snd_bk", "snd_bv", "snd_bo",
    "rcv_bq", "rcv_bk", "rcv_bv", "rcv_bo",
    "b1a", "b1b", "b2a", "b2b",
    "g1", "be1", "g2", "be2", "g3", "be3", "g4", "be4",
)
_V_WIDTHS = {n: D_MODEL for n in _V_ORDER}
_V_WIDTHS["b1a"] = D_FF
_V_WIDTHS["b2a"] = D_FF
_V_OFF = {n: (i, _V_WIDTHS[n]) for i, n in enumerate(_V_ORDER)}
V_ROWS = len(_V_ORDER)                                # 24


# ---------------- fully fused TSA kernel (single invocation, no grid) --------
def _tsa_kernel(x_ref, w_ref, v_ref, o_ref):
    f32 = jnp.float32
    bf16 = jnp.bfloat16

    def w(name):                       # bf16 weight block (sublane-aligned slice)
        r0, nr, nc = _W_OFF[name]
        return w_ref[r0:r0 + nr, 0:nc]

    def v(name):                       # f32 bias / LayerNorm row [1, nc]
        r0, nc = _V_OFF[name]
        return v_ref[r0:r0 + 1, 0:nc]

    x = x_ref[...]                     # [NR, D_MODEL] f32

    # ---- per-head lane masks (full-width operands; no sub-vreg slicing) ----
    lane = jax.lax.broadcasted_iota(jnp.int32, (1, D_MODEL), 1)
    head_masks = [
        ((lane >= h * D_HEAD) & (lane < (h + 1) * D_HEAD)).astype(f32)
        for h in range(N_HEADS)
    ]

    # ---- additive block-diagonal group masks, built in-kernel ---------------
    # (only exact small-integer f32 arithmetic: iota, mul by 2^-k, floor, cmp)
    NEG = f32(-1e30)
    rq = jax.lax.broadcasted_iota(jnp.int32, (NR, 1), 0).astype(f32)
    rk = jax.lax.broadcasted_iota(jnp.int32, (1, NR), 1).astype(f32)
    tq = jax.lax.broadcasted_iota(jnp.int32, (RT, 1), 0).astype(f32)
    tk = jax.lax.broadcasted_iota(jnp.int32, (1, RT), 1).astype(f32)
    # stage-1 group of an x row: (b, ts_d)  ==  floor(r / seg)
    g1q = jnp.floor(rq * (1.0 / SEG_NUM))
    g1k = jnp.floor(rk * (1.0 / SEG_NUM))
    m_time = jnp.where(g1q == g1k, 0.0, NEG)                        # [NR, NR]
    # stage-2 group of an x row: b*seg + s
    gxq = jnp.floor(rq * (1.0 / (TS_D * SEG_NUM))) * SEG_NUM + (rq - SEG_NUM * g1q)
    gxk = jnp.floor(rk * (1.0 / (TS_D * SEG_NUM))) * SEG_NUM + (rk - SEG_NUM * g1k)
    # router row t belongs to group g  <=>  g*factor <= t < (g+1)*factor
    m_send = jnp.where((tq >= gxk * FACTOR) & (tq < gxk * FACTOR + FACTOR),
                       0.0, NEG)                                    # [RT, NR]
    m_recv = jnp.where((tk >= gxq * FACTOR) & (tk < gxq * FACTOR + FACTOR),
                       0.0, NEG)                                    # [NR, RT]

    # ---- building blocks -----------------------------------------------------
    def layer_norm(t, g_name, b_name, eps=1e-5):
        mu = jnp.mean(t, axis=-1, keepdims=True)
        tc = t - mu
        var = jnp.mean(tc * tc, axis=-1, keepdims=True)
        return tc * jax.lax.rsqrt(var + eps) * v(g_name) + v(b_name)

    def gelu(t):   # tanh approximation -> transcendental on the EUP
        return 0.5 * t * (1.0 + jnp.tanh(0.7978845608028654 *
                                         (t + 0.044715 * t * t * t)))

    def project(inp, w_name, b_name):
        return jnp.dot(inp.astype(bf16), w(w_name),
                       preferred_element_type=f32) + v(b_name)

    def attend(q, k, val, bias, wo_name, bo_name):
        # q: [Mq, D], k/val: [Mk, D] f32; bias: [Mq, Mk] additive group mask.
        scale = f32(1.0 / sqrt(D_HEAD))
        kb = k.astype(bf16)
        o_cat = jnp.zeros((q.shape[0], D_MODEL), f32)
        for hm in head_masks:                       # static unroll (N_HEADS=2)
            qh = (q * hm).astype(bf16)              # lane-masked full-width Q_h
            s = jax.lax.dot_general(qh, kb, (((1,), (1,)), ((), ())),
                                    preferred_element_type=f32) * scale + bias
            m = jnp.max(s, axis=-1, keepdims=True)
            e = jnp.exp(s - m)                      # masked entries underflow to 0
            p = e * pl.reciprocal(jnp.sum(e, axis=-1, keepdims=True), approx=True)
            vh = (val * hm).astype(bf16)            # lane-masked full-width V_h
            o_cat = o_cat + jnp.dot(p.astype(bf16), vh,
                                    preferred_element_type=f32)
        return jnp.dot(o_cat.astype(bf16), w(wo_name),
                       preferred_element_type=f32) + v(bo_name)

    def mha(q_in, kv_in, prefix, bias):
        q = project(q_in, prefix + "_wq", prefix + "_bq")
        k = project(kv_in, prefix + "_wk", prefix + "_bk")
        val = project(kv_in, prefix + "_wv", prefix + "_bv")
        return attend(q, k, val, bias, prefix + "_wo", prefix + "_bo")

    def ffn_block(a, b_in, g_a, be_a, w_up, b_up, w_dn, b_dn, g_b, be_b):
        z = layer_norm(a + b_in, g_a, be_a)
        h = gelu(jnp.dot(z.astype(bf16), w(w_up), preferred_element_type=f32)
                 + v(b_up))
        m = jnp.dot(h.astype(bf16), w(w_dn), preferred_element_type=f32) + v(b_dn)
        return layer_norm(z + m, g_b, be_b)

    # ---- stage 1: cross-time self-attention ---------------------------------
    time_enc = mha(x, x, "time", m_time)
    dim_in = ffn_block(x, time_enc, "g1", "be1", "w1a", "b1a", "w1b", "b1b",
                       "g2", "be2")

    # ---- stage 2: cross-dimension attention through the router --------------
    router = w("router")                                  # bf16 [RT, D_MODEL]
    dim_buffer = mha(router, dim_in, "snd", m_send)
    dim_receive = mha(dim_in, dim_buffer, "rcv", m_recv)
    dim_enc = ffn_block(dim_in, dim_receive, "g3", "be3", "w2a", "b2a",
                        "w2b", "b2b", "g4", "be4")

    # rows are already in (b, ts_d, seg) order == output layout
    o_ref[...] = dim_enc.astype(o_ref.dtype)


# ---------------- host-side packing & wrapper ---------------------------------
def pack_params(params):
    """Pack all weights/biases/LN params into two lane-dense constant slabs."""
    p = dict(params)
    p["router"] = jnp.tile(params["router"].reshape(SEG_NUM * FACTOR, D_MODEL),
                           (B, 1))                       # batch-tiled, [RT, D]
    w_rows = []
    for name in _W_ORDER:
        a = jnp.asarray(p[name], jnp.float32)
        assert a.shape == _W_SHAPES[name], (name, a.shape)
        w_rows.append(jnp.pad(a, ((0, 0), (0, SLAB_LANES - a.shape[1]))))
    w_slab = jnp.concatenate(w_rows, axis=0).astype(jnp.bfloat16)   # [752,128]

    v_rows = []
    for name in _V_ORDER:
        a = jnp.asarray(p[name], jnp.float32).reshape(1, -1)
        v_rows.append(jnp.pad(a, ((0, 0), (0, SLAB_LANES - a.shape[1]))))
    v_slab = jnp.concatenate(v_rows, axis=0)                        # [24, 128]
    return w_slab, v_slab


def two_stage_attention_forward(x, w_slab, v_slab):
    b, ts_d, seg, dm = x.shape
    assert (b, ts_d, seg, dm) == (B, TS_D, SEG_NUM, D_MODEL)
    x2 = x.reshape(b * ts_d * seg, dm)          # rows ordered (b, ts_d, seg)
    out = pl.pallas_call(
        _tsa_kernel,
        out_shape=jax.ShapeDtypeStruct((b * ts_d * seg, dm), x.dtype),
    )(x2, w_slab, v_slab)
    return out.reshape(b, ts_d, seg, dm)


# ---------------- pure-JAX reference (mirror of the PyTorch module) ----------
def _reference_forward(x, params):
    b, ts_d, seg, dm = x.shape
    h, dh = N_HEADS, D_HEAD
    p = params

    def ln(t, g, be):
        mu = jnp.mean(t, axis=-1, keepdims=True)
        var = jnp.mean((t - mu) ** 2, axis=-1, keepdims=True)
        return (t - mu) / jnp.sqrt(var + 1e-5) * g + be

    def gelu(t):
        return 0.5 * t * (1.0 + jax.scipy.special.erf(t / sqrt(2.0)))

    def mha(q_in, kv_in, pref):
        bn, lq, _ = q_in.shape
        lk = kv_in.shape[1]
        q = (q_in @ p[pref + "_wq"] + p[pref + "_bq"]).reshape(bn, lq, h, dh)
        k = (kv_in @ p[pref + "_wk"] + p[pref + "_bk"]).reshape(bn, lk, h, dh)
        vv = (kv_in @ p[pref + "_wv"] + p[pref + "_bv"]).reshape(bn, lk, h, dh)
        s = jnp.einsum('blhe,bshe->bhls', q, k) / sqrt(dh)
        a = jax.nn.softmax(s, axis=-1)
        o = jnp.einsum('bhls,bshd->blhd', a, vv).reshape(bn, lq, h * dh)
        return o @ p[pref + "_wo"] + p[pref + "_bo"]

    time_in = x.reshape(b * ts_d, seg, dm)
    time_enc = mha(time_in, time_in, "time")
    dim_in = ln(time_in + time_enc, p["g1"], p["be1"])
    dim_in = ln(dim_in + (gelu(dim_in @ p["w1a"] + p["b1a"]) @ p["w1b"] + p["b1b"]),
                p["g2"], p["be2"])

    dim_send = dim_in.reshape(b, ts_d, seg, dm).transpose(0, 2, 1, 3).reshape(
        b * seg, ts_d, dm)
    batch_router = jnp.tile(p["router"], (b, 1, 1))
    dim_buffer = mha(batch_router, dim_send, "snd")
    dim_receive = mha(dim_send, dim_buffer, "rcv")
    dim_enc = ln(dim_send + dim_receive, p["g3"], p["be3"])
    dim_enc = ln(dim_enc + (gelu(dim_enc @ p["w2a"] + p["b2a"]) @ p["w2b"] + p["b2b"]),
                 p["g4"], p["be4"])
    return dim_enc.reshape(b, seg, ts_d, dm).transpose(0, 2, 1, 3)


# ---------------- deterministic parameter init --------------------------------
def _linear(key, d_in, d_out):
    kw, kb = jax.random.split(key)
    w = 0.05 * jax.random.normal(kw, (d_in, d_out), jnp.float32)
    bb = 0.05 * jax.random.normal(kb, (1, d_out), jnp.float32)
    return w, bb


def init_params(key):
    ks = jax.random.split(key, 17)
    p = {}
    idx = 0
    for prefix in ("time", "snd", "rcv"):
        for part in "qkvo":
            w, bb = _linear(ks[idx], D_MODEL, D_MODEL)
            idx += 1
            p[f"{prefix}_w{part}"] = w
            p[f"{prefix}_b{part}"] = bb
    p["w1a"], p["b1a"] = _linear(ks[idx], D_MODEL, D_FF); idx += 1
    p["w1b"], p["b1b"] = _linear(ks[idx], D_FF, D_MODEL); idx += 1
    p["w2a"], p["b2a"] = _linear(ks[idx], D_MODEL, D_FF); idx += 1
    p["w2b"], p["b2b"] = _linear(ks[idx], D_FF, D_MODEL); idx += 1
    p["router"] = jax.random.normal(ks[idx], (SEG_NUM, FACTOR, D_MODEL), jnp.float32)
    ones = jnp.ones((1, D_MODEL), jnp.float32)
    zeros = jnp.zeros((1, D_MODEL), jnp.float32)
    for i in range(1, 5):
        p[f"g{i}"] = ones
        p[f"be{i}"] = zeros
    return p


if __name__ == "__main__":
    root = jax.random.PRNGKey(0)
    kx, kp = jax.random.split(root)
    x = jax.random.normal(kx, (B, TS_D, SEG_NUM, D_MODEL), jnp.float32)
    params = init_params(kp)
    w_slab, v_slab = pack_params(params)          # packed once, outside jit

    fwd = jax.jit(two_stage_attention_forward)
    out = jax.block_until_ready(fwd(x, w_slab, v_slab))

    assert out.shape == (B, TS_D, SEG_NUM, D_MODEL), out.shape
    assert bool(jnp.all(jnp.isfinite(out)))

    # loose self-check vs a pure-XLA reference (tolerance covers bf16 MXU
    # operands, tanh-GELU, approx reciprocal and default XLA matmul precision)
    ref = _reference_forward(x, params)
    err = float(jnp.max(jnp.abs(out - ref)))
    assert err < 5e-2, err
    print("KERNEL_OK")
</pallas_src>

<mosaic_0001>
module attributes {stable_mosaic.version = 11 : i64} {
  func.func @_tsa_kernel(%arg0: memref<64x32xf32, #tpu.memory_space<vmem>>, %arg1: memref<752x128xbf16, #tpu.memory_space<vmem>>, %arg2: memref<24x128xf32, #tpu.memory_space<vmem>>, %arg3: memref<64x32xf32, #tpu.memory_space<vmem>>) attributes {dimension_semantics = [], scalar_prefetch = 0 : i64, scratch_operands = 0 : i64, tpu.core_type = #tpu.core_type<tc>} {
    %c0 = arith.constant 0 : index
    %c0_0 = arith.constant 0 : index
    %0 = vector.load %arg0[%c0, %c0_0] : memref<64x32xf32, #tpu.memory_space<vmem>>, vector<64x32xf32>
    %1 = tpu.iota {dimensions = array<i32: 1>} : vector<1x32xi32>
    %c0_i32 = arith.constant 0 : i32
    %2 = vector.broadcast %c0_i32 : i32 to vector<1x32xi32>
    %3 = arith.cmpi sge, %1, %2 : vector<1x32xi32>
    %c16_i32 = arith.constant 16 : i32
    %4 = vector.broadcast %c16_i32 : i32 to vector<1x32xi32>
    %5 = arith.cmpi slt, %1, %4 : vector<1x32xi32>
    %6 = arith.andi %3, %5 : vector<1x32xi1>
    %7 = arith.extui %6 : vector<1x32xi1> to vector<1x32xi32>
    %8 = arith.sitofp %7 : vector<1x32xi32> to vector<1x32xf32>
    %c16_i32_1 = arith.constant 16 : i32
    %9 = vector.broadcast %c16_i32_1 : i32 to vector<1x32xi32>
    %10 = arith.cmpi sge, %1, %9 : vector<1x32xi32>
    %c32_i32 = arith.constant 32 : i32
    %11 = vector.broadcast %c32_i32 : i32 to vector<1x32xi32>
    %12 = arith.cmpi slt, %1, %11 : vector<1x32xi32>
    %13 = arith.andi %10, %12 : vector<1x32xi1>
    %14 = arith.extui %13 : vector<1x32xi1> to vector<1x32xi32>
    %15 = arith.sitofp %14 : vector<1x32xi32> to vector<1x32xf32>
    %16 = tpu.iota {dimensions = array<i32: 0>} : vector<64x1xi32>
    %17 = arith.sitofp %16 : vector<64x1xi32> to vector<64x1xf32>
    %18 = tpu.iota {dimensions = array<i32: 1>} : vector<1x64xi32>
    %19 = arith.sitofp %18 : vector<1x64xi32> to vector<1x64xf32>
    %20 = tpu.iota {dimensions = array<i32: 0>} : vector<48x1xi32>
    %21 = arith.sitofp %20 : vector<48x1xi32> to vector<48x1xf32>
    %22 = tpu.iota {dimensions = array<i32: 1>} : vector<1x48xi32>
    %23 = arith.sitofp %22 : vector<1x48xi32> to vector<1x48xf32>
    %cst = arith.constant 1.250000e-01 : f32
    %24 = vector.broadcast %cst : f32 to vector<64x1xf32>
    %25 = arith.mulf %17, %24 : vector<64x1xf32>
    %26 = math.floor %25 : vector<64x1xf32>
    %cst_2 = arith.constant 1.250000e-01 : f32
    %27 = vector.broadcast %cst_2 : f32 to vector<1x64xf32>
    %28 = arith.mulf %19, %27 : vector<1x64xf32>
    %29 = math.floor %28 : vector<1x64xf32>
    %30 = vector.broadcast %26 : vector<64x1xf32> to vector<64x64xf32>
    %31 = vector.broadcast %29 : vector<1x64xf32> to vector<64x64xf32>
    %32 = arith.cmpf oeq, %30, %31 : vector<64x64xf32>
    %cst_3 = arith.constant 0.000000e+00 : f32
    %cst_4 = arith.constant -1.000000e+30 : f32
    %33 = vector.broadcast %cst_3 : f32 to vector<64x64xf32>
    %34 = vector.broadcast %cst_4 : f32 to vector<64x64xf32>
    %35 = arith.select %32, %33, %34 : vector<64x64xi1>, vector<64x64xf32>
    %cst_5 = arith.constant 3.125000e-02 : f32
    %36 = vector.broadcast %cst_5 : f32 to vector<64x1xf32>
    %37 = arith.mulf %17, %36 : vector<64x1xf32>
    %38 = math.floor %37 : vector<64x1xf32>
    %cst_6 = arith.constant 8.000000e+00 : f32
    %39 = vector.broadcast %cst_6 : f32 to vector<64x1xf32>
    %40 = arith.mulf %38, %39 : vector<64x1xf32>
    %cst_7 = arith.constant 8.000000e+00 : f32
    %41 = vector.broadcast %cst_7 : f32 to vector<64x1xf32>
    %42 = arith.mulf %41, %26 : vector<64x1xf32>
    %43 = arith.subf %17, %42 : vector<64x1xf32>
    %44 = arith.addf %40, %43 : vector<64x1xf32>
    %cst_8 = arith.constant 3.125000e-02 : f32
    %45 = vector.broadcast %cst_8 : f32 to vector<1x64xf32>
    %46 = arith.mulf %19, %45 : vector<1x64xf32>
    %47 = math.floor %46 : vector<1x64xf32>
    %cst_9 = arith.constant 8.000000e+00 : f32
    %48 = vector.broadcast %cst_9 : f32 to vector<1x64xf32>
    %49 = arith.mulf %47, %48 : vector<1x64xf32>
    %cst_10 = arith.constant 8.000000e+00 : f32
    %50 = vector.broadcast %cst_10 : f32 to vector<1x64xf32>
    %51 = arith.mulf %50, %29 : vector<1x64xf32>
    %52 = arith.subf %19, %51 : vector<1x64xf32>
    %53 = arith.addf %49, %52 : vector<1x64xf32>
    %cst_11 = arith.constant 3.000000e+00 : f32
    %54 = vector.broadcast %cst_11 : f32 to vector<1x64xf32>
    %55 = arith.mulf %53, %54 : vector<1x64xf32>
    %56 = vector.broadcast %21 : vector<48x1xf32> to vector<48x64xf32>
    %57 = vector.broadcast %55 : vector<1x64xf32> to vector<48x64xf32>
    %58 = arith.cmpf oge, %56, %57 : vector<48x64xf32>
    %cst_12 = arith.constant 3.000000e+00 : f32
    %59 = vector.broadcast %cst_12 : f32 to vector<1x64xf32>
    %60 = arith.mulf %53, %59 : vector<1x64xf32>
    %cst_13 = arith.constant 3.000000e+00 : f32
    %61 = vector.broadcast %cst_13 : f32 to vector<1x64xf32>
    %62 = arith.addf %60, %61 : vector<1x64xf32>
    %63 = vector.broadcast %21 : vector<48x1xf32> to vector<48x64xf32>
    %64 = vector.broadcast %62 : vector<1x64xf32> to vector<48x64xf32>
    %65 = arith.cmpf olt, %63, %64 : vector<48x64xf32>
    %66 = arith.andi %58, %65 : vector<48x64xi1>
    %cst_14 = arith.constant 0.000000e+00 : f32
    %cst_15 = arith.constant -1.000000e+30 : f32
    %67 = vector.broadcast %cst_14 : f32 to vector<48x64xf32>
    %68 = vector.broadcast %cst_15 : f32 to vector<48x64xf32>
    %69 = arith.select %66, %67, %68 : vector<48x64xi1>, vector<48x64xf32>
    %cst_16 = arith.constant 3.000000e+00 : f32
    %70 = vector.broadcast %cst_16 : f32 to vector<64x1xf32>
    %71 = arith.mulf %44, %70 : vector<64x1xf32>
    %72 = vector.broadcast %23 : vector<1x48xf32> to vector<64x48xf32>
    %73 = vector.broadcast %71 : vector<64x1xf32> to vector<64x48xf32>
    %74 = arith.cmpf oge, %72, %73 : vector<64x48xf32>
    %cst_17 = arith.constant 3.000000e+00 : f32
    %75 = vector.broadcast %cst_17 : f32 to vector<64x1xf32>
    %76 = arith.mulf %44, %75 : vector<64x1xf32>
    %cst_18 = arith.constant 3.000000e+00 : f32
    %77 = vector.broadcast %cst_18 : f32 to vector<64x1xf32>
    %78 = arith.addf %76, %77 : vector<64x1xf32>
    %79 = vector.broadcast %23 : vector<1x48xf32> to vector<64x48xf32>
    %80 = vector.broadcast %78 : vector<64x1xf32> to vector<64x48xf32>
    %81 = arith.cmpf olt, %79, %80 : vector<64x48xf32>
    %82 = arith.andi %74, %81 : vector<64x48xi1>
    %cst_19 = arith.constant 0.000000e+00 : f32
    %cst_20 = arith.constant -1.000000e+30 : f32
    %83 = vector.broadcast %cst_19 : f32 to vector<64x48xf32>
    %84 = vector.broadcast %cst_20 : f32 to vector<64x48xf32>
    %85 = arith.select %82, %83, %84 : vector<64x48xi1>, vector<64x48xf32>
    %86 = arith.truncf %0 : vector<64x32xf32> to vector<64x32xbf16>
    %c0_21 = arith.constant 0 : index
    %c0_22 = arith.constant 0 : index
    %87 = vector.load %arg1[%c0_21, %c0_22] : memref<752x128xbf16, #tpu.memory_space<vmem>>, vector<32x32xbf16>
    %cst_23 = arith.constant dense<0.000000e+00> : vector<64x32xf32>
    %88 = tpu.matmul %86, %87, %cst_23 {dimension_numbers = #tpu.dot_dimension_numbers<[1], [0], [0], [1], [0, 0, 1, 1], [], []>} : vector<64x32xbf16>, vector<32x32xbf16>, vector<64x32xf32> -> vector<64x32xf32>
    %c0_24 = arith.constant 0 : index
    %c0_25 = arith.constant 0 : index
    %89 = vector.load %arg2[%c0_24, %c0_25] : memref<24x128xf32, #tpu.memory_space<vmem>>, vector<1x32xf32>
    %90 = vector.broadcast %89 : vector<1x32xf32> to vector<64x32xf32>
    %91 = arith.addf %88, %90 : vector<64x32xf32>
    %92 = arith.truncf %0 : vector<64x32xf32> to vector<64x32xbf16>
    %c32 = arith.constant 32 : index
    %c0_26 = arith.constant 0 : index
    %93 = vector.load %arg1[%c32, %c0_26] : memref<752x128xbf16, #tpu.memory_space<vmem>>, vector<32x32xbf16>
    %cst_27 = arith.constant dense<0.000000e+00> : vector<64x32xf32>
    %94 = tpu.matmul %92, %93, %cst_27 {dimension_numbers = #tpu.dot_dimension_numbers<[1], [0], [0], [1], [0, 0, 1, 1], [], []>} : vector<64x32xbf16>, vector<32x32xbf16>, vector<64x32xf32> -> vector<64x32xf32>
    %c1 = arith.constant 1 : index
    %c0_28 = arith.constant 0 : index
    %95 = vector.load %arg2[%c1, %c0_28] : memref<24x128xf32, #tpu.memory_space<vmem>>, vector<1x32xf32>
    %96 = vector.broadcast %95 : vector<1x32xf32> to vector<64x32xf32>
    %97 = arith.addf %94, %96 : vector<64x32xf32>
    %98 = arith.truncf %0 : vector<64x32xf32> to vector<64x32xbf16>
    %c64 = arith.constant 64 : index
    %c0_29 = arith.constant 0 : index
    %99 = vector.load %arg1[%c64, %c0_29] : memref<752x128xbf16, #tpu.memory_space<vmem>>, vector<32x32xbf16>
    %cst_30 = arith.constant dense<0.000000e+00> : vector<64x32xf32>
    %100 = tpu.matmul %98, %99, %cst_30 {dimension_numbers = #tpu.dot_dimension_numbers<[1], [0], [0], [1], [0, 0, 1, 1], [], []>} : vector<64x32xbf16>, vector<32x32xbf16>, vector<64x32xf32> -> vector<64x32xf32>
    %c2 = arith.constant 2 : index
    %c0_31 = arith.constant 0 : index
    %101 = vector.load %arg2[%c2, %c0_31] : memref<24x128xf32, #tpu.memory_space<vmem>>, vector<1x32xf32>
    %102 = vector.broadcast %101 : vector<1x32xf32> to vector<64x32xf32>
    %103 = arith.addf %100, %102 : vector<64x32xf32>
    %104 = arith.truncf %97 : vector<64x32xf32> to vector<64x32xbf16>
    %cst_32 = arith.constant 0.000000e+00 : f32
    %105 = vector.broadcast %cst_32 : f32 to vector<64x32xf32>
    %106 = vector.broadcast %8 : vector<1x32xf32> to vector<64x32xf32>
    %107 = arith.mulf %91, %106 : vector<64x32xf32>
    %108 = arith.truncf %107 : vector<64x32xf32> to vector<64x32xbf16>
    %cst_33 = arith.constant dense<0.000000e+00> : vector<64x64xf32>
    %109 = tpu.matmul %108, %104, %cst_33 {dimension_numbers = #tpu.dot_dimension_numbers<[1], [1], [0], [0], [0, 0, 1, 0], [], []>} : vector<64x32xbf16>, vector<64x32xbf16>, vector<64x64xf32> -> vector<64x64xf32>
    %cst_34 = arith.constant 2.500000e-01 : f32
    %110 = vector.broadcast %cst_34 : f32 to vector<64x64xf32>
    %111 = arith.mulf %109, %110 : vector<64x64xf32>
    %112 = arith.addf %111, %35 : vector<64x64xf32>
    %cst_35 = arith.constant dense<0xFF800000> : vector<64xf32>
    %113 = vector.multi_reduction <maximumf>, %112, %cst_35 [1] : vector<64x64xf32> to vector<64xf32>
    %114 = vector.shape_cast %113 : vector<64xf32> to vector<64x1xf32>
    %115 = vector.broadcast %114 : vector<64x1xf32> to vector<64x64xf32>
    %116 = arith.subf %112, %115 : vector<64x64xf32>
    %117 = math.exp %116 : vector<64x64xf32>
    %cst_36 = arith.constant dense<0.000000e+00> : vector<64xf32>
    %118 = vector.multi_reduction <add>, %117, %cst_36 [1] : vector<64x64xf32> to vector<64xf32>
    %119 = vector.shape_cast %118 : vector<64xf32> to vector<64x1xf32>
    %120 = tpu.reciprocal %119 {approx = true} : vector<64x1xf32> -> vector<64x1xf32>
    %121 = vector.broadcast %120 : vector<64x1xf32> to vector<64x64xf32>
    %122 = arith.mulf %117, %121 : vector<64x64xf32>
    %123 = vector.broadcast %8 : vector<1x32xf32> to vector<64x32xf32>
    %124 = arith.mulf %103, %123 : vector<64x32xf32>
    %125 = arith.truncf %124 : vector<64x32xf32> to vector<64x32xbf16>
    %126 = arith.truncf %122 : vector<64x64xf32> to vector<64x64xbf16>
    %cst_37 = arith.constant dense<0.000000e+00> : vector<64x32xf32>
    %127 = tpu.matmul %126, %125, %cst_37 {dimension_numbers = #tpu.dot_dimension_numbers<[1], [0], [0], [1], [0, 0, 1, 1], [], []>} : vector<64x64xbf16>, vector<64x32xbf16>, vector<64x32xf32> -> vector<64x32xf32>
    %128 = arith.addf %105, %127 : vector<64x32xf32>
    %129 = vector.broadcast %15 : vector<1x32xf32> to vector<64x32xf32>
    %130 = arith.mulf %91, %129 : vector<64x32xf32>
    %131 = arith.truncf %130 : vector<64x32xf32> to vector<64x32xbf16>
    %cst_38 = arith.constant dense<0.000000e+00> : vector<64x64xf32>
    %132 = tpu.matmul %131, %104, %cst_38 {dimension_numbers = #tpu.dot_dimension_numbers<[1], [1], [0], [0], [0, 0, 1, 0], [], []>} : vector<64x32xbf16>, vector<64x32xbf16>, vector<64x64xf32> -> vector<64x64xf32>
    %cst_39 = arith.constant 2.500000e-01 : f32
    %133 = vector.broadcast %cst_39 : f32 to vector<64x64xf32>
    %134 = arith.mulf %132, %133 : vector<64x64xf32>
    %135 = arith.addf %134, %35 : vector<64x64xf32>
    %cst_40 = arith.constant dense<0xFF800000> : vector<64xf32>
    %136 = vector.multi_reduction <maximumf>, %135, %cst_40 [1] : vector<64x64xf32> to vector<64xf32>
    %137 = vector.shape_cast %136 : vector<64xf32> to vector<64x1xf32>
    %138 = vector.broadcast %137 : vector<64x1xf32> to vector<64x64xf32>
    %139 = arith.subf %135, %138 : vector<64x64xf32>
    %140 = math.exp %139 : vector<64x64xf32>
    %cst_41 = arith.constant dense<0.000000e+00> : vector<64xf32>
    %141 = vector.multi_reduction <add>, %140, %cst_41 [1] : vector<64x64xf32> to vector<64xf32>
    %142 = vector.shape_cast %141 : vector<64xf32> to vector<64x1xf32>
    %143 = tpu.reciprocal %142 {approx = true} : vector<64x1xf32> -> vector<64x1xf32>
    %144 = vector.broadcast %143 : vector<64x1xf32> to vector<64x64xf32>
    %145 = arith.mulf %140, %144 : vector<64x64xf32>
    %146 = vector.broadcast %15 : vector<1x32xf32> to vector<64x32xf32>
    %147 = arith.mulf %103, %146 : vector<64x32xf32>
    %148 = arith.truncf %147 : vector<64x32xf32> to vector<64x32xbf16>
    %149 = arith.truncf %145 : vector<64x64xf32> to vector<64x64xbf16>
    %cst_42 = arith.constant dense<0.000000e+00> : vector<64x32xf32>
    %150 = tpu.matmul %149, %148, %cst_42 {dimension_numbers = #tpu.dot_dimension_numbers<[1], [0], [0], [1], [0, 0, 1, 1], [], []>} : vector<64x64xbf16>, vector<64x32xbf16>, vector<64x32xf32> -> vector<64x32xf32>
    %151 = arith.addf %128, %150 : vector<64x32xf32>
    %152 = arith.truncf %151 : vector<64x32xf32> to vector<64x32xbf16>
    %c96 = arith.constant 96 : index
    %c0_43 = arith.constant 0 : index
    %153 = vector.load %arg1[%c96, %c0_43] : memref<752x128xbf16, #tpu.memory_space<vmem>>, vector<32x32xbf16>
    %cst_44 = arith.constant dense<0.000000e+00> : vector<64x32xf32>
    %154 = tpu.matmul %152, %153, %cst_44 {dimension_numbers = #tpu.dot_dimension_numbers<[1], [0], [0], [1], [0, 0, 1, 1], [], []>} : vector<64x32xbf16>, vector<32x32xbf16>, vector<64x32xf32> -> vector<64x32xf32>
    %c3 = arith.constant 3 : index
    %c0_45 = arith.constant 0 : index
    %155 = vector.load %arg2[%c3, %c0_45] : memref<24x128xf32, #tpu.memory_space<vmem>>, vector<1x32xf32>
    %156 = vector.broadcast %155 : vector<1x32xf32> to vector<64x32xf32>
    %157 = arith.addf %154, %156 : vector<64x32xf32>
    %158 = arith.addf %0, %157 : vector<64x32xf32>
    %cst_46 = arith.constant dense<0.000000e+00> : vector<64xf32>
    %159 = vector.multi_reduction <add>, %158, %cst_46 [1] : vector<64x32xf32> to vector<64xf32>
    %160 = vector.shape_cast %159 : vector<64xf32> to vector<64x1xf32>
    %cst_47 = arith.constant 3.200000e+01 : f32
    %161 = vector.broadcast %cst_47 : f32 to vector<64x1xf32>
    %162 = arith.divf %160, %161 : vector<64x1xf32>
    %163 = vector.broadcast %162 : vector<64x1xf32> to vector<64x32xf32>
    %164 = arith.subf %158, %163 : vector<64x32xf32>
    %165 = arith.mulf %164, %164 : vector<64x32xf32>
    %cst_48 = arith.constant dense<0.000000e+00> : vector<64xf32>
    %166 = vector.multi_reduction <add>, %165, %cst_48 [1] : vector<64x32xf32> to vector<64xf32>
    %167 = vector.shape_cast %166 : vector<64xf32> to vector<64x1xf32>
    %cst_49 = arith.constant 3.200000e+01 : f32
    %168 = vector.broadcast %cst_49 : f32 to vector<64x1xf32>
    %169 = arith.divf %167, %168 : vector<64x1xf32>
    %cst_50 = arith.constant 9.99999974E-6 : f32
    %170 = vector.broadcast %cst_50 : f32 to vector<64x1xf32>
    %171 = arith.addf %169, %170 : vector<64x1xf32>
    %172 = math.rsqrt %171 : vector<64x1xf32>
    %173 = vector.broadcast %172 : vector<64x1xf32> to vector<64x32xf32>
    %174 = arith.mulf %164, %173 : vector<64x32xf32>
    %c16 = arith.constant 16 : index
    %c0_51 = arith.constant 0 : index
    %175 = vector.load %arg2[%c16, %c0_51] : memref<24x128xf32, #tpu.memory_space<vmem>>, vector<1x32xf32>
    %176 = vector.broadcast %175 : vector<1x32xf32> to vector<64x32xf32>
    %177 = arith.mulf %174, %176 : vector<64x32xf32>
    %c17 = arith.constant 17 : index
    %c0_52 = arith.constant 0 : index
    %178 = vector.load %arg2[%c17, %c0_52] : memref<24x128xf32, #tpu.memory_space<vmem>>, vector<1x32xf32>
    %179 = vector.broadcast %178 : vector<1x32xf32> to vector<64x32xf32>
    %180 = arith.addf %177, %179 : vector<64x32xf32>
    %181 = arith.truncf %180 : vector<64x32xf32> to vector<64x32xbf16>
    %c384 = arith.constant 384 : index
    %c0_53 = arith.constant 0 : index
    %182 = vector.load %arg1[%c384, %c0_53] : memref<752x128xbf16, #tpu.memory_space<vmem>>, vector<32x128xbf16>
    %cst_54 = arith.constant dense<0.000000e+00> : vector<64x128xf32>
    %183 = tpu.matmul %181, %182, %cst_54 {dimension_numbers = #tpu.dot_dimension_numbers<[1], [0], [0], [1], [0, 0, 1, 1], [], []>} : vector<64x32xbf16>, vector<32x128xbf16>, vector<64x128xf32> -> vector<64x128xf32>
    %c12 = arith.constant 12 : index
    %c0_55 = arith.constant 0 : index
    %184 = vector.load %arg2[%c12, %c0_55] : memref<24x128xf32, #tpu.memory_space<vmem>>, vector<1x128xf32>
    %185 = vector.broadcast %184 : vector<1x128xf32> to vector<64x128xf32>
    %186 = arith.addf %183, %185 : vector<64x128xf32>
    %cst_56 = arith.constant 5.000000e-01 : f32
    %187 = vector.broadcast %cst_56 : f32 to vector<64x128xf32>
    %188 = arith.mulf %187, %186 : vector<64x128xf32>
    %cst_57 = arith.constant 4.471500e-02 : f32
    %189 = vector.broadcast %cst_57 : f32 to vector<64x128xf32>
    %190 = arith.mulf %189, %186 : vector<64x128xf32>
    %191 = arith.mulf %190, %186 : vector<64x128xf32>
    %192 = arith.mulf %191, %186 : vector<64x128xf32>
    %193 = arith.addf %186, %192 : vector<64x128xf32>
    %cst_58 = arith.constant 0.797884583 : f32
    %194 = vector.broadcast %cst_58 : f32 to vector<64x128xf32>
    %195 = arith.mulf %194, %193 : vector<64x128xf32>
    %196 = math.tanh %195 : vector<64x128xf32>
    %cst_59 = arith.constant 1.000000e+00 : f32
    %197 = vector.broadcast %cst_59 : f32 to vector<64x128xf32>
    %198 = arith.addf %197, %196 : vector<64x128xf32>
    %199 = arith.mulf %188, %198 : vector<64x128xf32>
    %200 = arith.truncf %199 : vector<64x128xf32> to vector<64x128xbf16>
    %c448 = arith.constant 448 : index
    %c0_60 = arith.constant 0 : index
    %201 = vector.load %arg1[%c448, %c0_60] : memref<752x128xbf16, #tpu.memory_space<vmem>>, vector<128x32xbf16>
    %cst_61 = arith.constant dense<0.000000e+00> : vector<64x32xf32>
    %202 = tpu.matmul %200, %201, %cst_61 {dimension_numbers = #tpu.dot_dimension_numbers<[1], [0], [0], [1], [0, 0, 1, 1], [], []>} : vector<64x128xbf16>, vector<128x32xbf16>, vector<64x32xf32> -> vector<64x32xf32>
    %c13 = arith.constant 13 : index
    %c0_62 = arith.constant 0 : index
    %203 = vector.load %arg2[%c13, %c0_62] : memref<24x128xf32, #tpu.memory_space<vmem>>, vector<1x32xf32>
    %204 = vector.broadcast %203 : vector<1x32xf32> to vector<64x32xf32>
    %205 = arith.addf %202, %204 : vector<64x32xf32>
    %206 = arith.addf %180, %205 : vector<64x32xf32>
    %cst_63 = arith.constant dense<0.000000e+00> : vector<64xf32>
    %207 = vector.multi_reduction <add>, %206, %cst_63 [1] : vector<64x32xf32> to vector<64xf32>
    %208 = vector.shape_cast %207 : vector<64xf32> to vector<64x1xf32>
    %cst_64 = arith.constant 3.200000e+01 : f32
    %209 = vector.broadcast %cst_64 : f32 to vector<64x1xf32>
    %210 = arith.divf %208, %209 : vector<64x1xf32>
    %211 = vector.broadcast %210 : vector<64x1xf32> to vector<64x32xf32>
    %212 = arith.subf %206, %211 : vector<64x32xf32>
    %213 = arith.mulf %212, %212 : vector<64x32xf32>
    %cst_65 = arith.constant dense<0.000000e+00> : vector<64xf32>
    %214 = vector.multi_reduction <add>, %213, %cst_65 [1] : vector<64x32xf32> to vector<64xf32>
    %215 = vector.shape_cast %214 : vector<64xf32> to vector<64x1xf32>
    %cst_66 = arith.constant 3.200000e+01 : f32
    %216 = vector.broadcast %cst_66 : f32 to vector<64x1xf32>
    %217 = arith.divf %215, %216 : vector<64x1xf32>
    %cst_67 = arith.constant 9.99999974E-6 : f32
    %218 = vector.broadcast %cst_67 : f32 to vector<64x1xf32>
    %219 = arith.addf %217, %218 : vector<64x1xf32>
    %220 = math.rsqrt %219 : vector<64x1xf32>
    %221 = vector.broadcast %220 : vector<64x1xf32> to vector<64x32xf32>
    %222 = arith.mulf %212, %221 : vector<64x32xf32>
    %c18 = arith.constant 18 : index
    %c0_68 = arith.constant 0 : index
    %223 = vector.load %arg2[%c18, %c0_68] : memref<24x128xf32, #tpu.memory_space<vmem>>, vector<1x32xf32>
    %224 = vector.broadcast %223 : vector<1x32xf32> to vector<64x32xf32>
    %225 = arith.mulf %222, %224 : vector<64x32xf32>
    %c19 = arith.constant 19 : index
    %c0_69 = arith.constant 0 : index
    %226 = vector.load %arg2[%c19, %c0_69] : memref<24x128xf32, #tpu.memory_space<vmem>>, vector<1x32xf32>
    %227 = vector.broadcast %226 : vector<1x32xf32> to vector<64x32xf32>
    %228 = arith.addf %225, %227 : vector<64x32xf32>
    %c704 = arith.constant 704 : index
    %c0_70 = arith.constant 0 : index
    %229 = vector.load %arg1[%c704, %c0_70] : memref<752x128xbf16, #tpu.memory_space<vmem>>, vector<48x32xbf16>
    %c128 = arith.constant 128 : index
    %c0_71 = arith.constant 0 : index
    %230 = vector.load %arg1[%c128, %c0_71] : memref<752x128xbf16, #tpu.memory_space<vmem>>, vector<32x32xbf16>
    %cst_72 = arith.constant dense<0.000000e+00> : vector<48x32xf32>
    %231 = tpu.matmul %229, %230, %cst_72 {dimension_numbers = #tpu.dot_dimension_numbers<[1], [0], [0], [1], [0, 0, 1, 1], [], []>} : vector<48x32xbf16>, vector<32x32xbf16>, vector<48x32xf32> -> vector<48x32xf32>
    %c4 = arith.constant 4 : index
    %c0_73 = arith.constant 0 : index
    %232 = vector.load %arg2[%c4, %c0_73] : memref<24x128xf32, #tpu.memory_space<vmem>>, vector<1x32xf32>
    %233 = vector.broadcast %232 : vector<1x32xf32> to vector<48x32xf32>
    %234 = arith.addf %231, %233 : vector<48x32xf32>
    %235 = arith.truncf %228 : vector<64x32xf32> to vector<64x32xbf16>
    %c160 = arith.constant 160 : index
    %c0_74 = arith.constant 0 : index
    %236 = vector.load %arg1[%c160, %c0_74] : memref<752x128xbf16, #tpu.memory_space<vmem>>, vector<32x32xbf16>
    %cst_75 = arith.constant dense<0.000000e+00> : vector<64x32xf32>
    %237 = tpu.matmul %235, %236, %cst_75 {dimension_numbers = #tpu.dot_dimension_numbers<[1], [0], [0], [1], [0, 0, 1, 1], [], []>} : vector<64x32xbf16>, vector<32x32xbf16>, vector<64x32xf32> -> vector<64x32xf32>
    %c5 = arith.constant 5 : index
    %c0_76 = arith.constant 0 : index
    %238 = vector.load %arg2[%c5, %c0_76] : memref<24x128xf32, #tpu.memory_space<vmem>>, vector<1x32xf32>
    %239 = vector.broadcast %238 : vector<1x32xf32> to vector<64x32xf32>
    %240 = arith.addf %237, %239 : vector<64x32xf32>
    %241 = arith.truncf %228 : vector<64x32xf32> to vector<64x32xbf16>
    %c192 = arith.constant 192 : index
    %c0_77 = arith.constant 0 : index
    %242 = vector.load %arg1[%c192, %c0_77] : memref<752x128xbf16, #tpu.memory_space<vmem>>, vector<32x32xbf16>
    %cst_78 = arith.constant dense<0.000000e+00> : vector<64x32xf32>
    %243 = tpu.matmul %241, %242, %cst_78 {dimension_numbers = #tpu.dot_dimension_numbers<[1], [0], [0], [1], [0, 0, 1, 1], [], []>} : vector<64x32xbf16>, vector<32x32xbf16>, vector<64x32xf32> -> vector<64x32xf32>
    %c6 = arith.constant 6 : index
    %c0_79 = arith.constant 0 : index
    %244 = vector.load %arg2[%c6, %c0_79] : memref<24x128xf32, #tpu.memory_space<vmem>>, vector<1x32xf32>
    %245 = vector.broadcast %244 : vector<1x32xf32> to vector<64x32xf32>
    %246 = arith.addf %243, %245 : vector<64x32xf32>
    %247 = arith.truncf %240 : vector<64x32xf32> to vector<64x32xbf16>
    %cst_80 = arith.constant 0.000000e+00 : f32
    %248 = vector.broadcast %cst_80 : f32 to vector<48x32xf32>
    %249 = vector.broadcast %8 : vector<1x32xf32> to vector<48x32xf32>
    %250 = arith.mulf %234, %249 : vector<48x32xf32>
    %251 = arith.truncf %250 : vector<48x32xf32> to vector<48x32xbf16>
    %cst_81 = arith.constant dense<0.000000e+00> : vector<48x64xf32>
    %252 = tpu.matmul %251, %247, %cst_81 {dimension_numbers = #tpu.dot_dimension_numbers<[1], [1], [0], [0], [0, 0, 1, 0], [], []>} : vector<48x32xbf16>, vector<64x32xbf16>, vector<48x64xf32> -> vector<48x64xf32>
    %cst_82 = arith.constant 2.500000e-01 : f32
    %253 = vector.broadcast %cst_82 : f32 to vector<48x64xf32>
    %254 = arith.mulf %252, %253 : vector<48x64xf32>
    %255 = arith.addf %254, %69 : vector<48x64xf32>
    %cst_83 = arith.constant dense<0xFF800000> : vector<48xf32>
    %256 = vector.multi_reduction <maximumf>, %255, %cst_83 [1] : vector<48x64xf32> to vector<48xf32>
    %257 = vector.shape_cast %256 : vector<48xf32> to vector<48x1xf32>
    %258 = vector.broadcast %257 : vector<48x1xf32> to vector<48x64xf32>
    %259 = arith.subf %255, %258 : vector<48x64xf32>
    %260 = math.exp %259 : vector<48x64xf32>
    %cst_84 = arith.constant dense<0.000000e+00> : vector<48xf32>
    %261 = vector.multi_reduction <add>, %260, %cst_84 [1] : vector<48x64xf32> to vector<48xf32>
    %262 = vector.shape_cast %261 : vector<48xf32> to vector<48x1xf32>
    %263 = tpu.reciprocal %262 {approx = true} : vector<48x1xf32> -> vector<48x1xf32>
    %264 = vector.broadcast %263 : vector<48x1xf32> to vector<48x64xf32>
    %265 = arith.mulf %260, %264 : vector<48x64xf32>
    %266 = vector.broadcast %8 : vector<1x32xf32> to vector<64x32xf32>
    %267 = arith.mulf %246, %266 : vector<64x32xf32>
    %268 = arith.truncf %267 : vector<64x32xf32> to vector<64x32xbf16>
    %269 = arith.truncf %265 : vector<48x64xf32> to vector<48x64xbf16>
    %cst_85 = arith.constant dense<0.000000e+00> : vector<48x32xf32>
    %270 = tpu.matmul %269, %268, %cst_85 {dimension_numbers = #tpu.dot_dimension_numbers<[1], [0], [0], [1], [0, 0, 1, 1], [], []>} : vector<48x64xbf16>, vector<64x32xbf16>, vector<48x32xf32> -> vector<48x32xf32>
    %271 = arith.addf %248, %270 : vector<48x32xf32>
    %272 = vector.broadcast %15 : vector<1x32xf32> to vector<48x32xf32>
    %273 = arith.mulf %234, %272 : vector<48x32xf32>
    %274 = arith.truncf %273 : vector<48x32xf32> to vector<48x32xbf16>
    %cst_86 = arith.constant dense<0.000000e+00> : vector<48x64xf32>
    %275 = tpu.matmul %274, %247, %cst_86 {dimension_numbers = #tpu.dot_dimension_numbers<[1], [1], [0], [0], [0, 0, 1, 0], [], []>} : vector<48x32xbf16>, vector<64x32xbf16>, vector<48x64xf32> -> vector<48x64xf32>
    %cst_87 = arith.constant 2.500000e-01 : f32
    %276 = vector.broadcast %cst_87 : f32 to vector<48x64xf32>
    %277 = arith.mulf %275, %276 : vector<48x64xf32>
    %278 = arith.addf %277, %69 : vector<48x64xf32>
    %cst_88 = arith.constant dense<0xFF800000> : vector<48xf32>
    %279 = vector.multi_reduction <maximumf>, %278, %cst_88 [1] : vector<48x64xf32> to vector<48xf32>
    %280 = vector.shape_cast %279 : vector<48xf32> to vector<48x1xf32>
    %281 = vector.broadcast %280 : vector<48x1xf32> to vector<48x64xf32>
    %282 = arith.subf %278, %281 : vector<48x64xf32>
    %283 = math.exp %282 : vector<48x64xf32>
    %cst_89 = arith.constant dense<0.000000e+00> : vector<48xf32>
    %284 = vector.multi_reduction <add>, %283, %cst_89 [1] : vector<48x64xf32> to vector<48xf32>
    %285 = vector.shape_cast %284 : vector<48xf32> to vector<48x1xf32>
    %286 = tpu.reciprocal %285 {approx = true} : vector<48x1xf32> -> vector<48x1xf32>
    %287 = vector.broadcast %286 : vector<48x1xf32> to vector<48x64xf32>
    %288 = arith.mulf %283, %287 : vector<48x64xf32>
    %289 = vector.broadcast %15 : vector<1x32xf32> to vector<64x32xf32>
    %290 = arith.mulf %246, %289 : vector<64x32xf32>
    %291 = arith.truncf %290 : vector<64x32xf32> to vector<64x32xbf16>
    %292 = arith.truncf %288 : vector<48x64xf32> to vector<48x64xbf16>
    %cst_90 = arith.constant dense<0.000000e+00> : vector<48x32xf32>
    %293 = tpu.matmul %292, %291, %cst_90 {dimension_numbers = #tpu.dot_dimension_numbers<[1], [0], [0], [1], [0, 0, 1, 1], [], []>} : vector<48x64xbf16>, vector<64x32xbf16>, vector<48x32xf32> -> vector<48x32xf32>
    %294 = arith.addf %271, %293 : vector<48x32xf32>
    %295 = arith.truncf %294 : vector<48x32xf32> to vector<48x32xbf16>
    %c224 = arith.constant 224 : index
    %c0_91 = arith.constant 0 : index
    %296 = vector.load %arg1[%c224, %c0_91] : memref<752x128xbf16, #tpu.memory_space<vmem>>, vector<32x32xbf16>
    %cst_92 = arith.constant dense<0.000000e+00> : vector<48x32xf32>
    %297 = tpu.matmul %295, %296, %cst_92 {dimension_numbers = #tpu.dot_dimension_numbers<[1], [0], [0], [1], [0, 0, 1, 1], [], []>} : vector<48x32xbf16>, vector<32x32xbf16>, vector<48x32xf32> -> vector<48x32xf32>
    %c7 = arith.constant 7 : index
    %c0_93 = arith.constant 0 : index
    %298 = vector.load %arg2[%c7, %c0_93] : memref<24x128xf32, #tpu.memory_space<vmem>>, vector<1x32xf32>
    %299 = vector.broadcast %298 : vector<1x32xf32> to vector<48x32xf32>
    %300 = arith.addf %297, %299 : vector<48x32xf32>
    %301 = arith.truncf %228 : vector<64x32xf32> to vector<64x32xbf16>
    %c256 = arith.constant 256 : index
    %c0_94 = arith.constant 0 : index
    %302 = vector.load %arg1[%c256, %c0_94] : memref<752x128xbf16, #tpu.memory_space<vmem>>, vector<32x32xbf16>
    %cst_95 = arith.constant dense<0.000000e+00> : vector<64x32xf32>
    %303 = tpu.matmul %301, %302, %cst_95 {dimension_numbers = #tpu.dot_dimension_numbers<[1], [0], [0], [1], [0, 0, 1, 1], [], []>} : vector<64x32xbf16>, vector<32x32xbf16>, vector<64x32xf32> -> vector<64x32xf32>
    %c8 = arith.constant 8 : index
    %c0_96 = arith.constant 0 : index
    %304 = vector.load %arg2[%c8, %c0_96] : memref<24x128xf32, #tpu.memory_space<vmem>>, vector<1x32xf32>
    %305 = vector.broadcast %304 : vector<1x32xf32> to vector<64x32xf32>
    %306 = arith.addf %303, %305 : vector<64x32xf32>
    %307 = arith.truncf %300 : vector<48x32xf32> to vector<48x32xbf16>
    %c288 = arith.constant 288 : index
    %c0_97 = arith.constant 0 : index
    %308 = vector.load %arg1[%c288, %c0_97] : memref<752x128xbf16, #tpu.memory_space<vmem>>, vector<32x32xbf16>
    %cst_98 = arith.constant dense<0.000000e+00> : vector<48x32xf32>
    %309 = tpu.matmul %307, %308, %cst_98 {dimension_numbers = #tpu.dot_dimension_numbers<[1], [0], [0], [1], [0, 0, 1, 1], [], []>} : vector<48x32xbf16>, vector<32x32xbf16>, vector<48x32xf32> -> vector<48x32xf32>
    %c9 = arith.constant 9 : index
    %c0_99 = arith.constant 0 : index
    %310 = vector.load %arg2[%c9, %c0_99] : memref<24x128xf32, #tpu.memory_space<vmem>>, vector<1x32xf32>
    %311 = vector.broadcast %310 : vector<1x32xf32> to vector<48x32xf32>
    %312 = arith.addf %309, %311 : vector<48x32xf32>
    %313 = arith.truncf %300 : vector<48x32xf32> to vector<48x32xbf16>
    %c320 = arith.constant 320 : index
    %c0_100 = arith.constant 0 : index
    %314 = vector.load %arg1[%c320, %c0_100] : memref<752x128xbf16, #tpu.memory_space<vmem>>, vector<32x32xbf16>
    %cst_101 = arith.constant dense<0.000000e+00> : vector<48x32xf32>
    %315 = tpu.matmul %313, %314, %cst_101 {dimension_numbers = #tpu.dot_dimension_numbers<[1], [0], [0], [1], [0, 0, 1, 1], [], []>} : vector<48x32xbf16>, vector<32x32xbf16>, vector<48x32xf32> -> vector<48x32xf32>
    %c10 = arith.constant 10 : index
    %c0_102 = arith.constant 0 : index
    %316 = vector.load %arg2[%c10, %c0_102] : memref<24x128xf32, #tpu.memory_space<vmem>>, vector<1x32xf32>
    %317 = vector.broadcast %316 : vector<1x32xf32> to vector<48x32xf32>
    %318 = arith.addf %315, %317 : vector<48x32xf32>
    %319 = arith.truncf %312 : vector<48x32xf32> to vector<48x32xbf16>
    %cst_103 = arith.constant 0.000000e+00 : f32
    %320 = vector.broadcast %cst_103 : f32 to vector<64x32xf32>
    %321 = vector.broadcast %8 : vector<1x32xf32> to vector<64x32xf32>
    %322 = arith.mulf %306, %321 : vector<64x32xf32>
    %323 = arith.truncf %322 : vector<64x32xf32> to vector<64x32xbf16>
    %cst_104 = arith.constant dense<0.000000e+00> : vector<64x48xf32>
    %324 = tpu.matmul %323, %319, %cst_104 {dimension_numbers = #tpu.dot_dimension_numbers<[1], [1], [0], [0], [0, 0, 1, 0], [], []>} : vector<64x32xbf16>, vector<48x32xbf16>, vector<64x48xf32> -> vector<64x48xf32>
    %cst_105 = arith.constant 2.500000e-01 : f32
    %325 = vector.broadcast %cst_105 : f32 to vector<64x48xf32>
    %326 = arith.mulf %324, %325 : vector<64x48xf32>
    %327 = arith.addf %326, %85 : vector<64x48xf32>
    %cst_106 = arith.constant dense<0xFF800000> : vector<64xf32>
    %328 = vector.multi_reduction <maximumf>, %327, %cst_106 [1] : vector<64x48xf32> to vector<64xf32>
    %329 = vector.shape_cast %328 : vector<64xf32> to vector<64x1xf32>
    %330 = vector.broadcast %329 : vector<64x1xf32> to vector<64x48xf32>
    %331 = arith.subf %327, %330 : vector<64x48xf32>
    %332 = math.exp %331 : vector<64x48xf32>
    %cst_107 = arith.constant dense<0.000000e+00> : vector<64xf32>
    %333 = vector.multi_reduction <add>, %332, %cst_107 [1] : vector<64x48xf32> to vector<64xf32>
    %334 = vector.shape_cast %333 : vector<64xf32> to vector<64x1xf32>
    %335 = tpu.reciprocal %334 {approx = true} : vector<64x1xf32> -> vector<64x1xf32>
    %336 = vector.broadcast %335 : vector<64x1xf32> to vector<64x48xf32>
    %337 = arith.mulf %332, %336 : vector<64x48xf32>
    %338 = vector.broadcast %8 : vector<1x32xf32> to vector<48x32xf32>
    %339 = arith.mulf %318, %338 : vector<48x32xf32>
    %340 = arith.truncf %339 : vector<48x32xf32> to vector<48x32xbf16>
    %341 = arith.truncf %337 : vector<64x48xf32> to vector<64x48xbf16>
    %cst_108 = arith.constant dense<0.000000e+00> : vector<64x32xf32>
    %342 = tpu.matmul %341, %340, %cst_108 {dimension_numbers = #tpu.dot_dimension_numbers<[1], [0], [0], [1], [0, 0, 1, 1], [], []>} : vector<64x48xbf16>, vector<48x32xbf16>, vector<64x32xf32> -> vector<64x32xf32>
    %343 = arith.addf %320, %342 : vector<64x32xf32>
    %344 = vector.broadcast %15 : vector<1x32xf32> to vector<64x32xf32>
    %345 = arith.mulf %306, %344 : vector<64x32xf32>
    %346 = arith.truncf %345 : vector<64x32xf32> to vector<64x32xbf16>
    %cst_109 = arith.constant dense<0.000000e+00> : vector<64x48xf32>
    %347 = tpu.matmul %346, %319, %cst_109 {dimension_numbers = #tpu.dot_dimension_numbers<[1], [1], [0], [0], [0, 0, 1, 0], [], []>} : vector<64x32xbf16>, vector<48x32xbf16>, vector<64x48xf32> -> vector<64x48xf32>
    %cst_110 = arith.constant 2.500000e-01 : f32
    %348 = vector.broadcast %cst_110 : f32 to vector<64x48xf32>
    %349 = arith.mulf %347, %348 : vector<64x48xf32>
    %350 = arith.addf %349, %85 : vector<64x48xf32>
    %cst_111 = arith.constant dense<0xFF800000> : vector<64xf32>
    %351 = vector.multi_reduction <maximumf>, %350, %cst_111 [1] : vector<64x48xf32> to vector<64xf32>
    %352 = vector.shape_cast %351 : vector<64xf32> to vector<64x1xf32>
    %353 = vector.broadcast %352 : vector<64x1xf32> to vector<64x48xf32>
    %354 = arith.subf %350, %353 : vector<64x48xf32>
    %355 = math.exp %354 : vector<64x48xf32>
    %cst_112 = arith.constant dense<0.000000e+00> : vector<64xf32>
    %356 = vector.multi_reduction <add>, %355, %cst_112 [1] : vector<64x48xf32> to vector<64xf32>
    %357 = vector.shape_cast %356 : vector<64xf32> to vector<64x1xf32>
    %358 = tpu.reciprocal %357 {approx = true} : vector<64x1xf32> -> vector<64x1xf32>
    %359 = vector.broadcast %358 : vector<64x1xf32> to vector<64x48xf32>
    %360 = arith.mulf %355, %359 : vector<64x48xf32>
    %361 = vector.broadcast %15 : vector<1x32xf32> to vector<48x32xf32>
    %362 = arith.mulf %318, %361 : vector<48x32xf32>
    %363 = arith.truncf %362 : vector<48x32xf32> to vector<48x32xbf16>
    %364 = arith.truncf %360 : vector<64x48xf32> to vector<64x48xbf16>
    %cst_113 = arith.constant dense<0.000000e+00> : vector<64x32xf32>
    %365 = tpu.matmul %364, %363, %cst_113 {dimension_numbers = #tpu.dot_dimension_numbers<[1], [0], [0], [1], [0, 0, 1, 1], [], []>} : vector<64x48xbf16>, vector<48x32xbf16>, vector<64x32xf32> -> vector<64x32xf32>
    %366 = arith.addf %343, %365 : vector<64x32xf32>
    %367 = arith.truncf %366 : vector<64x32xf32> to vector<64x32xbf16>
    %c352 = arith.constant 352 : index
    %c0_114 = arith.constant 0 : index
    %368 = vector.load %arg1[%c352, %c0_114] : memref<752x128xbf16, #tpu.memory_space<vmem>>, vector<32x32xbf16>
    %cst_115 = arith.constant dense<0.000000e+00> : vector<64x32xf32>
    %369 = tpu.matmul %367, %368, %cst_115 {dimension_numbers = #tpu.dot_dimension_numbers<[1], [0], [0], [1], [0, 0, 1, 1], [], []>} : vector<64x32xbf16>, vector<32x32xbf16>, vector<64x32xf32> -> vector<64x32xf32>
    %c11 = arith.constant 11 : index
    %c0_116 = arith.constant 0 : index
    %370 = vector.load %arg2[%c11, %c0_116] : memref<24x128xf32, #tpu.memory_space<vmem>>, vector<1x32xf32>
    %371 = vector.broadcast %370 : vector<1x32xf32> to vector<64x32xf32>
    %372 = arith.addf %369, %371 : vector<64x32xf32>
    %373 = arith.addf %228, %372 : vector<64x32xf32>
    %cst_117 = arith.constant dense<0.000000e+00> : vector<64xf32>
    %374 = vector.multi_reduction <add>, %373, %cst_117 [1] : vector<64x32xf32> to vector<64xf32>
    %375 = vector.shape_cast %374 : vector<64xf32> to vector<64x1xf32>
    %cst_118 = arith.constant 3.200000e+01 : f32
    %376 = vector.broadcast %cst_118 : f32 to vector<64x1xf32>
    %377 = arith.divf %375, %376 : vector<64x1xf32>
    %378 = vector.broadcast %377 : vector<64x1xf32> to vector<64x32xf32>
    %379 = arith.subf %373, %378 : vector<64x32xf32>
    %380 = arith.mulf %379, %379 : vector<64x32xf32>
    %cst_119 = arith.constant dense<0.000000e+00> : vector<64xf32>
    %381 = vector.multi_reduction <add>, %380, %cst_119 [1] : vector<64x32xf32> to vector<64xf32>
    %382 = vector.shape_cast %381 : vector<64xf32> to vector<64x1xf32>
    %cst_120 = arith.constant 3.200000e+01 : f32
    %383 = vector.broadcast %cst_120 : f32 to vector<64x1xf32>
    %384 = arith.divf %382, %383 : vector<64x1xf32>
    %cst_121 = arith.constant 9.99999974E-6 : f32
    %385 = vector.broadcast %cst_121 : f32 to vector<64x1xf32>
    %386 = arith.addf %384, %385 : vector<64x1xf32>
    %387 = math.rsqrt %386 : vector<64x1xf32>
    %388 = vector.broadcast %387 : vector<64x1xf32> to vector<64x32xf32>
    %389 = arith.mulf %379, %388 : vector<64x32xf32>
    %c20 = arith.constant 20 : index
    %c0_122 = arith.constant 0 : index
    %390 = vector.load %arg2[%c20, %c0_122] : memref<24x128xf32, #tpu.memory_space<vmem>>, vector<1x32xf32>
    %391 = vector.broadcast %390 : vector<1x32xf32> to vector<64x32xf32>
    %392 = arith.mulf %389, %391 : vector<64x32xf32>
    %c21 = arith.constant 21 : index
    %c0_123 = arith.constant 0 : index
    %393 = vector.load %arg2[%c21, %c0_123] : memref<24x128xf32, #tpu.memory_space<vmem>>, vector<1x32xf32>
    %394 = vector.broadcast %393 : vector<1x32xf32> to vector<64x32xf32>
    %395 = arith.addf %392, %394 : vector<64x32xf32>
    %396 = arith.truncf %395 : vector<64x32xf32> to vector<64x32xbf16>
    %c416 = arith.constant 416 : index
    %c0_124 = arith.constant 0 : index
    %397 = vector.load %arg1[%c416, %c0_124] : memref<752x128xbf16, #tpu.memory_space<vmem>>, vector<32x128xbf16>
    %cst_125 = arith.constant dense<0.000000e+00> : vector<64x128xf32>
    %398 = tpu.matmul %396, %397, %cst_125 {dimension_numbers = #tpu.dot_dimension_numbers<[1], [0], [0], [1], [0, 0, 1, 1], [], []>} : vector<64x32xbf16>, vector<32x128xbf16>, vector<64x128xf32> -> vector<64x128xf32>
    %c14 = arith.constant 14 : index
    %c0_126 = arith.constant 0 : index
    %399 = vector.load %arg2[%c14, %c0_126] : memref<24x128xf32, #tpu.memory_space<vmem>>, vector<1x128xf32>
    %400 = vector.broadcast %399 : vector<1x128xf32> to vector<64x128xf32>
    %401 = arith.addf %398, %400 : vector<64x128xf32>
    %cst_127 = arith.constant 5.000000e-01 : f32
    %402 = vector.broadcast %cst_127 : f32 to vector<64x128xf32>
    %403 = arith.mulf %402, %401 : vector<64x128xf32>
    %cst_128 = arith.constant 4.471500e-02 : f32
    %404 = vector.broadcast %cst_128 : f32 to vector<64x128xf32>
    %405 = arith.mulf %404, %401 : vector<64x128xf32>
    %406 = arith.mulf %405, %401 : vector<64x128xf32>
    %407 = arith.mulf %406, %401 : vector<64x128xf32>
    %408 = arith.addf %401, %407 : vector<64x128xf32>
    %cst_129 = arith.constant 0.797884583 : f32
    %409 = vector.broadcast %cst_129 : f32 to vector<64x128xf32>
    %410 = arith.mulf %409, %408 : vector<64x128xf32>
    %411 = math.tanh %410 : vector<64x128xf32>
    %cst_130 = arith.constant 1.000000e+00 : f32
    %412 = vector.broadcast %cst_130 : f32 to vector<64x128xf32>
    %413 = arith.addf %412, %411 : vector<64x128xf32>
    %414 = arith.mulf %403, %413 : vector<64x128xf32>
    %415 = arith.truncf %414 : vector<64x128xf32> to vector<64x128xbf16>
    %c576 = arith.constant 576 : index
    %c0_131 = arith.constant 0 : index
    %416 = vector.load %arg1[%c576, %c0_131] : memref<752x128xbf16, #tpu.memory_space<vmem>>, vector<128x32xbf16>
    %cst_132 = arith.constant dense<0.000000e+00> : vector<64x32xf32>
    %417 = tpu.matmul %415, %416, %cst_132 {dimension_numbers = #tpu.dot_dimension_numbers<[1], [0], [0], [1], [0, 0, 1, 1], [], []>} : vector<64x128xbf16>, vector<128x32xbf16>, vector<64x32xf32> -> vector<64x32xf32>
    %c15 = arith.constant 15 : index
    %c0_133 = arith.constant 0 : index
    %418 = vector.load %arg2[%c15, %c0_133] : memref<24x128xf32, #tpu.memory_space<vmem>>, vector<1x32xf32>
    %419 = vector.broadcast %418 : vector<1x32xf32> to vector<64x32xf32>
    %420 = arith.addf %417, %419 : vector<64x32xf32>
    %421 = arith.addf %395, %420 : vector<64x32xf32>
    %cst_134 = arith.constant dense<0.000000e+00> : vector<64xf32>
    %422 = vector.multi_reduction <add>, %421, %cst_134 [1] : vector<64x32xf32> to vector<64xf32>
    %423 = vector.shape_cast %422 : vector<64xf32> to vector<64x1xf32>
    %cst_135 = arith.constant 3.200000e+01 : f32
    %424 = vector.broadcast %cst_135 : f32 to vector<64x1xf32>
    %425 = arith.divf %423, %424 : vector<64x1xf32>
    %426 = vector.broadcast %425 : vector<64x1xf32> to vector<64x32xf32>
    %427 = arith.subf %421, %426 : vector<64x32xf32>
    %428 = arith.mulf %427, %427 : vector<64x32xf32>
    %cst_136 = arith.constant dense<0.000000e+00> : vector<64xf32>
    %429 = vector.multi_reduction <add>, %428, %cst_136 [1] : vector<64x32xf32> to vector<64xf32>
    %430 = vector.shape_cast %429 : vector<64xf32> to vector<64x1xf32>
    %cst_137 = arith.constant 3.200000e+01 : f32
    %431 = vector.broadcast %cst_137 : f32 to vector<64x1xf32>
    %432 = arith.divf %430, %431 : vector<64x1xf32>
    %cst_138 = arith.constant 9.99999974E-6 : f32
    %433 = vector.broadcast %cst_138 : f32 to vector<64x1xf32>
    %434 = arith.addf %432, %433 : vector<64x1xf32>
    %435 = math.rsqrt %434 : vector<64x1xf32>
    %436 = vector.broadcast %435 : vector<64x1xf32> to vector<64x32xf32>
    %437 = arith.mulf %427, %436 : vector<64x32xf32>
    %c22 = arith.constant 22 : index
    %c0_139 = arith.constant 0 : index
    %438 = vector.load %arg2[%c22, %c0_139] : memref<24x128xf32, #tpu.memory_space<vmem>>, vector<1x32xf32>
    %439 = vector.broadcast %438 : vector<1x32xf32> to vector<64x32xf32>
    %440 = arith.mulf %437, %439 : vector<64x32xf32>
    %c23 = arith.constant 23 : index
    %c0_140 = arith.constant 0 : index
    %441 = vector.load %arg2[%c23, %c0_140] : memref<24x128xf32, #tpu.memory_space<vmem>>, vector<1x32xf32>
    %442 = vector.broadcast %441 : vector<1x32xf32> to vector<64x32xf32>
    %443 = arith.addf %440, %442 : vector<64x32xf32>
    %c0_141 = arith.constant 0 : index
    %c0_142 = arith.constant 0 : index
    %444 = vector.load %arg3[%c0_141, %c0_142] : memref<64x32xf32, #tpu.memory_space<vmem>>, vector<64x32xf32>
    tpu.vector_store %arg3[%c0_141, %c0_142], %443 {strides = array<i32>} : memref<64x32xf32, #tpu.memory_space<vmem>>, vector<64x32xf32>,
    return
  }
}

</mosaic_0001>

<llo_original>
// kernel: two_stage_attention_forward.1
$region0: #{two_stage_attention_forward.1}
  #allocation0 [shape = 'u32[]', space=smem, size = 0x4, offset = 0x4, fixed_abs, tag = 'smem constant byte address 0x4 - core index']
  #allocation1 [shape = 'u32[72,128]{1,0:T(1,128)}', space=vmem, size = 0x9000, scoped, tag = 'internal scratch']
  %s0 = inlined_call_operand.hbm [shape: f32[64,32], index: 0, kind: input, shape index: {}]
  %s1 = inlined_call_operand.hbm [shape: bf16[752,128], index: 1, kind: input, shape index: {}]
  %s2 = inlined_call_operand.hbm [shape: f32[24,128], index: 2, kind: input, shape index: {}]
  %s3 = inlined_call_operand.hbm [shape: f32[64,32], index: 3, kind: output, shape index: {}]
  %s4 = sld [smem:[#allocation0]]
  $region34: #{two_stage_attention_forward.1} parent=0
    _
  %s6 = ssub.s32 1, %s4
  %s7 = scalar_select 0, %s6, %s4
  $region1: #{two_stage_attention_forward.1} parent=0
    #allocation2 [shape = 'u8[32768]{0}', space=vmem, size = 0x8000, scoped, tag = 'input window, operand 0, single buffered']
    #allocation3 [shape = 's32[1]{0}', space=sflag, size = 0x4, scoped, tag = 'scoped memory for two_stage_attention_forward.1']
    #allocation4 [shape = 's32[1]{0}', space=sflag, size = 0x4, scoped, tag = 'scoped memory for two_stage_attention_forward.1']
    #allocation5 [shape = 'u8[192512]{0}', space=vmem, size = 0x2f000, scoped, tag = 'input window, operand 1, single buffered']
    #allocation6 [shape = 's32[1]{0}', space=sflag, size = 0x4, scoped, tag = 'scoped memory for two_stage_attention_forward.1']
    #allocation7 [shape = 'u8[12288]{0}', space=vmem, size = 0x3000, scoped, tag = 'input window, operand 2, single buffered']
    #allocation8 [shape = 'u8[32768]{0}', space=vmem, size = 0x8000, scoped, tag = 'output window, operand 0, single buffered']
    %8 = vsyncpa [#allocation3], 0
    %9 = vsyncpa [#allocation6], 0
    %10 = vsyncpa [#allocation4], 0
    // Predicated region
    $region2: #{two_stage_attention_forward.1} parent=1 // pred_check
      _
    $region3: #{two_stage_attention_forward.1} parent=1 // pred_check_branch
      %12 = sbr.rel (0) target = $region5
    $region4: #{two_stage_attention_forward.1} parent=1 // pred_region
      %14 = vsyncadd [#allocation3], 0
      %s15 = sshll.u32 %s0, 4
      %s16 = int_to_ptr.hbm [resolvable:$true] %s15
      %s17 = sshll.u32 [#allocation2], 4
      %s18 = int_to_ptr.vmem [resolvable:$true] %s17
      %23 = dma.hbm_to_vmem [thread:$0]  %s16, 1024, %s18, [#allocation3], 128, 128, 8
    $region5: #{two_stage_attention_forward.1} parent=1 // pred_fallthru
      _
    // Predicated region
    $region6: #{two_stage_attention_forward.1} parent=1 // pred_check
      _
    $region7: #{two_stage_attention_forward.1} parent=1 // pred_check_branch
      %25 = sbr.rel (0) target = $region9
    $region8: #{two_stage_attention_forward.1} parent=1 // pred_region
      %27 = vsyncadd [#allocation6], 0
      %s28 = sshll.u32 %s1, 4
      %s29 = int_to_ptr.hbm [resolvable:$true] %s28
      %s30 = sshll.u32 [#allocation5], 4
      %s31 = int_to_ptr.vmem [resolvable:$true] %s30
      %36 = dma.hbm_to_vmem [thread:$0]  %s29, 6016, %s31, [#allocation6], 64, 64, 4
    $region9: #{two_stage_attention_forward.1} parent=1 // pred_fallthru
      _
    // Predicated region
    $region10: #{two_stage_attention_forward.1} parent=1 // pred_check
      _
    $region11: #{two_stage_attention_forward.1} parent=1 // pred_check_branch
      %38 = sbr.rel (0) target = $region13
    $region12: #{two_stage_attention_forward.1} parent=1 // pred_region
      %40 = vsyncadd [#allocation6], 0
      %s41 = sshll.u32 %s2, 4
      %s42 = int_to_ptr.hbm [resolvable:$true] %s41
      %s43 = sshll.u32 [#allocation7], 4
      %s44 = int_to_ptr.vmem [resolvable:$true] %s43
      %49 = dma.hbm_to_vmem [thread:$0]  %s42, 384, %s44, [#allocation6], 128, 128, 8
    $region13: #{two_stage_attention_forward.1} parent=1 // pred_fallthru
      _
    // Predicated region
    $region14: #{two_stage_attention_forward.1} parent=1 // pred_check
      _
    $region15: #{two_stage_attention_forward.1} parent=1 // pred_check_branch
      %51 = sbr.rel (0) target = $region17
    $region16: #{two_stage_attention_forward.1} parent=1 // pred_region
      %53 = dma.done [#allocation3], 1024
    $region17: #{two_stage_attention_forward.1} parent=1 // pred_fallthru
      _
    // Predicated region
    $region18: #{two_stage_attention_forward.1} parent=1 // pred_check
      _
    $region19: #{two_stage_attention_forward.1} parent=1 // pred_check_branch
      %55 = sbr.rel (0) target = $region21
    $region20: #{two_stage_attention_forward.1} parent=1 // pred_region
      %57 = dma.done [#allocation6], 6016
    $region21: #{two_stage_attention_forward.1} parent=1 // pred_fallthru
      _
    // Predicated region
    $region22: #{two_stage_attention_forward.1} parent=1 // pred_check
      _
    $region23: #{two_stage_attention_forward.1} parent=1 // pred_check_branch
      %59 = sbr.rel (0) target = $region25
    $region24: #{two_stage_attention_forward.1} parent=1 // pred_region
      %61 = dma.done [#allocation6], 384
    $region25: #{two_stage_attention_forward.1} parent=1 // pred_fallthru
      _
    %v63 = vld [vmem:[#allocation2] sm:$0xff]
    %v64 = vld [vmem:[#allocation2 + $0x8] sm:$0xff]
    %v65 = vld [vmem:[#allocation2 + $0x10] sm:$0xff]
    %v66 = vld [vmem:[#allocation2 + $0x18] sm:$0xff]
    %v67 = vld [vmem:[#allocation2 + $0x20] sm:$0xff]
    %v68 = vld [vmem:[#allocation2 + $0x28] sm:$0xff]
    %v69 = vld [vmem:[#allocation2 + $0x30] sm:$0xff]
    %v70 = vld [vmem:[#allocation2 + $0x38] sm:$0xff]
    %v71 = vlaneseq
    %v72 = vand.u32 %v71, 127
    %vm73 = vcmp.ge.s32.totalorder %v72, 0
    %vm74 = vcmp.lt.s32.totalorder %v72, 16
    %vm75 = vmand %vm73, %vm74
    %v76 = vsel %vm75, 1, 0
    %v77 = vcvt.s32.f32 %v76
    %vm78 = vcmp.ge.s32.totalorder %v72, 16
    %vm79 = vcmp.lt.s32.totalorder %v72, 32
    %vm80 = vmand %vm78, %vm79
    %v81 = vsel %vm80, 1, 0
    %v82 = vcvt.s32.f32 %v81
    %v83 = vlaneseq
    %v84 = vshrl.u32 %v83, 7
    %v85 = vadd.s32 %v84, 8
    %v86 = vadd.s32 %v84, 16
    %v87 = vadd.s32 %v84, 24
    %v88 = vadd.s32 %v84, 32
    %v89 = vadd.s32 %v84, 40
    %v90 = vadd.s32 %v84, 48
    %v91 = vadd.s32 %v84, 56
    %v92 = vcvt.s32.f32 %v84
    %v93 = vcvt.s32.f32 %v85
    %v94 = vcvt.s32.f32 %v86
    %v95 = vcvt.s32.f32 %v87
    %v96 = vcvt.s32.f32 %v88
    %v97 = vcvt.s32.f32 %v89
    %v98 = vcvt.s32.f32 %v90
    %v99 = vcvt.s32.f32 %v91
    %v100 = vcvt.s32.f32 %v72
    %v101 = vmul.f32 %v92, 0.125
    %v102 = vmul.f32 %v93, 0.125
    %v103 = vmul.f32 %v94, 0.125
    %v104 = vmul.f32 %v95, 0.125
    %v105 = vmul.f32 %v96, 0.125
    %v106 = vmul.f32 %v97, 0.125
    %v107 = vmul.f32 %v98, 0.125
    %v108 = vmul.f32 %v99, 0.125
    %v109 = vfloor.f32 %v101
    %v110 = vfloor.f32 %v102
    %v111 = vfloor.f32 %v103
    %v112 = vfloor.f32 %v104
    %v113 = vfloor.f32 %v105
    %v114 = vfloor.f32 %v106
    %v115 = vfloor.f32 %v107
    %v116 = vfloor.f32 %v108
    %v117 = vmul.f32 %v100, 0.125
    %v118 = vfloor.f32 %v117
    %vm119 = vcmp.eq.f32.partialorder %v109, %v118
    %vm120 = vcmp.eq.f32.partialorder %v110, %v118
    %vm121 = vcmp.eq.f32.partialorder %v111, %v118
    %vm122 = vcmp.eq.f32.partialorder %v112, %v118
    %vm123 = vcmp.eq.f32.partialorder %v113, %v118
    %vm124 = vcmp.eq.f32.partialorder %v114, %v118
    %vm125 = vcmp.eq.f32.partialorder %v115, %v118
    %vm126 = vcmp.eq.f32.partialorder %v116, %v118
    %v127 = vsel %vm119, 0.0, -1e+30
    %v128 = vsel %vm120, 0.0, -1e+30
    %v129 = vsel %vm121, 0.0, -1e+30
    %v130 = vsel %vm122, 0.0, -1e+30
    %v131 = vsel %vm123, 0.0, -1e+30
    %v132 = vsel %vm124, 0.0, -1e+30
    %v133 = vsel %vm125, 0.0, -1e+30
    %v134 = vsel %vm126, 0.0, -1e+30
    %v135 = vmul.f32 %v92, 0.03125
    %v136 = vmul.f32 %v93, 0.03125
    %v137 = vmul.f32 %v94, 0.03125
    %v138 = vmul.f32 %v95, 0.03125
    %v139 = vmul.f32 %v96, 0.03125
    %v140 = vmul.f32 %v97, 0.03125
    %v141 = vmul.f32 %v98, 0.03125
    %v142 = vmul.f32 %v99, 0.03125
    %v143 = vfloor.f32 %v135
    %v144 = vfloor.f32 %v136
    %v145 = vfloor.f32 %v137
    %v146 = vfloor.f32 %v138
    %v147 = vfloor.f32 %v139
    %v148 = vfloor.f32 %v140
    %v149 = vfloor.f32 %v141
    %v150 = vfloor.f32 %v142
    %v151 = vmul.f32 %v143, 8.0
    %v152 = vmul.f32 %v144, 8.0
    %v153 = vmul.f32 %v145, 8.0
    %v154 = vmul.f32 %v146, 8.0
    %v155 = vmul.f32 %v147, 8.0
    %v156 = vmul.f32 %v148, 8.0
    %v157 = vmul.f32 %v149, 8.0
    %v158 = vmul.f32 %v150, 8.0
    %v159 = vmul.f32 %v109, 8.0
    %v160 = vmul.f32 %v110, 8.0
    %v161 = vmul.f32 %v111, 8.0
    %v162 = vmul.f32 %v112, 8.0
    %v163 = vmul.f32 %v113, 8.0
    %v164 = vmul.f32 %v114, 8.0
    %v165 = vmul.f32 %v115, 8.0
    %v166 = vmul.f32 %v116, 8.0
    %v167 = vsub.f32 %v92, %v159
    %v168 = vsub.f32 %v93, %v160
    %v169 = vsub.f32 %v94, %v161
    %v170 = vsub.f32 %v95, %v162
    %v171 = vsub.f32 %v96, %v163
    %v172 = vsub.f32 %v97, %v164
    %v173 = vsub.f32 %v98, %v165
    %v174 = vsub.f32 %v99, %v166
    %v175 = vadd.f32 %v151, %v167
    %v176 = vadd.f32 %v152, %v168
    %v177 = vadd.f32 %v153, %v169
    %v178 = vadd.f32 %v154, %v170
    %v179 = vadd.f32 %v155, %v171
    %v180 = vadd.f32 %v156, %v172
    %v181 = vadd.f32 %v157, %v173
    %v182 = vadd.f32 %v158, %v174
    %v183 = vmul.f32 %v100, 0.03125
    %v184 = vfloor.f32 %v183
    %v185 = vmul.f32 %v184, 8.0
    %v186 = vmul.f32 %v118, 8.0
    %v187 = vsub.f32 %v100, %v186
    %v188 = vadd.f32 %v185, %v187
    %v189 = vmul.f32 %v188, 3.0
    %vm190 = vcmp.ge.f32.partialorder %v92, %v189
    %vm191 = vcmp.ge.f32.partialorder %v93, %v189
    %vm192 = vcmp.ge.f32.partialorder %v94, %v189
    %vm193 = vcmp.ge.f32.partialorder %v95, %v189
    %vm194 = vcmp.ge.f32.partialorder %v96, %v189
    %vm195 = vcmp.ge.f32.partialorder %v97, %v189
    %v196 = vadd.f32 %v189, 3.0
    %vm197 = vcmp.lt.f32.partialorder %v92, %v196
    %vm198 = vcmp.lt.f32.partialorder %v93, %v196
    %vm199 = vcmp.lt.f32.partialorder %v94, %v196
    %vm200 = vcmp.lt.f32.partialorder %v95, %v196
    %vm201 = vcmp.lt.f32.partialorder %v96, %v196
    %vm202 = vcmp.lt.f32.partialorder %v97, %v196
    %vm203 = vmand %vm190, %vm197
    %vm204 = vmand %vm191, %vm198
    %vm205 = vmand %vm192, %vm199
    %vm206 = vmand %vm193, %vm200
    %vm207 = vmand %vm194, %vm201
    %vm208 = vmand %vm195, %vm202
    %v209 = vsel %vm203, 0.0, -1e+30
    %v210 = vsel %vm204, 0.0, -1e+30
    %v211 = vsel %vm205, 0.0, -1e+30
    %v212 = vsel %vm206, 0.0, -1e+30
    %v213 = vsel %vm207, 0.0, -1e+30
    %v214 = vsel %vm208, 0.0, -1e+30
    %v215 = vmul.f32 %v175, 3.0
    %v216 = vmul.f32 %v176, 3.0
    %v217 = vmul.f32 %v177, 3.0
    %v218 = vmul.f32 %v178, 3.0
    %v219 = vmul.f32 %v179, 3.0
    %v220 = vmul.f32 %v180, 3.0
    %v221 = vmul.f32 %v181, 3.0
    %v222 = vmul.f32 %v182, 3.0
    %vm223 = vcmp.ge.f32.partialorder %v100, %v215
    %vm224 = vcmp.ge.f32.partialorder %v100, %v216
    %vm225 = vcmp.ge.f32.partialorder %v100, %v217
    %vm226 = vcmp.ge.f32.partialorder %v100, %v218
    %vm227 = vcmp.ge.f32.partialorder %v100, %v219
    %vm228 = vcmp.ge.f32.partialorder %v100, %v220
    %vm229 = vcmp.ge.f32.partialorder %v100, %v221
    %vm230 = vcmp.ge.f32.partialorder %v100, %v222
    %v231 = vadd.f32 %v215, 3.0
    %v232 = vadd.f32 %v216, 3.0
    %v233 = vadd.f32 %v217, 3.0
    %v234 = vadd.f32 %v218, 3.0
    %v235 = vadd.f32 %v219, 3.0
    %v236 = vadd.f32 %v220, 3.0
    %v237 = vadd.f32 %v221, 3.0
    %v238 = vadd.f32 %v222, 3.0
    %vm239 = vcmp.lt.f32.partialorder %v100, %v231
    %vm240 = vcmp.lt.f32.partialorder %v100, %v232
    %vm241 = vcmp.lt.f32.partialorder %v100, %v233
    %vm242 = vcmp.lt.f32.partialorder %v100, %v234
    %vm243 = vcmp.lt.f32.partialorder %v100, %v235
    %vm244 = vcmp.lt.f32.partialorder %v100, %v236
    %vm245 = vcmp.lt.f32.partialorder %v100, %v237
    %vm246 = vcmp.lt.f32.partialorder %v100, %v238
    %vm247 = vmand %vm223, %vm239
    %vm248 = vmand %vm224, %vm240
    %vm249 = vmand %vm225, %vm241
    %vm250 = vmand %vm226, %vm242
    %vm251 = vmand %vm227, %vm243
    %vm252 = vmand %vm228, %vm244
    %vm253 = vmand %vm229, %vm245
    %vm254 = vmand %vm230, %vm246
    %v255 = vsel %vm247, 0.0, -1e+30
    %v256 = vsel %vm248, 0.0, -1e+30
    %v257 = vsel %vm249, 0.0, -1e+30
    %v258 = vsel %vm250, 0.0, -1e+30
    %v259 = vsel %vm251, 0.0, -1e+30
    %v260 = vsel %vm252, 0.0, -1e+30
    %v261 = vsel %vm253, 0.0, -1e+30
    %v262 = vsel %vm254, 0.0, -1e+30
    %v263 = vpack.c.bf16 %v64, %v63
    %v264 = vpack.c.bf16 %v66, %v65
    %v265 = vpack.c.bf16 %v68, %v67
    %v266 = vpack.c.bf16 %v70, %v69
    %v267 = vld [vmem:[#allocation5] sm:$0xf]
    %v268 = vld [vmem:[#allocation5 + $0x4] sm:$0xf]
    %v269 = vld [vmem:[#allocation5 + $0x8] sm:$0xf]
    %v270 = vld [vmem:[#allocation5 + $0xc] sm:$0xf]
    %v271 = vld [vmem:[#allocation7] sm:$0x1]
    %v272 = vperm.slane %v271, 0
    %v277 = vunpack.c.l.b16 %v267
    %v278 = vunpack.c.l.b16 %v268
    %v279 = vunpack.c.l.b16 %v269
    %v280 = vunpack.c.l.b16 %v270
    %v281 = vpack.c.b16 %v278, %v277
    %v282 = vpack.c.b16 %v280, %v279
    %vm285 = vcmask 261120
    %v287 = vsel %vm285, %v263, 0
    %v290 = vsel %vm285, %v264, 0
    %v293 = vsel %vm285, %v265, 0
    %v296 = vsel %vm285, %v266, 0
    %298 = vmatpush.bf16.msra.mxu0 0
    %299 = vmatpush.bf16.msra.mxu0 0
    %300 = vmatpush.bf16.msra.mxu0 0
    %301 = vmatpush.bf16.msra.mxu0 0
    %302 = vmatpush.bf16.msra.mxu0 0
    %303 = vmatpush.bf16.msra.mxu0 0
    %304 = vmatpush.bf16.msra.mxu0 %v282
    %305 = vmatpush.bf16.msra.mxu0 %v281
    %306 = vmatmul.bf16.gmra.mxu0 %v287
    %v307 = vpop.f32.mrf.mxu0
    %v308 = vadd.f32 %v272, %v307
    %v309 = vpop.f32.mrf.mxu0
    %v310 = vadd.f32 %v272, %v309
    %311 = vmatmul.bf16.gmra.mxu0 %v290
    %v312 = vpop.f32.mrf.mxu0
    %v313 = vadd.f32 %v272, %v312
    %v314 = vpop.f32.mrf.mxu0
    %v315 = vadd.f32 %v272, %v314
    %316 = vmatmul.bf16.gmra.mxu0 %v293
    %v317 = vpop.f32.mrf.mxu0
    %v318 = vadd.f32 %v272, %v317
    %v319 = vpop.f32.mrf.mxu0
    %v320 = vadd.f32 %v272, %v319
    %321 = vmatmul.bf16.gmra.mxu0 %v296
    %v322 = vpop.f32.mrf.mxu0
    %v323 = vadd.f32 %v272, %v322
    %v324 = vpop.f32.mrf.mxu0
    %v325 = vadd.f32 %v272, %v324
    %326 = vdwg.mxu0
    %v327 = vld [vmem:[#allocation5 + $0x10] sm:$0xf]
    %v328 = vld [vmem:[#allocation5 + $0x14] sm:$0xf]
    %v329 = vld [vmem:[#allocation5 + $0x18] sm:$0xf]
    %v330 = vld [vmem:[#allocation5 + $0x1c] sm:$0xf]
    %v331 = vld [vmem:[#allocation7 + $0x1] sm:$0x1]
    %v332 = vperm.slane %v331, 0
    %v337 = vunpack.c.l.b16 %v327
    %v338 = vunpack.c.l.b16 %v328
    %v339 = vunpack.c.l.b16 %v329
    %v340 = vunpack.c.l.b16 %v330
    %v341 = vpack.c.b16 %v338, %v337
    %v342 = vpack.c.b16 %v340, %v339
    %345 = vmatpush.bf16.msra.mxu0 0
    %346 = vmatpush.bf16.msra.mxu0 0
    %347 = vmatpush.bf16.msra.mxu0 0
    %348 = vmatpush.bf16.msra.mxu0 0
    %349 = vmatpush.bf16.msra.mxu0 0
    %350 = vmatpush.bf16.msra.mxu0 0
    %351 = vmatpush.bf16.msra.mxu0 %v342
    %352 = vmatpush.bf16.msra.mxu0 %v341
    %353 = vmatmul.bf16.gmra.mxu0 %v287
    %v354 = vpop.f32.mrf.mxu0
    %v355 = vadd.f32 %v332, %v354
    %v356 = vpop.f32.mrf.mxu0
    %v357 = vadd.f32 %v332, %v356
    %358 = vmatmul.bf16.gmra.mxu0 %v290
    %v359 = vpop.f32.mrf.mxu0
    %v360 = vadd.f32 %v332, %v359
    %v361 = vpop.f32.mrf.mxu0
    %v362 = vadd.f32 %v332, %v361
    %363 = vmatmul.bf16.gmra.mxu0 %v293
    %v364 = vpop.f32.mrf.mxu0
    %v365 = vadd.f32 %v332, %v364
    %v366 = vpop.f32.mrf.mxu0
    %v367 = vadd.f32 %v332, %v366
    %368 = vmatmul.bf16.gmra.mxu0 %v296
    %v369 = vpop.f32.mrf.mxu0
    %v370 = vadd.f32 %v332, %v369
    %v371 = vpop.f32.mrf.mxu0
    %v372 = vadd.f32 %v332, %v371
    %373 = vdwg.mxu0
    %v374 = vld [vmem:[#allocation5 + $0x20] sm:$0xf]
    %v375 = vld [vmem:[#allocation5 + $0x24] sm:$0xf]
    %v376 = vld [vmem:[#allocation5 + $0x28] sm:$0xf]
    %v377 = vld [vmem:[#allocation5 + $0x2c] sm:$0xf]
    %v378 = vld [vmem:[#allocation7 + $0x2] sm:$0x1]
    %v379 = vperm.slane %v378, 0
    %v384 = vunpack.c.l.b16 %v374
    %v385 = vunpack.c.l.b16 %v375
    %v386 = vunpack.c.l.b16 %v376
    %v387 = vunpack.c.l.b16 %v377
    %v388 = vpack.c.b16 %v385, %v384
    %v389 = vpack.c.b16 %v387, %v386
    %392 = vmatpush.bf16.msra.mxu0 0
    %393 = vmatpush.bf16.msra.mxu0 0
    %394 = vmatpush.bf16.msra.mxu0 0
    %395 = vmatpush.bf16.msra.mxu0 0
    %396 = vmatpush.bf16.msra.mxu0 0
    %397 = vmatpush.bf16.msra.mxu0 0
    %398 = vmatpush.bf16.msra.mxu0 %v389
    %399 = vmatpush.bf16.msra.mxu0 %v388
    %400 = vmatmul.bf16.gmra.mxu0 %v287
    %v401 = vpop.f32.mrf.mxu0
    %v402 = vadd.f32 %v379, %v401
    %v403 = vpop.f32.mrf.mxu0
    %v404 = vadd.f32 %v379, %v403
    %405 = vmatmul.bf16.gmra.mxu0 %v290
    %v406 = vpop.f32.mrf.mxu0
    %v407 = vadd.f32 %v379, %v406
    %v408 = vpop.f32.mrf.mxu0
    %v409 = vadd.f32 %v379, %v408
    %410 = vmatmul.bf16.gmra.mxu0 %v293
    %v411 = vpop.f32.mrf.mxu0
    %v412 = vadd.f32 %v379, %v411
    %v413 = vpop.f32.mrf.mxu0
    %v414 = vadd.f32 %v379, %v413
    %415 = vmatmul.bf16.gmra.mxu0 %v296
    %v416 = vpop.f32.mrf.mxu0
    %v417 = vadd.f32 %v379, %v416
    %v418 = vpop.f32.mrf.mxu0
    %v419 = vadd.f32 %v379, %v418
    %420 = vdwg.mxu0
    %v421 = vpack.c.bf16 %v357, %v355
    %v422 = vpack.c.bf16 %v362, %v360
    %v423 = vpack.c.bf16 %v367, %v365
    %v424 = vpack.c.bf16 %v372, %v370
    %v425 = vmul.f32 %v308, %v77
    %v426 = vmul.f32 %v310, %v77
    %v427 = vmul.f32 %v313, %v77
    %v428 = vmul.f32 %v315, %v77
    %v429 = vmul.f32 %v318, %v77
    %v430 = vmul.f32 %v320, %v77
    %v431 = vmul.f32 %v323, %v77
    %v432 = vmul.f32 %v325, %v77
    %v433 = vpack.c.bf16 %v426, %v425
    %v434 = vpack.c.bf16 %v428, %v427
    %v435 = vpack.c.bf16 %v430, %v429
    %v436 = vpack.c.bf16 %v432, %v431
    %v438 = vsel %vm285, %v433, 0
    %v441 = vsel %vm285, %v434, 0
    %v444 = vsel %vm285, %v435, 0
    %v447 = vsel %vm285, %v436, 0
    %v450 = vsel %vm285, %v421, 0
    %v453 = vsel %vm285, %v422, 0
    %v456 = vsel %vm285, %v423, 0
    %v459 = vsel %vm285, %v424, 0
    %461 = vmatpush.bf16.xpose.msra.mxu0 0
    %462 = vmatpush.bf16.xpose.msra.mxu0 0
    %463 = vmatpush.bf16.xpose.msra.mxu0 0
    %464 = vmatpush.bf16.xpose.msra.mxu0 0
    %465 = vmatpush.bf16.xpose.msra.mxu0 %v459
    %466 = vmatpush.bf16.xpose.msra.mxu0 %v456
    %467 = vmatpush.bf16.xpose.msra.mxu0 %v453
    %468 = vmatpush.bf16.xpose.msra.mxu0 %v450
    %469 = vmatmul.bf16.gmra.mxu0 %v438
    %v470 = vpop.f32.mrf.mxu0
    %v471 = vadd.f32 0.0, %v470
    %v472 = vpop.f32.mrf.mxu0
    %v473 = vadd.f32 0.0, %v472
    %474 = vmatmul.bf16.gmra.mxu0 %v441
    %v475 = vpop.f32.mrf.mxu0
    %v476 = vadd.f32 0.0, %v475
    %v477 = vpop.f32.mrf.mxu0
    %v478 = vadd.f32 0.0, %v477
    %479 = vmatmul.bf16.gmra.mxu0 %v444
    %v480 = vpop.f32.mrf.mxu0
    %v481 = vadd.f32 0.0, %v480
    %v482 = vpop.f32.mrf.mxu0
    %v483 = vadd.f32 0.0, %v482
    %484 = vmatmul.bf16.gmra.mxu0 %v447
    %v485 = vpop.f32.mrf.mxu0
    %v486 = vadd.f32 0.0, %v485
    %v487 = vpop.f32.mrf.mxu0
    %v488 = vadd.f32 0.0, %v487
    %489 = vdwg.mxu0
    %v490 = vmul.f32 %v471, 0.25
    %v491 = vmul.f32 %v473, 0.25
    %v492 = vmul.f32 %v476, 0.25
    %v493 = vmul.f32 %v478, 0.25
    %v494 = vmul.f32 %v481, 0.25
    %v495 = vmul.f32 %v483, 0.25
    %v496 = vmul.f32 %v486, 0.25
    %v497 = vmul.f32 %v488, 0.25
    %v498 = vadd.f32 %v490, %v127
    %v499 = vadd.f32 %v491, %v128
    %v500 = vadd.f32 %v492, %v129
    %v501 = vadd.f32 %v493, %v130
    %v502 = vadd.f32 %v494, %v131
    %v503 = vadd.f32 %v495, %v132
    %v504 = vadd.f32 %v496, %v133
    %v505 = vadd.f32 %v497, %v134
    %vm506 = vcmask 523264
    %v507 = vsel %vm506, %v498, -inf
    %508 = vmax.xlane.f32.xlu0 %v507
    %v509 = vpop.xlane.xlu0 %508
    %v510 = vsel %vm506, %v499, -inf
    %511 = vmax.xlane.f32.xlu0 %v510
    %v512 = vpop.xlane.xlu0 %511
    %v513 = vsel %vm506, %v500, -inf
    %514 = vmax.xlane.f32.xlu0 %v513
    %v515 = vpop.xlane.xlu0 %514
    %v516 = vsel %vm506, %v501, -inf
    %517 = vmax.xlane.f32.xlu0 %v516
    %v518 = vpop.xlane.xlu0 %517
    %v519 = vsel %vm506, %v502, -inf
    %520 = vmax.xlane.f32.xlu0 %v519
    %v521 = vpop.xlane.xlu0 %520
    %v522 = vsel %vm506, %v503, -inf
    %523 = vmax.xlane.f32.xlu0 %v522
    %v524 = vpop.xlane.xlu0 %523
    %v525 = vsel %vm506, %v504, -inf
    %526 = vmax.xlane.f32.xlu0 %v525
    %v527 = vpop.xlane.xlu0 %526
    %v528 = vsel %vm506, %v505, -inf
    %529 = vmax.xlane.f32.xlu0 %v528
    %v530 = vpop.xlane.xlu0 %529
    %v531 = vsub.f32 %v498, %v509
    %v532 = vsub.f32 %v499, %v512
    %v533 = vsub.f32 %v500, %v515
    %v534 = vsub.f32 %v501, %v518
    %v535 = vsub.f32 %v502, %v521
    %v536 = vsub.f32 %v503, %v524
    %v537 = vsub.f32 %v504, %v527
    %v538 = vsub.f32 %v505, %v530
    %v539 = vmul.f32 %v531, 1.442695
    %v540 = vpow.pop %v539
    %v541 = vmul.f32 %v532, 1.442695
    %v542 = vpow.pop %v541
    %v543 = vmul.f32 %v533, 1.442695
    %v544 = vpow.pop %v543
    %v545 = vmul.f32 %v534, 1.442695
    %v546 = vpow.pop %v545
    %v547 = vmul.f32 %v535, 1.442695
    %v548 = vpow.pop %v547
    %v549 = vmul.f32 %v536, 1.442695
    %v550 = vpow.pop %v549
    %v551 = vmul.f32 %v537, 1.442695
    %v552 = vpow.pop %v551
    %v553 = vmul.f32 %v538, 1.442695
    %v554 = vpow.pop %v553
    %v555 = vsel %vm506, %v540, 0.0
    %556 = vadd.xlane.f32.xlu0 %v555
    %v557 = vpop.xlane.xlu0 %556
    %v558 = vsel %vm506, %v542, 0.0
    %559 = vadd.xlane.f32.xlu0 %v558
    %v560 = vpop.xlane.xlu0 %559
    %v561 = vsel %vm506, %v544, 0.0
    %562 = vadd.xlane.f32.xlu0 %v561
    %v563 = vpop.xlane.xlu0 %562
    %v564 = vsel %vm506, %v546, 0.0
    %565 = vadd.xlane.f32.xlu0 %v564
    %v566 = vpop.xlane.xlu0 %565
    %v567 = vsel %vm506, %v548, 0.0
    %568 = vadd.xlane.f32.xlu0 %v567
    %v569 = vpop.xlane.xlu0 %568
    %v570 = vsel %vm506, %v550, 0.0
    %571 = vadd.xlane.f32.xlu0 %v570
    %v572 = vpop.xlane.xlu0 %571
    %v573 = vsel %vm506, %v552, 0.0
    %574 = vadd.xlane.f32.xlu0 %v573
    %v575 = vpop.xlane.xlu0 %574
    %v576 = vsel %vm506, %v554, 0.0
    %577 = vadd.xlane.f32.xlu0 %v576
    %v578 = vpop.xlane.xlu0 %577
    %v579 = vrcp.pop %v557
    %v580 = vrcp.pop %v560
    %v581 = vrcp.pop %v563
    %v582 = vrcp.pop %v566
    %v583 = vrcp.pop %v569
    %v584 = vrcp.pop %v572
    %v585 = vrcp.pop %v575
    %v586 = vrcp.pop %v578
    %v587 = vmul.f32 %v540, %v579
    %v588 = vmul.f32 %v542, %v580
    %v589 = vmul.f32 %v544, %v581
    %v590 = vmul.f32 %v546, %v582
    %v591 = vmul.f32 %v548, %v583
    %v592 = vmul.f32 %v550, %v584
    %v593 = vmul.f32 %v552, %v585
    %v594 = vmul.f32 %v554, %v586
    %v595 = vmul.f32 %v402, %v77
    %v596 = vmul.f32 %v404, %v77
    %v597 = vmul.f32 %v407, %v77
    %v598 = vmul.f32 %v409, %v77
    %v599 = vmul.f32 %v412, %v77
    %v600 = vmul.f32 %v414, %v77
    %v601 = vmul.f32 %v417, %v77
    %v602 = vmul.f32 %v419, %v77
    %v603 = vpack.c.bf16 %v596, %v595
    %v604 = vpack.c.bf16 %v598, %v597
    %v605 = vpack.c.bf16 %v600, %v599
    %v606 = vpack.c.bf16 %v602, %v601
    %v607 = vpack.c.bf16 %v588, %v587
    %v608 = vpack.c.bf16 %v590, %v589
    %v609 = vpack.c.bf16 %v592, %v591
    %v610 = vpack.c.bf16 %v594, %v593
    %v611 = vmul.f32 %v308, %v82
    %v612 = vmul.f32 %v310, %v82
    %v613 = vmul.f32 %v313, %v82
    %v614 = vmul.f32 %v315, %v82
    %v615 = vmul.f32 %v318, %v82
    %v616 = vmul.f32 %v320, %v82
    %v617 = vmul.f32 %v323, %v82
    %v618 = vmul.f32 %v325, %v82
    %v619 = vpack.c.bf16 %v612, %v611
    %v620 = vpack.c.bf16 %v614, %v613
    %v621 = vpack.c.bf16 %v616, %v615
    %v622 = vpack.c.bf16 %v618, %v617
    %v624 = vsel %vm285, %v619, 0
    %v627 = vsel %vm285, %v620, 0
    %v630 = vsel %vm285, %v621, 0
    %v633 = vsel %vm285, %v622, 0
    %635 = vmatpush.bf16.xpose.msra.mxu0 0
    %636 = vmatpush.bf16.xpose.msra.mxu0 0
    %637 = vmatpush.bf16.xpose.msra.mxu0 0
    %638 = vmatpush.bf16.xpose.msra.mxu0 0
    %639 = vmatpush.bf16.xpose.msra.mxu0 %v459
    %640 = vmatpush.bf16.xpose.msra.mxu0 %v456
    %641 = vmatpush.bf16.xpose.msra.mxu0 %v453
    %642 = vmatpush.bf16.xpose.msra.mxu0 %v450
    %643 = vmatmul.bf16.gmra.mxu0 %v624
    %v644 = vpop.f32.mrf.mxu0
    %v645 = vadd.f32 0.0, %v644
    %v646 = vpop.f32.mrf.mxu0
    %v647 = vadd.f32 0.0, %v646
    %648 = vmatmul.bf16.gmra.mxu0 %v627
    %v649 = vpop.f32.mrf.mxu0
    %v650 = vadd.f32 0.0, %v649
    %v651 = vpop.f32.mrf.mxu0
    %v652 = vadd.f32 0.0, %v651
    %653 = vmatmul.bf16.gmra.mxu0 %v630
    %v654 = vpop.f32.mrf.mxu0
    %v655 = vadd.f32 0.0, %v654
    %v656 = vpop.f32.mrf.mxu0
    %v657 = vadd.f32 0.0, %v656
    %658 = vmatmul.bf16.gmra.mxu0 %v633
    %v659 = vpop.f32.mrf.mxu0
    %v660 = vadd.f32 0.0, %v659
    %v661 = vpop.f32.mrf.mxu0
    %v662 = vadd.f32 0.0, %v661
    %663 = vdwg.mxu0
    %v664 = vmul.f32 %v645, 0.25
    %v665 = vmul.f32 %v647, 0.25
    %v666 = vmul.f32 %v650, 0.25
    %v667 = vmul.f32 %v652, 0.25
    %v668 = vmul.f32 %v655, 0.25
    %v669 = vmul.f32 %v657, 0.25
    %v670 = vmul.f32 %v660, 0.25
    %v671 = vmul.f32 %v662, 0.25
    %v672 = vadd.f32 %v664, %v127
    %v673 = vadd.f32 %v665, %v128
    %v674 = vadd.f32 %v666, %v129
    %v675 = vadd.f32 %v667, %v130
    %v676 = vadd.f32 %v668, %v131
    %v677 = vadd.f32 %v669, %v132
    %v678 = vadd.f32 %v670, %v133
    %v679 = vadd.f32 %v671, %v134
    %v680 = vsel %vm506, %v672, -inf
    %681 = vmax.xlane.f32.xlu0 %v680
    %v682 = vpop.xlane.xlu0 %681
    %v683 = vsel %vm506, %v673, -inf
    %684 = vmax.xlane.f32.xlu0 %v683
    %v685 = vpop.xlane.xlu0 %684
    %v686 = vsel %vm506, %v674, -inf
    %687 = vmax.xlane.f32.xlu0 %v686
    %v688 = vpop.xlane.xlu0 %687
    %v689 = vsel %vm506, %v675, -inf
    %690 = vmax.xlane.f32.xlu0 %v689
    %v691 = vpop.xlane.xlu0 %690
    %v692 = vsel %vm506, %v676, -inf
    %693 = vmax.xlane.f32.xlu0 %v692
    %v694 = vpop.xlane.xlu0 %693
    %v695 = vsel %vm506, %v677, -inf
    %696 = vmax.xlane.f32.xlu0 %v695
    %v697 = vpop.xlane.xlu0 %696
    %v698 = vsel %vm506, %v678, -inf
    %699 = vmax.xlane.f32.xlu0 %v698
    %v700 = vpop.xlane.xlu0 %699
    %v701 = vsel %vm506, %v679, -inf
    %702 = vmax.xlane.f32.xlu0 %v701
    %v703 = vpop.xlane.xlu0 %702
    %v704 = vsub.f32 %v672, %v682
    %v705 = vsub.f32 %v673, %v685
    %v706 = vsub.f32 %v674, %v688
    %v707 = vsub.f32 %v675, %v691
    %v708 = vsub.f32 %v676, %v694
    %v709 = vsub.f32 %v677, %v697
    %v710 = vsub.f32 %v678, %v700
    %v711 = vsub.f32 %v679, %v703
    %v712 = vmul.f32 %v704, 1.442695
    %v713 = vpow.pop %v712
    %v714 = vmul.f32 %v705, 1.442695
    %v715 = vpow.pop %v714
    %v716 = vmul.f32 %v706, 1.442695
    %v717 = vpow.pop %v716
    %v718 = vmul.f32 %v707, 1.442695
    %v719 = vpow.pop %v718
    %v720 = vmul.f32 %v708, 1.442695
    %v721 = vpow.pop %v720
    %v722 = vmul.f32 %v709, 1.442695
    %v723 = vpow.pop %v722
    %v724 = vmul.f32 %v710, 1.442695
    %v725 = vpow.pop %v724
    %v726 = vmul.f32 %v711, 1.442695
    %v727 = vpow.pop %v726
    %v728 = vsel %vm506, %v713, 0.0
    %729 = vadd.xlane.f32.xlu0 %v728
    %v730 = vpop.xlane.xlu0 %729
    %v731 = vsel %vm506, %v715, 0.0
    %732 = vadd.xlane.f32.xlu0 %v731
    %v733 = vpop.xlane.xlu0 %732
    %v734 = vsel %vm506, %v717, 0.0
    %735 = vadd.xlane.f32.xlu0 %v734
    %v736 = vpop.xlane.xlu0 %735
    %v737 = vsel %vm506, %v719, 0.0
    %738 = vadd.xlane.f32.xlu0 %v737
    %v739 = vpop.xlane.xlu0 %738
    %v740 = vsel %vm506, %v721, 0.0
    %741 = vadd.xlane.f32.xlu0 %v740
    %v742 = vpop.xlane.xlu0 %741
    %v743 = vsel %vm506, %v723, 0.0
    %744 = vadd.xlane.f32.xlu0 %v743
    %v745 = vpop.xlane.xlu0 %744
    %v746 = vsel %vm506, %v725, 0.0
    %747 = vadd.xlane.f32.xlu0 %v746
    %v748 = vpop.xlane.xlu0 %747
    %v749 = vsel %vm506, %v727, 0.0
    %750 = vadd.xlane.f32.xlu0 %v749
    %v751 = vpop.xlane.xlu0 %750
    %v752 = vrcp.pop %v730
    %v753 = vrcp.pop %v733
    %v754 = vrcp.pop %v736
    %v755 = vrcp.pop %v739
    %v756 = vrcp.pop %v742
    %v757 = vrcp.pop %v745
    %v758 = vrcp.pop %v748
    %v759 = vrcp.pop %v751
    %v760 = vmul.f32 %v713, %v752
    %v761 = vmul.f32 %v715, %v753
    %v762 = vmul.f32 %v717, %v754
    %v763 = vmul.f32 %v719, %v755
    %v764 = vmul.f32 %v721, %v756
    %v765 = vmul.f32 %v723, %v757
    %v766 = vmul.f32 %v725, %v758
    %v767 = vmul.f32 %v727, %v759
    %v768 = vmul.f32 %v402, %v82
    %v769 = vmul.f32 %v404, %v82
    %v770 = vmul.f32 %v407, %v82
    %v771 = vmul.f32 %v409, %v82
    %v772 = vmul.f32 %v412, %v82
    %v773 = vmul.f32 %v414, %v82
    %v774 = vmul.f32 %v417, %v82
    %v775 = vmul.f32 %v419, %v82
    %v776 = vpack.c.bf16 %v769, %v768
    %v777 = vpack.c.bf16 %v771, %v770
    %v778 = vpack.c.bf16 %v773, %v772
    %v779 = vpack.c.bf16 %v775, %v774
    %v780 = vpack.c.bf16 %v761, %v760
    %v781 = vpack.c.bf16 %v763, %v762
    %v782 = vpack.c.bf16 %v765, %v764
    %v783 = vpack.c.bf16 %v767, %v766
    %v785 = vsel %vm506, %v780, 0
    %v788 = vsel %vm506, %v781, 0
    %v791 = vsel %vm506, %v782, 0
    %v794 = vsel %vm506, %v783, 0
    %796 = vmatpush.bf16.msra.mxu0 0
    %797 = vmatpush.bf16.msra.mxu0 0
    %798 = vmatpush.bf16.msra.mxu0 0
    %799 = vmatpush.bf16.msra.mxu0 0
    %800 = vmatpush.bf16.msra.mxu0 %v779
    %801 = vmatpush.bf16.msra.mxu0 %v778
    %802 = vmatpush.bf16.msra.mxu0 %v777
    %803 = vmatpush.bf16.msra.mxu0 %v776
    %804 = vmatmul.bf16.gmra.mxu0 %v785
    %v805 = vpop.f32.mrf.mxu0
    %v806 = vadd.f32 0.0, %v805
    %v807 = vpop.f32.mrf.mxu0
    %v808 = vadd.f32 0.0, %v807
    %809 = vmatmul.bf16.gmra.mxu0 %v788
    %v810 = vpop.f32.mrf.mxu0
    %v811 = vadd.f32 0.0, %v810
    %v812 = vpop.f32.mrf.mxu0
    %v813 = vadd.f32 0.0, %v812
    %814 = vmatmul.bf16.gmra.mxu0 %v791
    %v815 = vpop.f32.mrf.mxu0
    %v816 = vadd.f32 0.0, %v815
    %v817 = vpop.f32.mrf.mxu0
    %v818 = vadd.f32 0.0, %v817
    %819 = vmatmul.bf16.gmra.mxu0 %v794
    %v820 = vpop.f32.mrf.mxu0
    %v821 = vadd.f32 0.0, %v820
    %v822 = vpop.f32.mrf.mxu0
    %v823 = vadd.f32 0.0, %v822
    %824 = vdwg.mxu0
    %v826 = vsel %vm506, %v607, 0
    %v829 = vsel %vm506, %v608, 0
    %v832 = vsel %vm506, %v609, 0
    %v835 = vsel %vm506, %v610, 0
    %837 = vmatpush.bf16.msra.mxu0 0
    %838 = vmatpush.bf16.msra.mxu0 0
    %839 = vmatpush.bf16.msra.mxu0 0
    %840 = vmatpush.bf16.msra.mxu0 0
    %841 = vmatpush.bf16.msra.mxu0 %v606
    %842 = vmatpush.bf16.msra.mxu0 %v605
    %843 = vmatpush.bf16.msra.mxu0 %v604
    %844 = vmatpush.bf16.msra.mxu0 %v603
    %845 = vmatmul.bf16.gmra.mxu0 %v826
    %v846 = vpop.f32.mrf.mxu0
    %v847 = vadd.f32 %v806, %v846
    %v848 = vpop.f32.mrf.mxu0
    %v849 = vadd.f32 %v808, %v848
    %850 = vmatmul.bf16.gmra.mxu0 %v829
    %v851 = vpop.f32.mrf.mxu0
    %v852 = vadd.f32 %v811, %v851
    %v853 = vpop.f32.mrf.mxu0
    %v854 = vadd.f32 %v813, %v853
    %855 = vmatmul.bf16.gmra.mxu0 %v832
    %v856 = vpop.f32.mrf.mxu0
    %v857 = vadd.f32 %v816, %v856
    %v858 = vpop.f32.mrf.mxu0
    %v859 = vadd.f32 %v818, %v858
    %860 = vmatmul.bf16.gmra.mxu0 %v835
    %v861 = vpop.f32.mrf.mxu0
    %v862 = vadd.f32 %v821, %v861
    %v863 = vpop.f32.mrf.mxu0
    %v864 = vadd.f32 %v823, %v863
    %865 = vdwg.mxu0
    %v866 = vpack.c.bf16 %v849, %v847
    %v867 = vpack.c.bf16 %v854, %v852
    %v868 = vpack.c.bf16 %v859, %v857
    %v869 = vpack.c.bf16 %v864, %v862
    %v870 = vld [vmem:[#allocation5 + $0x30] sm:$0xf]
    %v871 = vld [vmem:[#allocation5 + $0x34] sm:$0xf]
    %v872 = vld [vmem:[#allocation5 + $0x38] sm:$0xf]
    %v873 = vld [vmem:[#allocation5 + $0x3c] sm:$0xf]
    %v874 = vld [vmem:[#allocation7 + $0x3] sm:$0x1]
    %v875 = vperm.slane %v874, 0
    %v880 = vunpack.c.l.b16 %v870
    %v881 = vunpack.c.l.b16 %v871
    %v882 = vunpack.c.l.b16 %v872
    %v883 = vunpack.c.l.b16 %v873
    %v884 = vpack.c.b16 %v881, %v880
    %v885 = vpack.c.b16 %v883, %v882
    %v889 = vsel %vm285, %v866, 0
    %v892 = vsel %vm285, %v867, 0
    %v895 = vsel %vm285, %v868, 0
    %v898 = vsel %vm285, %v869, 0
    %900 = vmatpush.bf16.msra.mxu0 0
    %901 = vmatpush.bf16.msra.mxu0 0
    %902 = vmatpush.bf16.msra.mxu0 0
    %903 = vmatpush.bf16.msra.mxu0 0
    %904 = vmatpush.bf16.msra.mxu0 0
    %905 = vmatpush.bf16.msra.mxu0 0
    %906 = vmatpush.bf16.msra.mxu0 %v885
    %907 = vmatpush.bf16.msra.mxu0 %v884
    %908 = vmatmul.bf16.gmra.mxu0 %v889
    %v909 = vpop.f32.mrf.mxu0
    %v910 = vadd.f32 %v875, %v909
    %v911 = vpop.f32.mrf.mxu0
    %v912 = vadd.f32 %v875, %v911
    %913 = vmatmul.bf16.gmra.mxu0 %v892
    %v914 = vpop.f32.mrf.mxu0
    %v915 = vadd.f32 %v875, %v914
    %v916 = vpop.f32.mrf.mxu0
    %v917 = vadd.f32 %v875, %v916
    %918 = vmatmul.bf16.gmra.mxu0 %v895
    %v919 = vpop.f32.mrf.mxu0
    %v920 = vadd.f32 %v875, %v919
    %v921 = vpop.f32.mrf.mxu0
    %v922 = vadd.f32 %v875, %v921
    %923 = vmatmul.bf16.gmra.mxu0 %v898
    %v924 = vpop.f32.mrf.mxu0
    %v925 = vadd.f32 %v875, %v924
    %v926 = vpop.f32.mrf.mxu0
    %v927 = vadd.f32 %v875, %v926
    %928 = vdwg.mxu0
    %v929 = vadd.f32 %v63, %v910
    %v930 = vadd.f32 %v64, %v912
    %v931 = vadd.f32 %v65, %v915
    %v932 = vadd.f32 %v66, %v917
    %v933 = vadd.f32 %v67, %v920
    %v934 = vadd.f32 %v68, %v922
    %v935 = vadd.f32 %v69, %v925
    %v936 = vadd.f32 %v70, %v927
    %v937 = vsel %vm285, %v929, 0.0
    %938 = vadd.xlane.f32.xlu0 %v937
    %v939 = vpop.xlane.xlu0 %938
    %v940 = vsel %vm285, %v930, 0.0
    %941 = vadd.xlane.f32.xlu0 %v940
    %v942 = vpop.xlane.xlu0 %941
    %v943 = vsel %vm285, %v931, 0.0
    %944 = vadd.xlane.f32.xlu0 %v943
    %v945 = vpop.xlane.xlu0 %944
    %v946 = vsel %vm285, %v932, 0.0
    %947 = vadd.xlane.f32.xlu0 %v946
    %v948 = vpop.xlane.xlu0 %947
    %v949 = vsel %vm285, %v933, 0.0
    %950 = vadd.xlane.f32.xlu0 %v949
    %v951 = vpop.xlane.xlu0 %950
    %v952 = vsel %vm285, %v934, 0.0
    %953 = vadd.xlane.f32.xlu0 %v952
    %v954 = vpop.xlane.xlu0 %953
    %v955 = vsel %vm285, %v935, 0.0
    %956 = vadd.xlane.f32.xlu0 %v955
    %v957 = vpop.xlane.xlu0 %956
    %v958 = vsel %vm285, %v936, 0.0
    %959 = vadd.xlane.f32.xlu0 %v958
    %v960 = vpop.xlane.xlu0 %959
    %v961 = vrcp.pop 32.0
    %v962 = vmul.f32 32.0, %v961
    %v963 = vsub.f32 1.0, %v962
    %v964 = vmul.f32 %v961, %v963
    %v965 = vadd.f32 %v961, %v964
    %vm966 = vweird.f32 %v961
    %v967 = vsel %vm966, %v961, %v965
    %v968 = vmul.f32 %v939, %v967
    %v969 = vmul.f32 %v942, %v967
    %v970 = vmul.f32 %v945, %v967
    %v971 = vmul.f32 %v948, %v967
    %v972 = vmul.f32 %v951, %v967
    %v973 = vmul.f32 %v954, %v967
    %v974 = vmul.f32 %v957, %v967
    %v975 = vmul.f32 %v960, %v967
    %v976 = vsub.f32 %v929, %v968
    %v977 = vsub.f32 %v930, %v969
    %v978 = vsub.f32 %v931, %v970
    %v979 = vsub.f32 %v932, %v971
    %v980 = vsub.f32 %v933, %v972
    %v981 = vsub.f32 %v934, %v973
    %v982 = vsub.f32 %v935, %v974
    %v983 = vsub.f32 %v936, %v975
    %v984 = vmul.f32 %v976, %v976
    %v985 = vmul.f32 %v977, %v977
    %v986 = vmul.f32 %v978, %v978
    %v987 = vmul.f32 %v979, %v979
    %v988 = vmul.f32 %v980, %v980
    %v989 = vmul.f32 %v981, %v981
    %v990 = vmul.f32 %v982, %v982
    %v991 = vmul.f32 %v983, %v983
    %v992 = vsel %vm285, %v984, 0.0
    %993 = vadd.xlane.f32.xlu0 %v992
    %v994 = vpop.xlane.xlu0 %993
    %v995 = vsel %vm285, %v985, 0.0
    %996 = vadd.xlane.f32.xlu0 %v995
    %v997 = vpop.xlane.xlu0 %996
    %v998 = vsel %vm285, %v986, 0.0
    %999 = vadd.xlane.f32.xlu0 %v998
    %v1000 = vpop.xlane.xlu0 %999
    %v1001 = vsel %vm285, %v987, 0.0
    %1002 = vadd.xlane.f32.xlu0 %v1001
    %v1003 = vpop.xlane.xlu0 %1002
    %v1004 = vsel %vm285, %v988, 0.0
    %1005 = vadd.xlane.f32.xlu0 %v1004
    %v1006 = vpop.xlane.xlu0 %1005
    %v1007 = vsel %vm285, %v989, 0.0
    %1008 = vadd.xlane.f32.xlu0 %v1007
    %v1009 = vpop.xlane.xlu0 %1008
    %v1010 = vsel %vm285, %v990, 0.0
    %1011 = vadd.xlane.f32.xlu0 %v1010
    %v1012 = vpop.xlane.xlu0 %1011
    %v1013 = vsel %vm285, %v991, 0.0
    %1014 = vadd.xlane.f32.xlu0 %v1013
    %v1015 = vpop.xlane.xlu0 %1014
    %v1016 = vmul.f32 %v994, %v967
    %v1017 = vmul.f32 %v997, %v967
    %v1018 = vmul.f32 %v1000, %v967
    %v1019 = vmul.f32 %v1003, %v967
    %v1020 = vmul.f32 %v1006, %v967
    %v1021 = vmul.f32 %v1009, %v967
    %v1022 = vmul.f32 %v1012, %v967
    %v1023 = vmul.f32 %v1015, %v967
    %v1024 = vadd.f32 %v1016, 1e-05
    %v1025 = vadd.f32 %v1017, 1e-05
    %v1026 = vadd.f32 %v1018, 1e-05
    %v1027 = vadd.f32 %v1019, 1e-05
    %v1028 = vadd.f32 %v1020, 1e-05
    %v1029 = vadd.f32 %v1021, 1e-05
    %v1030 = vadd.f32 %v1022, 1e-05
    %v1031 = vadd.f32 %v1023, 1e-05
    %v1032 = vrsqrt.pop %v1024
    %v1033 = vmul.f32 %v1032, %v1024
    %v1034 = vmul.f32 %v1033, %v1032
    %v1035 = vmul.f32 0.5, %v1034
    %v1036 = vsub.f32 1.5, %v1035
    %v1037 = vmul.f32 %v1032, %v1036
    %vm1038 = vweird.f32 %v1024
    %vm1039 = vweird.f32 %v1032
    %vm1040 = vmor %vm1038, %vm1039
    %v1041 = vsel %vm1040, %v1032, %v1037
    %v1042 = vrsqrt.pop %v1025
    %v1043 = vmul.f32 %v1042, %v1025
    %v1044 = vmul.f32 %v1043, %v1042
    %v1045 = vmul.f32 0.5, %v1044
    %v1046 = vsub.f32 1.5, %v1045
    %v1047 = vmul.f32 %v1042, %v1046
    %vm1048 = vweird.f32 %v1025
    %vm1049 = vweird.f32 %v1042
    %vm1050 = vmor %vm1048, %vm1049
    %v1051 = vsel %vm1050, %v1042, %v1047
    %v1052 = vrsqrt.pop %v1026
    %v1053 = vmul.f32 %v1052, %v1026
    %v1054 = vmul.f32 %v1053, %v1052
    %v1055 = vmul.f32 0.5, %v1054
    %v1056 = vsub.f32 1.5, %v1055
    %v1057 = vmul.f32 %v1052, %v1056
    %vm1058 = vweird.f32 %v1026
    %vm1059 = vweird.f32 %v1052
    %vm1060 = vmor %vm1058, %vm1059
    %v1061 = vsel %vm1060, %v1052, %v1057
    %v1062 = vrsqrt.pop %v1027
    %v1063 = vmul.f32 %v1062, %v1027
    %v1064 = vmul.f32 %v1063, %v1062
    %v1065 = vmul.f32 0.5, %v1064
    %v1066 = vsub.f32 1.5, %v1065
    %v1067 = vmul.f32 %v1062, %v1066
    %vm1068 = vweird.f32 %v1027
    %vm1069 = vweird.f32 %v1062
    %vm1070 = vmor %vm1068, %vm1069
    %v1071 = vsel %vm1070, %v1062, %v1067
    %v1072 = vrsqrt.pop %v1028
    %v1073 = vmul.f32 %v1072, %v1028
    %v1074 = vmul.f32 %v1073, %v1072
    %v1075 = vmul.f32 0.5, %v1074
    %v1076 = vsub.f32 1.5, %v1075
    %v1077 = vmul.f32 %v1072, %v1076
    %vm1078 = vweird.f32 %v1028
    %vm1079 = vweird.f32 %v1072
    %vm1080 = vmor %vm1078, %vm1079
    %v1081 = vsel %vm1080, %v1072, %v1077
    %v1082 = vrsqrt.pop %v1029
    %v1083 = vmul.f32 %v1082, %v1029
    %v1084 = vmul.f32 %v1083, %v1082
    %v1085 = vmul.f32 0.5, %v1084
    %v1086 = vsub.f32 1.5, %v1085
    %v1087 = vmul.f32 %v1082, %v1086
    %vm1088 = vweird.f32 %v1029
    %vm1089 = vweird.f32 %v1082
    %vm1090 = vmor %vm1088, %vm1089
    %v1091 = vsel %vm1090, %v1082, %v1087
    %v1092 = vrsqrt.pop %v1030
    %v1093 = vmul.f32 %v1092, %v1030
    %v1094 = vmul.f32 %v1093, %v1092
    %v1095 = vmul.f32 0.5, %v1094
    %v1096 = vsub.f32 1.5, %v1095
    %v1097 = vmul.f32 %v1092, %v1096
    %vm1098 = vweird.f32 %v1030
    %vm1099 = vweird.f32 %v1092
    %vm1100 = vmor %vm1098, %vm1099
    %v1101 = vsel %vm1100, %v1092, %v1097
    %v1102 = vrsqrt.pop %v1031
    %v1103 = vmul.f32 %v1102, %v1031
    %v1104 = vmul.f32 %v1103, %v1102
    %v1105 = vmul.f32 0.5, %v1104
    %v1106 = vsub.f32 1.5, %v1105
    %v1107 = vmul.f32 %v1102, %v1106
    %vm1108 = vweird.f32 %v1031
    %vm1109 = vweird.f32 %v1102
    %vm1110 = vmor %vm1108, %vm1109
    %v1111 = vsel %vm1110, %v1102, %v1107
    %v1112 = vmul.f32 %v976, %v1041
    %v1113 = vmul.f32 %v977, %v1051
    %v1114 = vmul.f32 %v978, %v1061
    %v1115 = vmul.f32 %v979, %v1071
    %v1116 = vmul.f32 %v980, %v1081
    %v1117 = vmul.f32 %v981, %v1091
    %v1118 = vmul.f32 %v982, %v1101
    %v1119 = vmul.f32 %v983, %v1111
    %v1120 = vld [vmem:[#allocation7 + $0x10] sm:$0x1]
    %v1121 = vperm.slane %v1120, 0
    %v1122 = vmul.f32 %v1112, %v1121
    %v1123 = vmul.f32 %v1113, %v1121
    %v1124 = vmul.f32 %v1114, %v1121
    %v1125 = vmul.f32 %v1115, %v1121
    %v1126 = vmul.f32 %v1116, %v1121
    %v1127 = vmul.f32 %v1117, %v1121
    %v1128 = vmul.f32 %v1118, %v1121
    %v1129 = vmul.f32 %v1119, %v1121
    %v1130 = vld [vmem:[#allocation7 + $0x11] sm:$0x1]
    %v1131 = vperm.slane %v1130, 0
    %v1132 = vadd.f32 %v1122, %v1131
    %v1133 = vadd.f32 %v1123, %v1131
    %v1134 = vadd.f32 %v1124, %v1131
    %v1135 = vadd.f32 %v1125, %v1131
    %v1136 = vadd.f32 %v1126, %v1131
    %v1137 = vadd.f32 %v1127, %v1131
    %v1138 = vadd.f32 %v1128, %v1131
    %v1139 = vadd.f32 %v1129, %v1131
    %v1140 = vpack.c.bf16 %v1133, %v1132
    %v1141 = vpack.c.bf16 %v1135, %v1134
    %v1142 = vpack.c.bf16 %v1137, %v1136
    %v1143 = vpack.c.bf16 %v1139, %v1138
    %v1144 = vld [vmem:[#allocation5 + $0xc0] sm:$0xf]
    %v1145 = vld [vmem:[#allocation5 + $0xc4] sm:$0xf]
    %v1146 = vld [vmem:[#allocation5 + $0xc8] sm:$0xf]
    %v1147 = vld [vmem:[#allocation5 + $0xcc] sm:$0xf]
    %v1148 = vld [vmem:[#allocation7 + $0xc] sm:$0x1]
    %v1149 = vperm.slane %v1148, 0
    %v1154 = vunpack.c.l.b16 %v1144
    %v1155 = vunpack.c.l.b16 %v1145
    %v1156 = vunpack.c.l.b16 %v1146
    %v1157 = vunpack.c.l.b16 %v1147
    %v1158 = vpack.c.b16 %v1155, %v1154
    %v1159 = vpack.c.b16 %v1157, %v1156
    %v1163 = vsel %vm285, %v1140, 0
    %v1166 = vsel %vm285, %v1141, 0
    %v1169 = vsel %vm285, %v1142, 0
    %v1172 = vsel %vm285, %v1143, 0
    %1174 = vmatpush.bf16.msra.mxu0 0
    %1175 = vmatpush.bf16.msra.mxu0 0
    %1176 = vmatpush.bf16.msra.mxu0 0
    %1177 = vmatpush.bf16.msra.mxu0 0
    %1178 = vmatpush.bf16.msra.mxu0 0
    %1179 = vmatpush.bf16.msra.mxu0 0
    %1180 = vmatpush.bf16.msra.mxu0 %v1159
    %1181 = vmatpush.bf16.msra.mxu0 %v1158
    %1182 = vmatmul.bf16.gmra.mxu0 %v1163
    %v1183 = vpop.f32.mrf.mxu0
    %v1184 = vadd.f32 %v1149, %v1183
    %v1185 = vpop.f32.mrf.mxu0
    %v1186 = vadd.f32 %v1149, %v1185
    %1187 = vmatmul.bf16.gmra.mxu0 %v1166
    %v1188 = vpop.f32.mrf.mxu0
    %v1189 = vadd.f32 %v1149, %v1188
    %v1190 = vpop.f32.mrf.mxu0
    %v1191 = vadd.f32 %v1149, %v1190
    %1192 = vmatmul.bf16.gmra.mxu0 %v1169
    %v1193 = vpop.f32.mrf.mxu0
    %v1194 = vadd.f32 %v1149, %v1193
    %v1195 = vpop.f32.mrf.mxu0
    %v1196 = vadd.f32 %v1149, %v1195
    %1197 = vmatmul.bf16.gmra.mxu0 %v1172
    %v1198 = vpop.f32.mrf.mxu0
    %v1199 = vadd.f32 %v1149, %v1198
    %v1200 = vpop.f32.mrf.mxu0
    %v1201 = vadd.f32 %v1149, %v1200
    %1202 = vdwg.mxu0
    %v1203 = vmul.f32 %v1184, 0.5
    %v1204 = vmul.f32 %v1186, 0.5
    %v1205 = vmul.f32 %v1189, 0.5
    %v1206 = vmul.f32 %v1191, 0.5
    %v1207 = vmul.f32 %v1194, 0.5
    %v1208 = vmul.f32 %v1196, 0.5
    %v1209 = vmul.f32 %v1199, 0.5
    %v1210 = vmul.f32 %v1201, 0.5
    %v1211 = vmul.f32 %v1184, 0.044715
    %v1212 = vmul.f32 %v1186, 0.044715
    %v1213 = vmul.f32 %v1189, 0.044715
    %v1214 = vmul.f32 %v1191, 0.044715
    %v1215 = vmul.f32 %v1194, 0.044715
    %v1216 = vmul.f32 %v1196, 0.044715
    %v1217 = vmul.f32 %v1199, 0.044715
    %v1218 = vmul.f32 %v1201, 0.044715
    %v1219 = vmul.f32 %v1211, %v1184
    %v1220 = vmul.f32 %v1212, %v1186
    %v1221 = vmul.f32 %v1213, %v1189
    %v1222 = vmul.f32 %v1214, %v1191
    %v1223 = vmul.f32 %v1215, %v1194
    %v1224 = vmul.f32 %v1216, %v1196
    %v1225 = vmul.f32 %v1217, %v1199
    %v1226 = vmul.f32 %v1218, %v1201
    %v1227 = vmul.f32 %v1219, %v1184
    %v1228 = vmul.f32 %v1220, %v1186
    %v1229 = vmul.f32 %v1221, %v1189
    %v1230 = vmul.f32 %v1222, %v1191
    %v1231 = vmul.f32 %v1223, %v1194
    %v1232 = vmul.f32 %v1224, %v1196
    %v1233 = vmul.f32 %v1225, %v1199
    %v1234 = vmul.f32 %v1226, %v1201
    %v1235 = vadd.f32 %v1184, %v1227
    %v1236 = vadd.f32 %v1186, %v1228
    %v1237 = vadd.f32 %v1189, %v1229
    %v1238 = vadd.f32 %v1191, %v1230
    %v1239 = vadd.f32 %v1194, %v1231
    %v1240 = vadd.f32 %v1196, %v1232
    %v1241 = vadd.f32 %v1199, %v1233
    %v1242 = vadd.f32 %v1201, %v1234
    %v1243 = vmul.f32 %v1235, 0.7978846
    %v1244 = vmul.f32 %v1236, 0.7978846
    %v1245 = vmul.f32 %v1237, 0.7978846
    %v1246 = vmul.f32 %v1238, 0.7978846
    %v1247 = vmul.f32 %v1239, 0.7978846
    %v1248 = vmul.f32 %v1240, 0.7978846
    %v1249 = vmul.f32 %v1241, 0.7978846
    %v1250 = vmul.f32 %v1242, 0.7978846
    %v1251 = vtanh.pop %v1243
    %v1252 = vtanh.pop %v1244
    %v1253 = vtanh.pop %v1245
    %v1254 = vtanh.pop %v1246
    %v1255 = vtanh.pop %v1247
    %v1256 = vtanh.pop %v1248
    %v1257 = vtanh.pop %v1249
    %v1258 = vtanh.pop %v1250
    %v1259 = vadd.f32 %v1251, 1.0
    %v1260 = vadd.f32 %v1252, 1.0
    %v1261 = vadd.f32 %v1253, 1.0
    %v1262 = vadd.f32 %v1254, 1.0
    %v1263 = vadd.f32 %v1255, 1.0
    %v1264 = vadd.f32 %v1256, 1.0
    %v1265 = vadd.f32 %v1257, 1.0
    %v1266 = vadd.f32 %v1258, 1.0
    %v1267 = vmul.f32 %v1203, %v1259
    %v1268 = vmul.f32 %v1204, %v1260
    %v1269 = vmul.f32 %v1205, %v1261
    %v1270 = vmul.f32 %v1206, %v1262
    %v1271 = vmul.f32 %v1207, %v1263
    %v1272 = vmul.f32 %v1208, %v1264
    %v1273 = vmul.f32 %v1209, %v1265
    %v1274 = vmul.f32 %v1210, %v1266
    %v1275 = vpack.c.bf16 %v1268, %v1267
    %v1276 = vpack.c.bf16 %v1270, %v1269
    %v1277 = vpack.c.bf16 %v1272, %v1271
    %v1278 = vpack.c.bf16 %v1274, %v1273
    %v1279 = vld [vmem:[#allocation5 + $0xe0] sm:$0xf]
    %v1280 = vld [vmem:[#allocation5 + $0xe4] sm:$0xf]
    %v1281 = vld [vmem:[#allocation5 + $0xe8] sm:$0xf]
    %v1282 = vld [vmem:[#allocation5 + $0xec] sm:$0xf]
    %v1283 = vld [vmem:[#allocation5 + $0xf0] sm:$0xf]
    %v1284 = vld [vmem:[#allocation5 + $0xf4] sm:$0xf]
    %v1285 = vld [vmem:[#allocation5 + $0xf8] sm:$0xf]
    %v1286 = vld [vmem:[#allocation5 + $0xfc] sm:$0xf]
    %v1287 = vld [vmem:[#allocation5 + $0x100] sm:$0xf]
    %v1288 = vld [vmem:[#allocation5 + $0x104] sm:$0xf]
    %v1289 = vld [vmem:[#allocation5 + $0x108] sm:$0xf]
    %v1290 = vld [vmem:[#allocation5 + $0x10c] sm:$0xf]
    %v1291 = vld [vmem:[#allocation5 + $0x110] sm:$0xf]
    %v1292 = vld [vmem:[#allocation5 + $0x114] sm:$0xf]
    %v1293 = vld [vmem:[#allocation5 + $0x118] sm:$0xf]
    %v1294 = vld [vmem:[#allocation5 + $0x11c] sm:$0xf]
    %v1295 = vld [vmem:[#allocation7 + $0xd] sm:$0x1]
    %v1296 = vperm.slane %v1295, 0
    %v1313 = vunpack.c.l.b16 %v1279
    %v1314 = vunpack.c.l.b16 %v1280
    %v1315 = vunpack.c.l.b16 %v1281
    %v1316 = vunpack.c.l.b16 %v1282
    %v1317 = vunpack.c.l.b16 %v1283
    %v1318 = vunpack.c.l.b16 %v1284
    %v1319 = vunpack.c.l.b16 %v1285
    %v1320 = vunpack.c.l.b16 %v1286
    %v1321 = vunpack.c.l.b16 %v1287
    %v1322 = vunpack.c.l.b16 %v1288
    %v1323 = vunpack.c.l.b16 %v1289
    %v1324 = vunpack.c.l.b16 %v1290
    %v1325 = vunpack.c.l.b16 %v1291
    %v1326 = vunpack.c.l.b16 %v1292
    %v1327 = vunpack.c.l.b16 %v1293
    %v1328 = vunpack.c.l.b16 %v1294
    %v1329 = vpack.c.b16 %v1314, %v1313
    %v1330 = vpack.c.b16 %v1316, %v1315
    %v1331 = vpack.c.b16 %v1318, %v1317
    %v1332 = vpack.c.b16 %v1320, %v1319
    %v1333 = vpack.c.b16 %v1322, %v1321
    %v1334 = vpack.c.b16 %v1324, %v1323
    %v1335 = vpack.c.b16 %v1326, %v1325
    %v1336 = vpack.c.b16 %v1328, %v1327
    %1345 = vmatpush.bf16.msra.mxu0 %v1336
    %1346 = vmatpush.bf16.msra.mxu0 %v1335
    %1347 = vmatpush.bf16.msra.mxu0 %v1334
    %1348 = vmatpush.bf16.msra.mxu0 %v1333
    %1349 = vmatpush.bf16.msra.mxu0 %v1332
    %1350 = vmatpush.bf16.msra.mxu0 %v1331
    %1351 = vmatpush.bf16.msra.mxu0 %v1330
    %1352 = vmatpush.bf16.msra.mxu0 %v1329
    %1353 = vmatmul.bf16.gmra.mxu0 %v1275
    %v1354 = vpop.f32.mrf.mxu0
    %v1355 = vadd.f32 %v1296, %v1354
    %v1356 = vpop.f32.mrf.mxu0
    %v1357 = vadd.f32 %v1296, %v1356
    %1358 = vmatmul.bf16.gmra.mxu0 %v1276
    %v1359 = vpop.f32.mrf.mxu0
    %v1360 = vadd.f32 %v1296, %v1359
    %v1361 = vpop.f32.mrf.mxu0
    %v1362 = vadd.f32 %v1296, %v1361
    %1363 = vmatmul.bf16.gmra.mxu0 %v1277
    %v1364 = vpop.f32.mrf.mxu0
    %v1365 = vadd.f32 %v1296, %v1364
    %v1366 = vpop.f32.mrf.mxu0
    %v1367 = vadd.f32 %v1296, %v1366
    %1368 = vmatmul.bf16.gmra.mxu0 %v1278
    %v1369 = vpop.f32.mrf.mxu0
    %v1370 = vadd.f32 %v1296, %v1369
    %v1371 = vpop.f32.mrf.mxu0
    %v1372 = vadd.f32 %v1296, %v1371
    %1373 = vdwg.mxu0
    %v1374 = vadd.f32 %v1132, %v1355
    %v1375 = vadd.f32 %v1133, %v1357
    %v1376 = vadd.f32 %v1134, %v1360
    %v1377 = vadd.f32 %v1135, %v1362
    %v1378 = vadd.f32 %v1136, %v1365
    %v1379 = vadd.f32 %v1137, %v1367
    %v1380 = vadd.f32 %v1138, %v1370
    %v1381 = vadd.f32 %v1139, %v1372
    %v1382 = vsel %vm285, %v1374, 0.0
    %1383 = vadd.xlane.f32.xlu0 %v1382
    %v1384 = vpop.xlane.xlu0 %1383
    %v1385 = vsel %vm285, %v1375, 0.0
    %1386 = vadd.xlane.f32.xlu0 %v1385
    %v1387 = vpop.xlane.xlu0 %1386
    %v1388 = vsel %vm285, %v1376, 0.0
    %1389 = vadd.xlane.f32.xlu0 %v1388
    %v1390 = vpop.xlane.xlu0 %1389
    %v1391 = vsel %vm285, %v1377, 0.0
    %1392 = vadd.xlane.f32.xlu0 %v1391
    %v1393 = vpop.xlane.xlu0 %1392
    %v1394 = vsel %vm285, %v1378, 0.0
    %1395 = vadd.xlane.f32.xlu0 %v1394
    %v1396 = vpop.xlane.xlu0 %1395
    %v1397 = vsel %vm285, %v1379, 0.0
    %1398 = vadd.xlane.f32.xlu0 %v1397
    %v1399 = vpop.xlane.xlu0 %1398
    %v1400 = vsel %vm285, %v1380, 0.0
    %1401 = vadd.xlane.f32.xlu0 %v1400
    %v1402 = vpop.xlane.xlu0 %1401
    %v1403 = vsel %vm285, %v1381, 0.0
    %1404 = vadd.xlane.f32.xlu0 %v1403
    %v1405 = vpop.xlane.xlu0 %1404
    %v1406 = vmul.f32 %v1384, %v967
    %v1407 = vmul.f32 %v1387, %v967
    %v1408 = vmul.f32 %v1390, %v967
    %v1409 = vmul.f32 %v1393, %v967
    %v1410 = vmul.f32 %v1396, %v967
    %v1411 = vmul.f32 %v1399, %v967
    %v1412 = vmul.f32 %v1402, %v967
    %v1413 = vmul.f32 %v1405, %v967
    %v1414 = vsub.f32 %v1374, %v1406
    %v1415 = vsub.f32 %v1375, %v1407
    %v1416 = vsub.f32 %v1376, %v1408
    %v1417 = vsub.f32 %v1377, %v1409
    %v1418 = vsub.f32 %v1378, %v1410
    %v1419 = vsub.f32 %v1379, %v1411
    %v1420 = vsub.f32 %v1380, %v1412
    %v1421 = vsub.f32 %v1381, %v1413
    %v1422 = vmul.f32 %v1414, %v1414
    %v1423 = vmul.f32 %v1415, %v1415
    %v1424 = vmul.f32 %v1416, %v1416
    %v1425 = vmul.f32 %v1417, %v1417
    %v1426 = vmul.f32 %v1418, %v1418
    %v1427 = vmul.f32 %v1419, %v1419
    %v1428 = vmul.f32 %v1420, %v1420
    %v1429 = vmul.f32 %v1421, %v1421
    %v1430 = vsel %vm285, %v1422, 0.0
    %1431 = vadd.xlane.f32.xlu0 %v1430
    %v1432 = vpop.xlane.xlu0 %1431
    %v1433 = vsel %vm285, %v1423, 0.0
    %1434 = vadd.xlane.f32.xlu0 %v1433
    %v1435 = vpop.xlane.xlu0 %1434
    %v1436 = vsel %vm285, %v1424, 0.0
    %1437 = vadd.xlane.f32.xlu0 %v1436
    %v1438 = vpop.xlane.xlu0 %1437
    %v1439 = vsel %vm285, %v1425, 0.0
    %1440 = vadd.xlane.f32.xlu0 %v1439
    %v1441 = vpop.xlane.xlu0 %1440
    %v1442 = vsel %vm285, %v1426, 0.0
    %1443 = vadd.xlane.f32.xlu0 %v1442
    %v1444 = vpop.xlane.xlu0 %1443
    %v1445 = vsel %vm285, %v1427, 0.0
    %1446 = vadd.xlane.f32.xlu0 %v1445
    %v1447 = vpop.xlane.xlu0 %1446
    %v1448 = vsel %vm285, %v1428, 0.0
    %1449 = vadd.xlane.f32.xlu0 %v1448
    %v1450 = vpop.xlane.xlu0 %1449
    %v1451 = vsel %vm285, %v1429, 0.0
    %1452 = vadd.xlane.f32.xlu0 %v1451
    %v1453 = vpop.xlane.xlu0 %1452
    %v1454 = vmul.f32 %v1432, %v967
    %v1455 = vmul.f32 %v1435, %v967
    %v1456 = vmul.f32 %v1438, %v967
    %v1457 = vmul.f32 %v1441, %v967
    %v1458 = vmul.f32 %v1444, %v967
    %v1459 = vmul.f32 %v1447, %v967
    %v1460 = vmul.f32 %v1450, %v967
    %v1461 = vmul.f32 %v1453, %v967
    %v1462 = vadd.f32 %v1454, 1e-05
    %v1463 = vadd.f32 %v1455, 1e-05
    %v1464 = vadd.f32 %v1456, 1e-05
    %v1465 = vadd.f32 %v1457, 1e-05
    %v1466 = vadd.f32 %v1458, 1e-05
    %v1467 = vadd.f32 %v1459, 1e-05
    %v1468 = vadd.f32 %v1460, 1e-05
    %v1469 = vadd.f32 %v1461, 1e-05
    %v1470 = vrsqrt.pop %v1462
    %v1471 = vmul.f32 %v1470, %v1462
    %v1472 = vmul.f32 %v1471, %v1470
    %v1473 = vmul.f32 0.5, %v1472
    %v1474 = vsub.f32 1.5, %v1473
    %v1475 = vmul.f32 %v1470, %v1474
    %vm1476 = vweird.f32 %v1462
    %vm1477 = vweird.f32 %v1470
    %vm1478 = vmor %vm1476, %vm1477
    %v1479 = vsel %vm1478, %v1470, %v1475
    %v1480 = vrsqrt.pop %v1463
    %v1481 = vmul.f32 %v1480, %v1463
    %v1482 = vmul.f32 %v1481, %v1480
    %v1483 = vmul.f32 0.5, %v1482
    %v1484 = vsub.f32 1.5, %v1483
    %v1485 = vmul.f32 %v1480, %v1484
    %vm1486 = vweird.f32 %v1463
    %vm1487 = vweird.f32 %v1480
    %vm1488 = vmor %vm1486, %vm1487
    %v1489 = vsel %vm1488, %v1480, %v1485
    %v1490 = vrsqrt.pop %v1464
    %v1491 = vmul.f32 %v1490, %v1464
    %v1492 = vmul.f32 %v1491, %v1490
    %v1493 = vmul.f32 0.5, %v1492
    %v1494 = vsub.f32 1.5, %v1493
    %v1495 = vmul.f32 %v1490, %v1494
    %vm1496 = vweird.f32 %v1464
    %vm1497 = vweird.f32 %v1490
    %vm1498 = vmor %vm1496, %vm1497
    %v1499 = vsel %vm1498, %v1490, %v1495
    %v1500 = vrsqrt.pop %v1465
    %v1501 = vmul.f32 %v1500, %v1465
    %v1502 = vmul.f32 %v1501, %v1500
    %v1503 = vmul.f32 0.5, %v1502
    %v1504 = vsub.f32 1.5, %v1503
    %v1505 = vmul.f32 %v1500, %v1504
    %vm1506 = vweird.f32 %v1465
    %vm1507 = vweird.f32 %v1500
    %vm1508 = vmor %vm1506, %vm1507
    %v1509 = vsel %vm1508, %v1500, %v1505
    %v1510 = vrsqrt.pop %v1466
    %v1511 = vmul.f32 %v1510, %v1466
    %v1512 = vmul.f32 %v1511, %v1510
    %v1513 = vmul.f32 0.5, %v1512
    %v1514 = vsub.f32 1.5, %v1513
    %v1515 = vmul.f32 %v1510, %v1514
    %vm1516 = vweird.f32 %v1466
    %vm1517 = vweird.f32 %v1510
    %vm1518 = vmor %vm1516, %vm1517
    %v1519 = vsel %vm1518, %v1510, %v1515
    %v1520 = vrsqrt.pop %v1467
    %v1521 = vmul.f32 %v1520, %v1467
    %v1522 = vmul.f32 %v1521, %v1520
    %v1523 = vmul.f32 0.5, %v1522
    %v1524 = vsub.f32 1.5, %v1523
    %v1525 = vmul.f32 %v1520, %v1524
    %vm1526 = vweird.f32 %v1467
    %vm1527 = vweird.f32 %v1520
    %vm1528 = vmor %vm1526, %vm1527
    %v1529 = vsel %vm1528, %v1520, %v1525
    %v1530 = vrsqrt.pop %v1468
    %v1531 = vmul.f32 %v1530, %v1468
    %v1532 = vmul.f32 %v1531, %v1530
    %v1533 = vmul.f32 0.5, %v1532
    %v1534 = vsub.f32 1.5, %v1533
    %v1535 = vmul.f32 %v1530, %v1534
    %vm1536 = vweird.f32 %v1468
    %vm1537 = vweird.f32 %v1530
    %vm1538 = vmor %vm1536, %vm1537
    %v1539 = vsel %vm1538, %v1530, %v1535
    %v1540 = vrsqrt.pop %v1469
    %v1541 = vmul.f32 %v1540, %v1469
    %v1542 = vmul.f32 %v1541, %v1540
    %v1543 = vmul.f32 0.5, %v1542
    %v1544 = vsub.f32 1.5, %v1543
    %v1545 = vmul.f32 %v1540, %v1544
    %vm1546 = vweird.f32 %v1469
    %vm1547 = vweird.f32 %v1540
    %vm1548 = vmor %vm1546, %vm1547
    %v1549 = vsel %vm1548, %v1540, %v1545
    %v1550 = vmul.f32 %v1414, %v1479
    %v1551 = vmul.f32 %v1415, %v1489
    %v1552 = vmul.f32 %v1416, %v1499
    %v1553 = vmul.f32 %v1417, %v1509
    %v1554 = vmul.f32 %v1418, %v1519
    %v1555 = vmul.f32 %v1419, %v1529
    %v1556 = vmul.f32 %v1420, %v1539
    %v1557 = vmul.f32 %v1421, %v1549
    %v1558 = vld [vmem:[#allocation7 + $0x12] sm:$0x1]
    %v1559 = vperm.slane %v1558, 0
    %v1560 = vmul.f32 %v1550, %v1559
    %v1561 = vmul.f32 %v1551, %v1559
    %v1562 = vmul.f32 %v1552, %v1559
    %v1563 = vmul.f32 %v1553, %v1559
    %v1564 = vmul.f32 %v1554, %v1559
    %v1565 = vmul.f32 %v1555, %v1559
    %v1566 = vmul.f32 %v1556, %v1559
    %v1567 = vmul.f32 %v1557, %v1559
    %v1568 = vld [vmem:[#allocation7 + $0x13] sm:$0x1]
    %v1569 = vperm.slane %v1568, 0
    %v1570 = vadd.f32 %v1560, %v1569
    %v1571 = vadd.f32 %v1561, %v1569
    %v1572 = vadd.f32 %v1562, %v1569
    %v1573 = vadd.f32 %v1563, %v1569
    %v1574 = vadd.f32 %v1564, %v1569
    %v1575 = vadd.f32 %v1565, %v1569
    %v1576 = vadd.f32 %v1566, %v1569
    %v1577 = vadd.f32 %v1567, %v1569
    %v1578 = vld [vmem:[#allocation5 + $0x160] sm:$0xf]
    %v1579 = vld [vmem:[#allocation5 + $0x164] sm:$0xf]
    %v1580 = vld [vmem:[#allocation5 + $0x168] sm:$0xf]
    %v1581 = vld [vmem:[#allocation5 + $0x16c] sm:$0xf]
    %v1582 = vld [vmem:[#allocation5 + $0x170] sm:$0xf]
    %v1583 = vld [vmem:[#allocation5 + $0x174] sm:$0xf]
    %v1584 = vld [vmem:[#allocation5 + $0x40] sm:$0xf]
    %v1585 = vld [vmem:[#allocation5 + $0x44] sm:$0xf]
    %v1586 = vld [vmem:[#allocation5 + $0x48] sm:$0xf]
    %v1587 = vld [vmem:[#allocation5 + $0x4c] sm:$0xf]
    %v1588 = vld [vmem:[#allocation7 + $0x4] sm:$0x1]
    %v1589 = vperm.slane %v1588, 0
    %v1596 = vunpack.c.l.b16 %v1578
    %v1597 = vunpack.c.l.b16 %v1579
    %v1598 = vunpack.c.l.b16 %v1580
    %v1599 = vunpack.c.l.b16 %v1581
    %v1600 = vunpack.c.l.b16 %v1582
    %v1601 = vunpack.c.l.b16 %v1583
    %v1602 = vpack.c.b16 %v1597, %v1596
    %v1603 = vpack.c.b16 %v1599, %v1598
    %v1604 = vpack.c.b16 %v1601, %v1600
    %v1609 = vunpack.c.l.b16 %v1584
    %v1610 = vunpack.c.l.b16 %v1585
    %v1611 = vunpack.c.l.b16 %v1586
    %v1612 = vunpack.c.l.b16 %v1587
    %v1613 = vpack.c.b16 %v1610, %v1609
    %v1614 = vpack.c.b16 %v1612, %v1611
    %v1618 = vsel %vm285, %v1602, 0
    %v1621 = vsel %vm285, %v1603, 0
    %v1624 = vsel %vm285, %v1604, 0
    %1626 = vmatpush.bf16.msra.mxu0 0
    %1627 = vmatpush.bf16.msra.mxu0 0
    %1628 = vmatpush.bf16.msra.mxu0 0
    %1629 = vmatpush.bf16.msra.mxu0 0
    %1630 = vmatpush.bf16.msra.mxu0 0
    %1631 = vmatpush.bf16.msra.mxu0 0
    %1632 = vmatpush.bf16.msra.mxu0 %v1614
    %1633 = vmatpush.bf16.msra.mxu0 %v1613
    %1634 = vmatmul.bf16.gmra.mxu0 %v1618
    %v1635 = vpop.f32.mrf.mxu0
    %v1636 = vadd.f32 %v1589, %v1635
    %v1637 = vpop.f32.mrf.mxu0
    %v1638 = vadd.f32 %v1589, %v1637
    %1639 = vmatmul.bf16.gmra.mxu0 %v1621
    %v1640 = vpop.f32.mrf.mxu0
    %v1641 = vadd.f32 %v1589, %v1640
    %v1642 = vpop.f32.mrf.mxu0
    %v1643 = vadd.f32 %v1589, %v1642
    %1644 = vmatmul.bf16.gmra.mxu0 %v1624
    %v1645 = vpop.f32.mrf.mxu0
    %v1646 = vadd.f32 %v1589, %v1645
    %v1647 = vpop.f32.mrf.mxu0
    %v1648 = vadd.f32 %v1589, %v1647
    %1649 = vdwg.mxu0
    %v1650 = vpack.c.bf16 %v1571, %v1570
    %v1651 = vpack.c.bf16 %v1573, %v1572
    %v1652 = vpack.c.bf16 %v1575, %v1574
    %v1653 = vpack.c.bf16 %v1577, %v1576
    %v1654 = vld [vmem:[#allocation5 + $0x50] sm:$0xf]
    %v1655 = vld [vmem:[#allocation5 + $0x54] sm:$0xf]
    %v1656 = vld [vmem:[#allocation5 + $0x58] sm:$0xf]
    %v1657 = vld [vmem:[#allocation5 + $0x5c] sm:$0xf]
    %v1658 = vld [vmem:[#allocation7 + $0x5] sm:$0x1]
    %v1659 = vperm.slane %v1658, 0
    %v1664 = vunpack.c.l.b16 %v1654
    %v1665 = vunpack.c.l.b16 %v1655
    %v1666 = vunpack.c.l.b16 %v1656
    %v1667 = vunpack.c.l.b16 %v1657
    %v1668 = vpack.c.b16 %v1665, %v1664
    %v1669 = vpack.c.b16 %v1667, %v1666
    %v1673 = vsel %vm285, %v1650, 0
    %v1676 = vsel %vm285, %v1651, 0
    %v1679 = vsel %vm285, %v1652, 0
    %v1682 = vsel %vm285, %v1653, 0
    %1684 = vmatpush.bf16.msra.mxu0 0
    %1685 = vmatpush.bf16.msra.mxu0 0
    %1686 = vmatpush.bf16.msra.mxu0 0
    %1687 = vmatpush.bf16.msra.mxu0 0
    %1688 = vmatpush.bf16.msra.mxu0 0
    %1689 = vmatpush.bf16.msra.mxu0 0
    %1690 = vmatpush.bf16.msra.mxu0 %v1669
    %1691 = vmatpush.bf16.msra.mxu0 %v1668
    %1692 = vmatmul.bf16.gmra.mxu0 %v1673
    %v1693 = vpop.f32.mrf.mxu0
    %v1694 = vadd.f32 %v1659, %v1693
    %v1695 = vpop.f32.mrf.mxu0
    %v1696 = vadd.f32 %v1659, %v1695
    %1697 = vmatmul.bf16.gmra.mxu0 %v1676
    %v1698 = vpop.f32.mrf.mxu0
    %v1699 = vadd.f32 %v1659, %v1698
    %v1700 = vpop.f32.mrf.mxu0
    %v1701 = vadd.f32 %v1659, %v1700
    %1702 = vmatmul.bf16.gmra.mxu0 %v1679
    %v1703 = vpop.f32.mrf.mxu0
    %v1704 = vadd.f32 %v1659, %v1703
    %v1705 = vpop.f32.mrf.mxu0
    %v1706 = vadd.f32 %v1659, %v1705
    %1707 = vmatmul.bf16.gmra.mxu0 %v1682
    %v1708 = vpop.f32.mrf.mxu0
    %v1709 = vadd.f32 %v1659, %v1708
    %v1710 = vpop.f32.mrf.mxu0
    %v1711 = vadd.f32 %v1659, %v1710
    %1712 = vdwg.mxu0
    %v1713 = vld [vmem:[#allocation5 + $0x60] sm:$0xf]
    %v1714 = vld [vmem:[#allocation5 + $0x64] sm:$0xf]
    %v1715 = vld [vmem:[#allocation5 + $0x68] sm:$0xf]
    %v1716 = vld [vmem:[#allocation5 + $0x6c] sm:$0xf]
    %v1717 = vld [vmem:[#allocation7 + $0x6] sm:$0x1]
    %v1718 = vperm.slane %v1717, 0
    %v1723 = vunpack.c.l.b16 %v1713
    %v1724 = vunpack.c.l.b16 %v1714
    %v1725 = vunpack.c.l.b16 %v1715
    %v1726 = vunpack.c.l.b16 %v1716
    %v1727 = vpack.c.b16 %v1724, %v1723
    %v1728 = vpack.c.b16 %v1726, %v1725
    %1731 = vmatpush.bf16.msra.mxu0 0
    %1732 = vmatpush.bf16.msra.mxu0 0
    %1733 = vmatpush.bf16.msra.mxu0 0
    %1734 = vmatpush.bf16.msra.mxu0 0
    %1735 = vmatpush.bf16.msra.mxu0 0
    %1736 = vmatpush.bf16.msra.mxu0 0
    %1737 = vmatpush.bf16.msra.mxu0 %v1728
    %1738 = vmatpush.bf16.msra.mxu0 %v1727
    %1739 = vmatmul.bf16.gmra.mxu0 %v1673
    %v1740 = vpop.f32.mrf.mxu0
    %v1741 = vadd.f32 %v1718, %v1740
    %v1742 = vpop.f32.mrf.mxu0
    %v1743 = vadd.f32 %v1718, %v1742
    %1744 = vmatmul.bf16.gmra.mxu0 %v1676
    %v1745 = vpop.f32.mrf.mxu0
    %v1746 = vadd.f32 %v1718, %v1745
    %v1747 = vpop.f32.mrf.mxu0
    %v1748 = vadd.f32 %v1718, %v1747
    %1749 = vmatmul.bf16.gmra.mxu0 %v1679
    %v1750 = vpop.f32.mrf.mxu0
    %v1751 = vadd.f32 %v1718, %v1750
    %v1752 = vpop.f32.mrf.mxu0
    %v1753 = vadd.f32 %v1718, %v1752
    %1754 = vmatmul.bf16.gmra.mxu0 %v1682
    %v1755 = vpop.f32.mrf.mxu0
    %v1756 = vadd.f32 %v1718, %v1755
    %v1757 = vpop.f32.mrf.mxu0
    %v1758 = vadd.f32 %v1718, %v1757
    %1759 = vdwg.mxu0
    %v1760 = vpack.c.bf16 %v1696, %v1694
    %v1761 = vpack.c.bf16 %v1701, %v1699
    %v1762 = vpack.c.bf16 %v1706, %v1704
    %v1763 = vpack.c.bf16 %v1711, %v1709
    %v1764 = vmul.f32 %v1636, %v77
    %v1765 = vmul.f32 %v1638, %v77
    %v1766 = vmul.f32 %v1641, %v77
    %v1767 = vmul.f32 %v1643, %v77
    %v1768 = vmul.f32 %v1646, %v77
    %v1769 = vmul.f32 %v1648, %v77
    %v1770 = vpack.c.bf16 %v1765, %v1764
    %v1771 = vpack.c.bf16 %v1767, %v1766
    %v1772 = vpack.c.bf16 %v1769, %v1768
    %v1774 = vsel %vm285, %v1770, 0
    %v1777 = vsel %vm285, %v1771, 0
    %v1780 = vsel %vm285, %v1772, 0
    %v1783 = vsel %vm285, %v1760, 0
    %v1786 = vsel %vm285, %v1761, 0
    %v1789 = vsel %vm285, %v1762, 0
    %v1792 = vsel %vm285, %v1763, 0
    %1794 = vmatpush.bf16.xpose.msra.mxu0 0
    %1795 = vmatpush.bf16.xpose.msra.mxu0 0
    %1796 = vmatpush.bf16.xpose.msra.mxu0 0
    %1797 = vmatpush.bf16.xpose.msra.mxu0 0
    %1798 = vmatpush.bf16.xpose.msra.mxu0 %v1792
    %1799 = vmatpush.bf16.xpose.msra.mxu0 %v1789
    %1800 = vmatpush.bf16.xpose.msra.mxu0 %v1786
    %1801 = vmatpush.bf16.xpose.msra.mxu0 %v1783
    %1802 = vmatmul.bf16.gmra.mxu0 %v1774
    %v1803 = vpop.f32.mrf.mxu0
    %v1804 = vadd.f32 0.0, %v1803
    %v1805 = vpop.f32.mrf.mxu0
    %v1806 = vadd.f32 0.0, %v1805
    %1807 = vmatmul.bf16.gmra.mxu0 %v1777
    %v1808 = vpop.f32.mrf.mxu0
    %v1809 = vadd.f32 0.0, %v1808
    %v1810 = vpop.f32.mrf.mxu0
    %v1811 = vadd.f32 0.0, %v1810
    %1812 = vmatmul.bf16.gmra.mxu0 %v1780
    %v1813 = vpop.f32.mrf.mxu0
    %v1814 = vadd.f32 0.0, %v1813
    %v1815 = vpop.f32.mrf.mxu0
    %v1816 = vadd.f32 0.0, %v1815
    %1817 = vdwg.mxu0
    %v1818 = vmul.f32 %v1804, 0.25
    %v1819 = vmul.f32 %v1806, 0.25
    %v1820 = vmul.f32 %v1809, 0.25
    %v1821 = vmul.f32 %v1811, 0.25
    %v1822 = vmul.f32 %v1814, 0.25
    %v1823 = vmul.f32 %v1816, 0.25
    %v1824 = vadd.f32 %v1818, %v209
    %v1825 = vadd.f32 %v1819, %v210
    %v1826 = vadd.f32 %v1820, %v211
    %v1827 = vadd.f32 %v1821, %v212
    %v1828 = vadd.f32 %v1822, %v213
    %v1829 = vadd.f32 %v1823, %v214
    %v1830 = vsel %vm506, %v1824, -inf
    %1831 = vmax.xlane.f32.xlu0 %v1830
    %v1832 = vpop.xlane.xlu0 %1831
    %v1833 = vsel %vm506, %v1825, -inf
    %1834 = vmax.xlane.f32.xlu0 %v1833
    %v1835 = vpop.xlane.xlu0 %1834
    %v1836 = vsel %vm506, %v1826, -inf
    %1837 = vmax.xlane.f32.xlu0 %v1836
    %v1838 = vpop.xlane.xlu0 %1837
    %v1839 = vsel %vm506, %v1827, -inf
    %1840 = vmax.xlane.f32.xlu0 %v1839
    %v1841 = vpop.xlane.xlu0 %1840
    %v1842 = vsel %vm506, %v1828, -inf
    %1843 = vmax.xlane.f32.xlu0 %v1842
    %v1844 = vpop.xlane.xlu0 %1843
    %v1845 = vsel %vm506, %v1829, -inf
    %1846 = vmax.xlane.f32.xlu0 %v1845
    %v1847 = vpop.xlane.xlu0 %1846
    %v1848 = vsub.f32 %v1824, %v1832
    %v1849 = vsub.f32 %v1825, %v1835
    %v1850 = vsub.f32 %v1826, %v1838
    %v1851 = vsub.f32 %v1827, %v1841
    %v1852 = vsub.f32 %v1828, %v1844
    %v1853 = vsub.f32 %v1829, %v1847
    %v1854 = vmul.f32 %v1848, 1.442695
    %v1855 = vpow.pop %v1854
    %v1856 = vmul.f32 %v1849, 1.442695
    %v1857 = vpow.pop %v1856
    %v1858 = vmul.f32 %v1850, 1.442695
    %v1859 = vpow.pop %v1858
    %v1860 = vmul.f32 %v1851, 1.442695
    %v1861 = vpow.pop %v1860
    %v1862 = vmul.f32 %v1852, 1.442695
    %v1863 = vpow.pop %v1862
    %v1864 = vmul.f32 %v1853, 1.442695
    %v1865 = vpow.pop %v1864
    %v1866 = vsel %vm506, %v1855, 0.0
    %1867 = vadd.xlane.f32.xlu0 %v1866
    %v1868 = vpop.xlane.xlu0 %1867
    %v1869 = vsel %vm506, %v1857, 0.0
    %1870 = vadd.xlane.f32.xlu0 %v1869
    %v1871 = vpop.xlane.xlu0 %1870
    %v1872 = vsel %vm506, %v1859, 0.0
    %1873 = vadd.xlane.f32.xlu0 %v1872
    %v1874 = vpop.xlane.xlu0 %1873
    %v1875 = vsel %vm506, %v1861, 0.0
    %1876 = vadd.xlane.f32.xlu0 %v1875
    %v1877 = vpop.xlane.xlu0 %1876
    %v1878 = vsel %vm506, %v1863, 0.0
    %1879 = vadd.xlane.f32.xlu0 %v1878
    %v1880 = vpop.xlane.xlu0 %1879
    %v1881 = vsel %vm506, %v1865, 0.0
    %1882 = vadd.xlane.f32.xlu0 %v1881
    %v1883 = vpop.xlane.xlu0 %1882
    %v1884 = vrcp.pop %v1868
    %v1885 = vrcp.pop %v1871
    %v1886 = vrcp.pop %v1874
    %v1887 = vrcp.pop %v1877
    %v1888 = vrcp.pop %v1880
    %v1889 = vrcp.pop %v1883
    %v1890 = vmul.f32 %v1855, %v1884
    %v1891 = vmul.f32 %v1857, %v1885
    %v1892 = vmul.f32 %v1859, %v1886
    %v1893 = vmul.f32 %v1861, %v1887
    %v1894 = vmul.f32 %v1863, %v1888
    %v1895 = vmul.f32 %v1865, %v1889
    %v1896 = vmul.f32 %v1741, %v77
    %v1897 = vmul.f32 %v1743, %v77
    %v1898 = vmul.f32 %v1746, %v77
    %v1899 = vmul.f32 %v1748, %v77
    %v1900 = vmul.f32 %v1751, %v77
    %v1901 = vmul.f32 %v1753, %v77
    %v1902 = vmul.f32 %v1756, %v77
    %v1903 = vmul.f32 %v1758, %v77
    %v1904 = vpack.c.bf16 %v1897, %v1896
    %v1905 = vpack.c.bf16 %v1899, %v1898
    %v1906 = vpack.c.bf16 %v1901, %v1900
    %v1907 = vpack.c.bf16 %v1903, %v1902
    %v1908 = vpack.c.bf16 %v1891, %v1890
    %v1909 = vpack.c.bf16 %v1893, %v1892
    %v1910 = vpack.c.bf16 %v1895, %v1894
    %v1911 = vmul.f32 %v1636, %v82
    %v1912 = vmul.f32 %v1638, %v82
    %v1913 = vmul.f32 %v1641, %v82
    %v1914 = vmul.f32 %v1643, %v82
    %v1915 = vmul.f32 %v1646, %v82
    %v1916 = vmul.f32 %v1648, %v82
    %v1917 = vpack.c.bf16 %v1912, %v1911
    %v1918 = vpack.c.bf16 %v1914, %v1913
    %v1919 = vpack.c.bf16 %v1916, %v1915
    %v1921 = vsel %vm285, %v1917, 0
    %v1924 = vsel %vm285, %v1918, 0
    %v1927 = vsel %vm285, %v1919, 0
    %1929 = vmatpush.bf16.xpose.msra.mxu0 0
    %1930 = vmatpush.bf16.xpose.msra.mxu0 0
    %1931 = vmatpush.bf16.xpose.msra.mxu0 0
    %1932 = vmatpush.bf16.xpose.msra.mxu0 0
    %1933 = vmatpush.bf16.xpose.msra.mxu0 %v1792
    %1934 = vmatpush.bf16.xpose.msra.mxu0 %v1789
    %1935 = vmatpush.bf16.xpose.msra.mxu0 %v1786
    %1936 = vmatpush.bf16.xpose.msra.mxu0 %v1783
    %1937 = vmatmul.bf16.gmra.mxu0 %v1921
    %v1938 = vpop.f32.mrf.mxu0
    %v1939 = vadd.f32 0.0, %v1938
    %v1940 = vpop.f32.mrf.mxu0
    %v1941 = vadd.f32 0.0, %v1940
    %1942 = vmatmul.bf16.gmra.mxu0 %v1924
    %v1943 = vpop.f32.mrf.mxu0
    %v1944 = vadd.f32 0.0, %v1943
    %v1945 = vpop.f32.mrf.mxu0
    %v1946 = vadd.f32 0.0, %v1945
    %1947 = vmatmul.bf16.gmra.mxu0 %v1927
    %v1948 = vpop.f32.mrf.mxu0
    %v1949 = vadd.f32 0.0, %v1948
    %v1950 = vpop.f32.mrf.mxu0
    %v1951 = vadd.f32 0.0, %v1950
    %1952 = vdwg.mxu0
    %v1953 = vmul.f32 %v1939, 0.25
    %v1954 = vmul.f32 %v1941, 0.25
    %v1955 = vmul.f32 %v1944, 0.25
    %v1956 = vmul.f32 %v1946, 0.25
    %v1957 = vmul.f32 %v1949, 0.25
    %v1958 = vmul.f32 %v1951, 0.25
    %v1959 = vadd.f32 %v1953, %v209
    %v1960 = vadd.f32 %v1954, %v210
    %v1961 = vadd.f32 %v1955, %v211
    %v1962 = vadd.f32 %v1956, %v212
    %v1963 = vadd.f32 %v1957, %v213
    %v1964 = vadd.f32 %v1958, %v214
    %v1965 = vsel %vm506, %v1959, -inf
    %1966 = vmax.xlane.f32.xlu0 %v1965
    %v1967 = vpop.xlane.xlu0 %1966
    %v1968 = vsel %vm506, %v1960, -inf
    %1969 = vmax.xlane.f32.xlu0 %v1968
    %v1970 = vpop.xlane.xlu0 %1969
    %v1971 = vsel %vm506, %v1961, -inf
    %1972 = vmax.xlane.f32.xlu0 %v1971
    %v1973 = vpop.xlane.xlu0 %1972
    %v1974 = vsel %vm506, %v1962, -inf
    %1975 = vmax.xlane.f32.xlu0 %v1974
    %v1976 = vpop.xlane.xlu0 %1975
    %v1977 = vsel %vm506, %v1963, -inf
    %1978 = vmax.xlane.f32.xlu0 %v1977
    %v1979 = vpop.xlane.xlu0 %1978
    %v1980 = vsel %vm506, %v1964, -inf
    %1981 = vmax.xlane.f32.xlu0 %v1980
    %v1982 = vpop.xlane.xlu0 %1981
    %v1983 = vsub.f32 %v1959, %v1967
    %v1984 = vsub.f32 %v1960, %v1970
    %v1985 = vsub.f32 %v1961, %v1973
    %v1986 = vsub.f32 %v1962, %v1976
    %v1987 = vsub.f32 %v1963, %v1979
    %v1988 = vsub.f32 %v1964, %v1982
    %v1989 = vmul.f32 %v1983, 1.442695
    %v1990 = vpow.pop %v1989
    %v1991 = vmul.f32 %v1984, 1.442695
    %v1992 = vpow.pop %v1991
    %v1993 = vmul.f32 %v1985, 1.442695
    %v1994 = vpow.pop %v1993
    %v1995 = vmul.f32 %v1986, 1.442695
    %v1996 = vpow.pop %v1995
    %v1997 = vmul.f32 %v1987, 1.442695
    %v1998 = vpow.pop %v1997
    %v1999 = vmul.f32 %v1988, 1.442695
    %v2000 = vpow.pop %v1999
    %v2001 = vsel %vm506, %v1990, 0.0
    %2002 = vadd.xlane.f32.xlu0 %v2001
    %v2003 = vpop.xlane.xlu0 %2002
    %v2004 = vsel %vm506, %v1992, 0.0
    %2005 = vadd.xlane.f32.xlu0 %v2004
    %v2006 = vpop.xlane.xlu0 %2005
    %v2007 = vsel %vm506, %v1994, 0.0
    %2008 = vadd.xlane.f32.xlu0 %v2007
    %v2009 = vpop.xlane.xlu0 %2008
    %v2010 = vsel %vm506, %v1996, 0.0
    %2011 = vadd.xlane.f32.xlu0 %v2010
    %v2012 = vpop.xlane.xlu0 %2011
    %v2013 = vsel %vm506, %v1998, 0.0
    %2014 = vadd.xlane.f32.xlu0 %v2013
    %v2015 = vpop.xlane.xlu0 %2014
    %v2016 = vsel %vm506, %v2000, 0.0
    %2017 = vadd.xlane.f32.xlu0 %v2016
    %v2018 = vpop.xlane.xlu0 %2017
    %v2019 = vrcp.pop %v2003
    %v2020 = vrcp.pop %v2006
    %v2021 = vrcp.pop %v2009
    %v2022 = vrcp.pop %v2012
    %v2023 = vrcp.pop %v2015
    %v2024 = vrcp.pop %v2018
    %v2025 = vmul.f32 %v1990, %v2019
    %v2026 = vmul.f32 %v1992, %v2020
    %v2027 = vmul.f32 %v1994, %v2021
    %v2028 = vmul.f32 %v1996, %v2022
    %v2029 = vmul.f32 %v1998, %v2023
    %v2030 = vmul.f32 %v2000, %v2024
    %v2031 = vmul.f32 %v1741, %v82
    %v2032 = vmul.f32 %v1743, %v82
    %v2033 = vmul.f32 %v1746, %v82
    %v2034 = vmul.f32 %v1748, %v82
    %v2035 = vmul.f32 %v1751, %v82
    %v2036 = vmul.f32 %v1753, %v82
    %v2037 = vmul.f32 %v1756, %v82
    %v2038 = vmul.f32 %v1758, %v82
    %v2039 = vpack.c.bf16 %v2032, %v2031
    %v2040 = vpack.c.bf16 %v2034, %v2033
    %v2041 = vpack.c.bf16 %v2036, %v2035
    %v2042 = vpack.c.bf16 %v2038, %v2037
    %v2043 = vpack.c.bf16 %v2026, %v2025
    %v2044 = vpack.c.bf16 %v2028, %v2027
    %v2045 = vpack.c.bf16 %v2030, %v2029
    %v2047 = vsel %vm506, %v2043, 0
    %v2050 = vsel %vm506, %v2044, 0
    %v2053 = vsel %vm506, %v2045, 0
    %2055 = vmatpush.bf16.msra.mxu0 0
    %2056 = vmatpush.bf16.msra.mxu0 0
    %2057 = vmatpush.bf16.msra.mxu0 0
    %2058 = vmatpush.bf16.msra.mxu0 0
    %2059 = vmatpush.bf16.msra.mxu0 %v2042
    %2060 = vmatpush.bf16.msra.mxu0 %v2041
    %2061 = vmatpush.bf16.msra.mxu0 %v2040
    %2062 = vmatpush.bf16.msra.mxu0 %v2039
    %2063 = vmatmul.bf16.gmra.mxu0 %v2047
    %v2064 = vpop.f32.mrf.mxu0
    %v2065 = vadd.f32 0.0, %v2064
    %v2066 = vpop.f32.mrf.mxu0
    %v2067 = vadd.f32 0.0, %v2066
    %2068 = vmatmul.bf16.gmra.mxu0 %v2050
    %v2069 = vpop.f32.mrf.mxu0
    %v2070 = vadd.f32 0.0, %v2069
    %v2071 = vpop.f32.mrf.mxu0
    %v2072 = vadd.f32 0.0, %v2071
    %2073 = vmatmul.bf16.gmra.mxu0 %v2053
    %v2074 = vpop.f32.mrf.mxu0
    %v2075 = vadd.f32 0.0, %v2074
    %v2076 = vpop.f32.mrf.mxu0
    %v2077 = vadd.f32 0.0, %v2076
    %2078 = vdwg.mxu0
    %v2080 = vsel %vm506, %v1908, 0
    %v2083 = vsel %vm506, %v1909, 0
    %v2086 = vsel %vm506, %v1910, 0
    %2088 = vmatpush.bf16.msra.mxu0 0
    %2089 = vmatpush.bf16.msra.mxu0 0
    %2090 = vmatpush.bf16.msra.mxu0 0
    %2091 = vmatpush.bf16.msra.mxu0 0
    %2092 = vmatpush.bf16.msra.mxu0 %v1907
    %2093 = vmatpush.bf16.msra.mxu0 %v1906
    %2094 = vmatpush.bf16.msra.mxu0 %v1905
    %2095 = vmatpush.bf16.msra.mxu0 %v1904
    %2096 = vmatmul.bf16.gmra.mxu0 %v2080
    %v2097 = vpop.f32.mrf.mxu0
    %v2098 = vadd.f32 %v2065, %v2097
    %v2099 = vpop.f32.mrf.mxu0
    %v2100 = vadd.f32 %v2067, %v2099
    %2101 = vmatmul.bf16.gmra.mxu0 %v2083
    %v2102 = vpop.f32.mrf.mxu0
    %v2103 = vadd.f32 %v2070, %v2102
    %v2104 = vpop.f32.mrf.mxu0
    %v2105 = vadd.f32 %v2072, %v2104
    %2106 = vmatmul.bf16.gmra.mxu0 %v2086
    %v2107 = vpop.f32.mrf.mxu0
    %v2108 = vadd.f32 %v2075, %v2107
    %v2109 = vpop.f32.mrf.mxu0
    %v2110 = vadd.f32 %v2077, %v2109
    %2111 = vdwg.mxu0
    %v2112 = vpack.c.bf16 %v2100, %v2098
    %v2113 = vpack.c.bf16 %v2105, %v2103
    %v2114 = vpack.c.bf16 %v2110, %v2108
    %v2115 = vld [vmem:[#allocation5 + $0x70] sm:$0xf]
    %v2116 = vld [vmem:[#allocation5 + $0x74] sm:$0xf]
    %v2117 = vld [vmem:[#allocation5 + $0x78] sm:$0xf]
    %v2118 = vld [vmem:[#allocation5 + $0x7c] sm:$0xf]
    %v2119 = vld [vmem:[#allocation7 + $0x7] sm:$0x1]
    %v2120 = vperm.slane %v2119, 0
    %v2125 = vunpack.c.l.b16 %v2115
    %v2126 = vunpack.c.l.b16 %v2116
    %v2127 = vunpack.c.l.b16 %v2117
    %v2128 = vunpack.c.l.b16 %v2118
    %v2129 = vpack.c.b16 %v2126, %v2125
    %v2130 = vpack.c.b16 %v2128, %v2127
    %v2134 = vsel %vm285, %v2112, 0
    %v2137 = vsel %vm285, %v2113, 0
    %v2140 = vsel %vm285, %v2114, 0
    %2142 = vmatpush.bf16.msra.mxu0 0
    %2143 = vmatpush.bf16.msra.mxu0 0
    %2144 = vmatpush.bf16.msra.mxu0 0
    %2145 = vmatpush.bf16.msra.mxu0 0
    %2146 = vmatpush.bf16.msra.mxu0 0
    %2147 = vmatpush.bf16.msra.mxu0 0
    %2148 = vmatpush.bf16.msra.mxu0 %v2130
    %2149 = vmatpush.bf16.msra.mxu0 %v2129
    %2150 = vmatmul.bf16.gmra.mxu0 %v2134
    %v2151 = vpop.f32.mrf.mxu0
    %v2152 = vadd.f32 %v2120, %v2151
    %v2153 = vpop.f32.mrf.mxu0
    %v2154 = vadd.f32 %v2120, %v2153
    %2155 = vmatmul.bf16.gmra.mxu0 %v2137
    %v2156 = vpop.f32.mrf.mxu0
    %v2157 = vadd.f32 %v2120, %v2156
    %v2158 = vpop.f32.mrf.mxu0
    %v2159 = vadd.f32 %v2120, %v2158
    %2160 = vmatmul.bf16.gmra.mxu0 %v2140
    %v2161 = vpop.f32.mrf.mxu0
    %v2162 = vadd.f32 %v2120, %v2161
    %v2163 = vpop.f32.mrf.mxu0
    %v2164 = vadd.f32 %v2120, %v2163
    %2165 = vdwg.mxu0
    %v2166 = vld [vmem:[#allocation5 + $0x80] sm:$0xf]
    %v2167 = vld [vmem:[#allocation5 + $0x84] sm:$0xf]
    %v2168 = vld [vmem:[#allocation5 + $0x88] sm:$0xf]
    %v2169 = vld [vmem:[#allocation5 + $0x8c] sm:$0xf]
    %v2170 = vld [vmem:[#allocation7 + $0x8] sm:$0x1]
    %v2171 = vperm.slane %v2170, 0
    %v2176 = vunpack.c.l.b16 %v2166
    %v2177 = vunpack.c.l.b16 %v2167
    %v2178 = vunpack.c.l.b16 %v2168
    %v2179 = vunpack.c.l.b16 %v2169
    %v2180 = vpack.c.b16 %v2177, %v2176
    %v2181 = vpack.c.b16 %v2179, %v2178
    %2184 = vmatpush.bf16.msra.mxu0 0
    %2185 = vmatpush.bf16.msra.mxu0 0
    %2186 = vmatpush.bf16.msra.mxu0 0
    %2187 = vmatpush.bf16.msra.mxu0 0
    %2188 = vmatpush.bf16.msra.mxu0 0
    %2189 = vmatpush.bf16.msra.mxu0 0
    %2190 = vmatpush.bf16.msra.mxu0 %v2181
    %2191 = vmatpush.bf16.msra.mxu0 %v2180
    %2192 = vmatmul.bf16.gmra.mxu0 %v1673
    %v2193 = vpop.f32.mrf.mxu0
    %v2194 = vadd.f32 %v2171, %v2193
    %v2195 = vpop.f32.mrf.mxu0
    %v2196 = vadd.f32 %v2171, %v2195
    %2197 = vmatmul.bf16.gmra.mxu0 %v1676
    %v2198 = vpop.f32.mrf.mxu0
    %v2199 = vadd.f32 %v2171, %v2198
    %v2200 = vpop.f32.mrf.mxu0
    %v2201 = vadd.f32 %v2171, %v2200
    %2202 = vmatmul.bf16.gmra.mxu0 %v1679
    %v2203 = vpop.f32.mrf.mxu0
    %v2204 = vadd.f32 %v2171, %v2203
    %v2205 = vpop.f32.mrf.mxu0
    %v2206 = vadd.f32 %v2171, %v2205
    %2207 = vmatmul.bf16.gmra.mxu0 %v1682
    %v2208 = vpop.f32.mrf.mxu0
    %v2209 = vadd.f32 %v2171, %v2208
    %v2210 = vpop.f32.mrf.mxu0
    %v2211 = vadd.f32 %v2171, %v2210
    %2212 = vdwg.mxu0
    %v2213 = vpack.c.bf16 %v2154, %v2152
    %v2214 = vpack.c.bf16 %v2159, %v2157
    %v2215 = vpack.c.bf16 %v2164, %v2162
    %v2216 = vld [vmem:[#allocation5 + $0x90] sm:$0xf]
    %v2217 = vld [vmem:[#allocation5 + $0x94] sm:$0xf]
    %v2218 = vld [vmem:[#allocation5 + $0x98] sm:$0xf]
    %v2219 = vld [vmem:[#allocation5 + $0x9c] sm:$0xf]
    %v2220 = vld [vmem:[#allocation7 + $0x9] sm:$0x1]
    %v2221 = vperm.slane %v2220, 0
    %v2226 = vunpack.c.l.b16 %v2216
    %v2227 = vunpack.c.l.b16 %v2217
    %v2228 = vunpack.c.l.b16 %v2218
    %v2229 = vunpack.c.l.b16 %v2219
    %v2230 = vpack.c.b16 %v2227, %v2226
    %v2231 = vpack.c.b16 %v2229, %v2228
    %v2235 = vsel %vm285, %v2213, 0
    %v2238 = vsel %vm285, %v2214, 0
    %v2241 = vsel %vm285, %v2215, 0
    %2243 = vmatpush.bf16.msra.mxu0 0
    %2244 = vmatpush.bf16.msra.mxu0 0
    %2245 = vmatpush.bf16.msra.mxu0 0
    %2246 = vmatpush.bf16.msra.mxu0 0
    %2247 = vmatpush.bf16.msra.mxu0 0
    %2248 = vmatpush.bf16.msra.mxu0 0
    %2249 = vmatpush.bf16.msra.mxu0 %v2231
    %2250 = vmatpush.bf16.msra.mxu0 %v2230
    %2251 = vmatmul.bf16.gmra.mxu0 %v2235
    %v2252 = vpop.f32.mrf.mxu0
    %v2253 = vadd.f32 %v2221, %v2252
    %v2254 = vpop.f32.mrf.mxu0
    %v2255 = vadd.f32 %v2221, %v2254
    %2256 = vmatmul.bf16.gmra.mxu0 %v2238
    %v2257 = vpop.f32.mrf.mxu0
    %v2258 = vadd.f32 %v2221, %v2257
    %v2259 = vpop.f32.mrf.mxu0
    %v2260 = vadd.f32 %v2221, %v2259
    %2261 = vmatmul.bf16.gmra.mxu0 %v2241
    %v2262 = vpop.f32.mrf.mxu0
    %v2263 = vadd.f32 %v2221, %v2262
    %v2264 = vpop.f32.mrf.mxu0
    %v2265 = vadd.f32 %v2221, %v2264
    %2266 = vdwg.mxu0
    %v2267 = vld [vmem:[#allocation5 + $0xa0] sm:$0xf]
    %v2268 = vld [vmem:[#allocation5 + $0xa4] sm:$0xf]
    %v2269 = vld [vmem:[#allocation5 + $0xa8] sm:$0xf]
    %v2270 = vld [vmem:[#allocation5 + $0xac] sm:$0xf]
    %v2271 = vld [vmem:[#allocation7 + $0xa] sm:$0x1]
    %v2272 = vperm.slane %v2271, 0
    %v2277 = vunpack.c.l.b16 %v2267
    %v2278 = vunpack.c.l.b16 %v2268
    %v2279 = vunpack.c.l.b16 %v2269
    %v2280 = vunpack.c.l.b16 %v2270
    %v2281 = vpack.c.b16 %v2278, %v2277
    %v2282 = vpack.c.b16 %v2280, %v2279
    %2285 = vmatpush.bf16.msra.mxu0 0
    %2286 = vmatpush.bf16.msra.mxu0 0
    %2287 = vmatpush.bf16.msra.mxu0 0
    %2288 = vmatpush.bf16.msra.mxu0 0
    %2289 = vmatpush.bf16.msra.mxu0 0
    %2290 = vmatpush.bf16.msra.mxu0 0
    %2291 = vmatpush.bf16.msra.mxu0 %v2282
    %2292 = vmatpush.bf16.msra.mxu0 %v2281
    %2293 = vmatmul.bf16.gmra.mxu0 %v2235
    %v2294 = vpop.f32.mrf.mxu0
    %v2295 = vadd.f32 %v2272, %v2294
    %v2296 = vpop.f32.mrf.mxu0
    %v2297 = vadd.f32 %v2272, %v2296
    %2298 = vmatmul.bf16.gmra.mxu0 %v2238
    %v2299 = vpop.f32.mrf.mxu0
    %v2300 = vadd.f32 %v2272, %v2299
    %v2301 = vpop.f32.mrf.mxu0
    %v2302 = vadd.f32 %v2272, %v2301
    %2303 = vmatmul.bf16.gmra.mxu0 %v2241
    %v2304 = vpop.f32.mrf.mxu0
    %v2305 = vadd.f32 %v2272, %v2304
    %v2306 = vpop.f32.mrf.mxu0
    %v2307 = vadd.f32 %v2272, %v2306
    %2308 = vdwg.mxu0
    %v2309 = vpack.c.bf16 %v2255, %v2253
    %v2310 = vpack.c.bf16 %v2260, %v2258
    %v2311 = vpack.c.bf16 %v2265, %v2263
    %v2312 = vmul.f32 %v2194, %v77
    %v2313 = vmul.f32 %v2196, %v77
    %v2314 = vmul.f32 %v2199, %v77
    %v2315 = vmul.f32 %v2201, %v77
    %v2316 = vmul.f32 %v2204, %v77
    %v2317 = vmul.f32 %v2206, %v77
    %v2318 = vmul.f32 %v2209, %v77
    %v2319 = vmul.f32 %v2211, %v77
    %v2320 = vpack.c.bf16 %v2313, %v2312
    %v2321 = vpack.c.bf16 %v2315, %v2314
    %v2322 = vpack.c.bf16 %v2317, %v2316
    %v2323 = vpack.c.bf16 %v2319, %v2318
    %v2325 = vsel %vm285, %v2320, 0
    %v2328 = vsel %vm285, %v2321, 0
    %v2331 = vsel %vm285, %v2322, 0
    %v2334 = vsel %vm285, %v2323, 0
    %v2337 = vsel %vm285, %v2309, 0
    %v2340 = vsel %vm285, %v2310, 0
    %v2343 = vsel %vm285, %v2311, 0
    %2345 = vmatpush.bf16.xpose.msra.mxu0 0
    %2346 = vmatpush.bf16.xpose.msra.mxu0 0
    %2347 = vmatpush.bf16.xpose.msra.mxu0 0
    %2348 = vmatpush.bf16.xpose.msra.mxu0 0
    %2349 = vmatpush.bf16.xpose.msra.mxu0 0
    %2350 = vmatpush.bf16.xpose.msra.mxu0 %v2343
    %2351 = vmatpush.bf16.xpose.msra.mxu0 %v2340
    %2352 = vmatpush.bf16.xpose.msra.mxu0 %v2337
    %2353 = vmatmul.bf16.gmra.mxu0 %v2325
    %v2354 = vpop.f32.mrf.mxu0
    %v2355 = vadd.f32 0.0, %v2354
    %v2356 = vpop.f32.mrf.mxu0
    %v2357 = vadd.f32 0.0, %v2356
    %2358 = vmatmul.bf16.gmra.mxu0 %v2328
    %v2359 = vpop.f32.mrf.mxu0
    %v2360 = vadd.f32 0.0, %v2359
    %v2361 = vpop.f32.mrf.mxu0
    %v2362 = vadd.f32 0.0, %v2361
    %2363 = vmatmul.bf16.gmra.mxu0 %v2331
    %v2364 = vpop.f32.mrf.mxu0
    %v2365 = vadd.f32 0.0, %v2364
    %v2366 = vpop.f32.mrf.mxu0
    %v2367 = vadd.f32 0.0, %v2366
    %2368 = vmatmul.bf16.gmra.mxu0 %v2334
    %v2369 = vpop.f32.mrf.mxu0
    %v2370 = vadd.f32 0.0, %v2369
    %v2371 = vpop.f32.mrf.mxu0
    %v2372 = vadd.f32 0.0, %v2371
    %2373 = vdwg.mxu0
    %v2374 = vmul.f32 %v2355, 0.25
    %v2375 = vmul.f32 %v2357, 0.25
    %v2376 = vmul.f32 %v2360, 0.25
    %v2377 = vmul.f32 %v2362, 0.25
    %v2378 = vmul.f32 %v2365, 0.25
    %v2379 = vmul.f32 %v2367, 0.25
    %v2380 = vmul.f32 %v2370, 0.25
    %v2381 = vmul.f32 %v2372, 0.25
    %v2382 = vadd.f32 %v2374, %v255
    %v2383 = vadd.f32 %v2375, %v256
    %v2384 = vadd.f32 %v2376, %v257
    %v2385 = vadd.f32 %v2377, %v258
    %v2386 = vadd.f32 %v2378, %v259
    %v2387 = vadd.f32 %v2379, %v260
    %v2388 = vadd.f32 %v2380, %v261
    %v2389 = vadd.f32 %v2381, %v262
    %vm2390 = vcmask 392192
    %v2391 = vsel %vm2390, %v2382, -inf
    %2392 = vmax.xlane.f32.xlu0 %v2391
    %v2393 = vpop.xlane.xlu0 %2392
    %v2394 = vsel %vm2390, %v2383, -inf
    %2395 = vmax.xlane.f32.xlu0 %v2394
    %v2396 = vpop.xlane.xlu0 %2395
    %v2397 = vsel %vm2390, %v2384, -inf
    %2398 = vmax.xlane.f32.xlu0 %v2397
    %v2399 = vpop.xlane.xlu0 %2398
    %v2400 = vsel %vm2390, %v2385, -inf
    %2401 = vmax.xlane.f32.xlu0 %v2400
    %v2402 = vpop.xlane.xlu0 %2401
    %v2403 = vsel %vm2390, %v2386, -inf
    %2404 = vmax.xlane.f32.xlu0 %v2403
    %v2405 = vpop.xlane.xlu0 %2404
    %v2406 = vsel %vm2390, %v2387, -inf
    %2407 = vmax.xlane.f32.xlu0 %v2406
    %v2408 = vpop.xlane.xlu0 %2407
    %v2409 = vsel %vm2390, %v2388, -inf
    %2410 = vmax.xlane.f32.xlu0 %v2409
    %v2411 = vpop.xlane.xlu0 %2410
    %v2412 = vsel %vm2390, %v2389, -inf
    %2413 = vmax.xlane.f32.xlu0 %v2412
    %v2414 = vpop.xlane.xlu0 %2413
    %v2415 = vsub.f32 %v2382, %v2393
    %v2416 = vsub.f32 %v2383, %v2396
    %v2417 = vsub.f32 %v2384, %v2399
    %v2418 = vsub.f32 %v2385, %v2402
    %v2419 = vsub.f32 %v2386, %v2405
    %v2420 = vsub.f32 %v2387, %v2408
    %v2421 = vsub.f32 %v2388, %v2411
    %v2422 = vsub.f32 %v2389, %v2414
    %v2423 = vmul.f32 %v2415, 1.442695
    %v2424 = vpow.pop %v2423
    %v2425 = vmul.f32 %v2416, 1.442695
    %v2426 = vpow.pop %v2425
    %v2427 = vmul.f32 %v2417, 1.442695
    %v2428 = vpow.pop %v2427
    %v2429 = vmul.f32 %v2418, 1.442695
    %v2430 = vpow.pop %v2429
    %v2431 = vmul.f32 %v2419, 1.442695
    %v2432 = vpow.pop %v2431
    %v2433 = vmul.f32 %v2420, 1.442695
    %v2434 = vpow.pop %v2433
    %v2435 = vmul.f32 %v2421, 1.442695
    %v2436 = vpow.pop %v2435
    %v2437 = vmul.f32 %v2422, 1.442695
    %v2438 = vpow.pop %v2437
    %v2439 = vsel %vm2390, %v2424, 0.0
    %2440 = vadd.xlane.f32.xlu0 %v2439
    %v2441 = vpop.xlane.xlu0 %2440
    %v2442 = vsel %vm2390, %v2426, 0.0
    %2443 = vadd.xlane.f32.xlu0 %v2442
    %v2444 = vpop.xlane.xlu0 %2443
    %v2445 = vsel %vm2390, %v2428, 0.0
    %2446 = vadd.xlane.f32.xlu0 %v2445
    %v2447 = vpop.xlane.xlu0 %2446
    %v2448 = vsel %vm2390, %v2430, 0.0
    %2449 = vadd.xlane.f32.xlu0 %v2448
    %v2450 = vpop.xlane.xlu0 %2449
    %v2451 = vsel %vm2390, %v2432, 0.0
    %2452 = vadd.xlane.f32.xlu0 %v2451
    %v2453 = vpop.xlane.xlu0 %2452
    %v2454 = vsel %vm2390, %v2434, 0.0
    %2455 = vadd.xlane.f32.xlu0 %v2454
    %v2456 = vpop.xlane.xlu0 %2455
    %v2457 = vsel %vm2390, %v2436, 0.0
    %2458 = vadd.xlane.f32.xlu0 %v2457
    %v2459 = vpop.xlane.xlu0 %2458
    %v2460 = vsel %vm2390, %v2438, 0.0
    %2461 = vadd.xlane.f32.xlu0 %v2460
    %v2462 = vpop.xlane.xlu0 %2461
    %v2463 = vrcp.pop %v2441
    %v2464 = vrcp.pop %v2444
    %v2465 = vrcp.pop %v2447
    %v2466 = vrcp.pop %v2450
    %v2467 = vrcp.pop %v2453
    %v2468 = vrcp.pop %v2456
    %v2469 = vrcp.pop %v2459
    %v2470 = vrcp.pop %v2462
    %v2471 = vmul.f32 %v2424, %v2463
    %v2472 = vmul.f32 %v2426, %v2464
    %v2473 = vmul.f32 %v2428, %v2465
    %v2474 = vmul.f32 %v2430, %v2466
    %v2475 = vmul.f32 %v2432, %v2467
    %v2476 = vmul.f32 %v2434, %v2468
    %v2477 = vmul.f32 %v2436, %v2469
    %v2478 = vmul.f32 %v2438, %v2470
    %v2479 = vmul.f32 %v2295, %v77
    %v2480 = vmul.f32 %v2297, %v77
    %v2481 = vmul.f32 %v2300, %v77
    %v2482 = vmul.f32 %v2302, %v77
    %v2483 = vmul.f32 %v2305, %v77
    %v2484 = vmul.f32 %v2307, %v77
    %v2485 = vpack.c.bf16 %v2480, %v2479
    %v2486 = vpack.c.bf16 %v2482, %v2481
    %v2487 = vpack.c.bf16 %v2484, %v2483
    %v2488 = vpack.c.bf16 %v2472, %v2471
    %v2489 = vpack.c.bf16 %v2474, %v2473
    %v2490 = vpack.c.bf16 %v2476, %v2475
    %v2491 = vpack.c.bf16 %v2478, %v2477
    %v2492 = vmul.f32 %v2194, %v82
    %v2493 = vmul.f32 %v2196, %v82
    %v2494 = vmul.f32 %v2199, %v82
    %v2495 = vmul.f32 %v2201, %v82
    %v2496 = vmul.f32 %v2204, %v82
    %v2497 = vmul.f32 %v2206, %v82
    %v2498 = vmul.f32 %v2209, %v82
    %v2499 = vmul.f32 %v2211, %v82
    %v2500 = vpack.c.bf16 %v2493, %v2492
    %v2501 = vpack.c.bf16 %v2495, %v2494
    %v2502 = vpack.c.bf16 %v2497, %v2496
    %v2503 = vpack.c.bf16 %v2499, %v2498
    %v2505 = vsel %vm285, %v2500, 0
    %v2508 = vsel %vm285, %v2501, 0
    %v2511 = vsel %vm285, %v2502, 0
    %v2514 = vsel %vm285, %v2503, 0
    %2516 = vmatpush.bf16.xpose.msra.mxu0 0
    %2517 = vmatpush.bf16.xpose.msra.mxu0 0
    %2518 = vmatpush.bf16.xpose.msra.mxu0 0
    %2519 = vmatpush.bf16.xpose.msra.mxu0 0
    %2520 = vmatpush.bf16.xpose.msra.mxu0 0
    %2521 = vmatpush.bf16.xpose.msra.mxu0 %v2343
    %2522 = vmatpush.bf16.xpose.msra.mxu0 %v2340
    %2523 = vmatpush.bf16.xpose.msra.mxu0 %v2337
    %2524 = vmatmul.bf16.gmra.mxu0 %v2505
    %v2525 = vpop.f32.mrf.mxu0
    %v2526 = vadd.f32 0.0, %v2525
    %v2527 = vpop.f32.mrf.mxu0
    %v2528 = vadd.f32 0.0, %v2527
    %2529 = vmatmul.bf16.gmra.mxu0 %v2508
    %v2530 = vpop.f32.mrf.mxu0
    %v2531 = vadd.f32 0.0, %v2530
    %v2532 = vpop.f32.mrf.mxu0
    %v2533 = vadd.f32 0.0, %v2532
    %2534 = vmatmul.bf16.gmra.mxu0 %v2511
    %v2535 = vpop.f32.mrf.mxu0
    %v2536 = vadd.f32 0.0, %v2535
    %v2537 = vpop.f32.mrf.mxu0
    %v2538 = vadd.f32 0.0, %v2537
    %2539 = vmatmul.bf16.gmra.mxu0 %v2514
    %v2540 = vpop.f32.mrf.mxu0
    %v2541 = vadd.f32 0.0, %v2540
    %v2542 = vpop.f32.mrf.mxu0
    %v2543 = vadd.f32 0.0, %v2542
    %2544 = vdwg.mxu0
    %v2545 = vmul.f32 %v2526, 0.25
    %v2546 = vmul.f32 %v2528, 0.25
    %v2547 = vmul.f32 %v2531, 0.25
    %v2548 = vmul.f32 %v2533, 0.25
    %v2549 = vmul.f32 %v2536, 0.25
    %v2550 = vmul.f32 %v2538, 0.25
    %v2551 = vmul.f32 %v2541, 0.25
    %v2552 = vmul.f32 %v2543, 0.25
    %v2553 = vadd.f32 %v2545, %v255
    %v2554 = vadd.f32 %v2546, %v256
    %v2555 = vadd.f32 %v2547, %v257
    %v2556 = vadd.f32 %v2548, %v258
    %v2557 = vadd.f32 %v2549, %v259
    %v2558 = vadd.f32 %v2550, %v260
    %v2559 = vadd.f32 %v2551, %v261
    %v2560 = vadd.f32 %v2552, %v262
    %v2561 = vsel %vm2390, %v2553, -inf
    %2562 = vmax.xlane.f32.xlu0 %v2561
    %v2563 = vpop.xlane.xlu0 %2562
    %v2564 = vsel %vm2390, %v2554, -inf
    %2565 = vmax.xlane.f32.xlu0 %v2564
    %v2566 = vpop.xlane.xlu0 %2565
    %v2567 = vsel %vm2390, %v2555, -inf
    %2568 = vmax.xlane.f32.xlu0 %v2567
    %v2569 = vpop.xlane.xlu0 %2568
    %v2570 = vsel %vm2390, %v2556, -inf
    %2571 = vmax.xlane.f32.xlu0 %v2570
    %v2572 = vpop.xlane.xlu0 %2571
    %v2573 = vsel %vm2390, %v2557, -inf
    %2574 = vmax.xlane.f32.xlu0 %v2573
    %v2575 = vpop.xlane.xlu0 %2574
    %v2576 = vsel %vm2390, %v2558, -inf
    %2577 = vmax.xlane.f32.xlu0 %v2576
    %v2578 = vpop.xlane.xlu0 %2577
    %v2579 = vsel %vm2390, %v2559, -inf
    %2580 = vmax.xlane.f32.xlu0 %v2579
    %v2581 = vpop.xlane.xlu0 %2580
    %v2582 = vsel %vm2390, %v2560, -inf
    %2583 = vmax.xlane.f32.xlu0 %v2582
    %v2584 = vpop.xlane.xlu0 %2583
    %v2585 = vsub.f32 %v2553, %v2563
    %v2586 = vsub.f32 %v2554, %v2566
    %v2587 = vsub.f32 %v2555, %v2569
    %v2588 = vsub.f32 %v2556, %v2572
    %v2589 = vsub.f32 %v2557, %v2575
    %v2590 = vsub.f32 %v2558, %v2578
    %v2591 = vsub.f32 %v2559, %v2581
    %v2592 = vsub.f32 %v2560, %v2584
    %v2593 = vmul.f32 %v2585, 1.442695
    %v2594 = vpow.pop %v2593
    %v2595 = vmul.f32 %v2586, 1.442695
    %v2596 = vpow.pop %v2595
    %v2597 = vmul.f32 %v2587, 1.442695
    %v2598 = vpow.pop %v2597
    %v2599 = vmul.f32 %v2588, 1.442695
    %v2600 = vpow.pop %v2599
    %v2601 = vmul.f32 %v2589, 1.442695
    %v2602 = vpow.pop %v2601
    %v2603 = vmul.f32 %v2590, 1.442695
    %v2604 = vpow.pop %v2603
    %v2605 = vmul.f32 %v2591, 1.442695
    %v2606 = vpow.pop %v2605
    %v2607 = vmul.f32 %v2592, 1.442695
    %v2608 = vpow.pop %v2607
    %v2609 = vsel %vm2390, %v2594, 0.0
    %2610 = vadd.xlane.f32.xlu0 %v2609
    %v2611 = vpop.xlane.xlu0 %2610
    %v2612 = vsel %vm2390, %v2596, 0.0
    %2613 = vadd.xlane.f32.xlu0 %v2612
    %v2614 = vpop.xlane.xlu0 %2613
    %v2615 = vsel %vm2390, %v2598, 0.0
    %2616 = vadd.xlane.f32.xlu0 %v2615
    %v2617 = vpop.xlane.xlu0 %2616
    %v2618 = vsel %vm2390, %v2600, 0.0
    %2619 = vadd.xlane.f32.xlu0 %v2618
    %v2620 = vpop.xlane.xlu0 %2619
    %v2621 = vsel %vm2390, %v2602, 0.0
    %2622 = vadd.xlane.f32.xlu0 %v2621
    %v2623 = vpop.xlane.xlu0 %2622
    %v2624 = vsel %vm2390, %v2604, 0.0
    %2625 = vadd.xlane.f32.xlu0 %v2624
    %v2626 = vpop.xlane.xlu0 %2625
    %v2627 = vsel %vm2390, %v2606, 0.0
    %2628 = vadd.xlane.f32.xlu0 %v2627
    %v2629 = vpop.xlane.xlu0 %2628
    %v2630 = vsel %vm2390, %v2608, 0.0
    %2631 = vadd.xlane.f32.xlu0 %v2630
    %v2632 = vpop.xlane.xlu0 %2631
    %v2633 = vrcp.pop %v2611
    %v2634 = vrcp.pop %v2614
    %v2635 = vrcp.pop %v2617
    %v2636 = vrcp.pop %v2620
    %v2637 = vrcp.pop %v2623
    %v2638 = vrcp.pop %v2626
    %v2639 = vrcp.pop %v2629
    %v2640 = vrcp.pop %v2632
    %v2641 = vmul.f32 %v2594, %v2633
    %v2642 = vmul.f32 %v2596, %v2634
    %v2643 = vmul.f32 %v2598, %v2635
    %v2644 = vmul.f32 %v2600, %v2636
    %v2645 = vmul.f32 %v2602, %v2637
    %v2646 = vmul.f32 %v2604, %v2638
    %v2647 = vmul.f32 %v2606, %v2639
    %v2648 = vmul.f32 %v2608, %v2640
    %v2649 = vmul.f32 %v2295, %v82
    %v2650 = vmul.f32 %v2297, %v82
    %v2651 = vmul.f32 %v2300, %v82
    %v2652 = vmul.f32 %v2302, %v82
    %v2653 = vmul.f32 %v2305, %v82
    %v2654 = vmul.f32 %v2307, %v82
    %v2655 = vpack.c.bf16 %v2650, %v2649
    %v2656 = vpack.c.bf16 %v2652, %v2651
    %v2657 = vpack.c.bf16 %v2654, %v2653
    %v2658 = vpack.c.bf16 %v2642, %v2641
    %v2659 = vpack.c.bf16 %v2644, %v2643
    %v2660 = vpack.c.bf16 %v2646, %v2645
    %v2661 = vpack.c.bf16 %v2648, %v2647
    %v2663 = vsel %vm2390, %v2658, 0
    %v2666 = vsel %vm2390, %v2659, 0
    %v2669 = vsel %vm2390, %v2660, 0
    %v2672 = vsel %vm2390, %v2661, 0
    %2674 = vmatpush.bf16.msra.mxu0 0
    %2675 = vmatpush.bf16.msra.mxu0 0
    %2676 = vmatpush.bf16.msra.mxu0 0
    %2677 = vmatpush.bf16.msra.mxu0 0
    %2678 = vmatpush.bf16.msra.mxu0 0
    %2679 = vmatpush.bf16.msra.mxu0 %v2657
    %2680 = vmatpush.bf16.msra.mxu0 %v2656
    %2681 = vmatpush.bf16.msra.mxu0 %v2655
    %2682 = vmatmul.bf16.gmra.mxu0 %v2663
    %v2683 = vpop.f32.mrf.mxu0
    %v2684 = vadd.f32 0.0, %v2683
    %v2685 = vpop.f32.mrf.mxu0
    %v2686 = vadd.f32 0.0, %v2685
    %2687 = vmatmul.bf16.gmra.mxu0 %v2666
    %v2688 = vpop.f32.mrf.mxu0
    %v2689 = vadd.f32 0.0, %v2688
    %v2690 = vpop.f32.mrf.mxu0
    %v2691 = vadd.f32 0.0, %v2690
    %2692 = vmatmul.bf16.gmra.mxu0 %v2669
    %v2693 = vpop.f32.mrf.mxu0
    %v2694 = vadd.f32 0.0, %v2693
    %v2695 = vpop.f32.mrf.mxu0
    %v2696 = vadd.f32 0.0, %v2695
    %2697 = vmatmul.bf16.gmra.mxu0 %v2672
    %v2698 = vpop.f32.mrf.mxu0
    %v2699 = vadd.f32 0.0, %v2698
    %v2700 = vpop.f32.mrf.mxu0
    %v2701 = vadd.f32 0.0, %v2700
    %2702 = vdwg.mxu0
    %v2704 = vsel %vm2390, %v2488, 0
    %v2707 = vsel %vm2390, %v2489, 0
    %v2710 = vsel %vm2390, %v2490, 0
    %v2713 = vsel %vm2390, %v2491, 0
    %2715 = vmatpush.bf16.msra.mxu0 0
    %2716 = vmatpush.bf16.msra.mxu0 0
    %2717 = vmatpush.bf16.msra.mxu0 0
    %2718 = vmatpush.bf16.msra.mxu0 0
    %2719 = vmatpush.bf16.msra.mxu0 0
    %2720 = vmatpush.bf16.msra.mxu0 %v2487
    %2721 = vmatpush.bf16.msra.mxu0 %v2486
    %2722 = vmatpush.bf16.msra.mxu0 %v2485
    %2723 = vmatmul.bf16.gmra.mxu0 %v2704
    %v2724 = vpop.f32.mrf.mxu0
    %v2725 = vadd.f32 %v2684, %v2724
    %v2726 = vpop.f32.mrf.mxu0
    %v2727 = vadd.f32 %v2686, %v2726
    %2728 = vmatmul.bf16.gmra.mxu0 %v2707
    %v2729 = vpop.f32.mrf.mxu0
    %v2730 = vadd.f32 %v2689, %v2729
    %v2731 = vpop.f32.mrf.mxu0
    %v2732 = vadd.f32 %v2691, %v2731
    %2733 = vmatmul.bf16.gmra.mxu0 %v2710
    %v2734 = vpop.f32.mrf.mxu0
    %v2735 = vadd.f32 %v2694, %v2734
    %v2736 = vpop.f32.mrf.mxu0
    %v2737 = vadd.f32 %v2696, %v2736
    %2738 = vmatmul.bf16.gmra.mxu0 %v2713
    %v2739 = vpop.f32.mrf.mxu0
    %v2740 = vadd.f32 %v2699, %v2739
    %v2741 = vpop.f32.mrf.mxu0
    %v2742 = vadd.f32 %v2701, %v2741
    %2743 = vdwg.mxu0
    %v2744 = vpack.c.bf16 %v2727, %v2725
    %v2745 = vpack.c.bf16 %v2732, %v2730
    %v2746 = vpack.c.bf16 %v2737, %v2735
    %v2747 = vpack.c.bf16 %v2742, %v2740
    %v2748 = vld [vmem:[#allocation5 + $0xb0] sm:$0xf]
    %v2749 = vld [vmem:[#allocation5 + $0xb4] sm:$0xf]
    %v2750 = vld [vmem:[#allocation5 + $0xb8] sm:$0xf]
    %v2751 = vld [vmem:[#allocation5 + $0xbc] sm:$0xf]
    %v2752 = vld [vmem:[#allocation7 + $0xb] sm:$0x1]
    %v2753 = vperm.slane %v2752, 0
    %v2758 = vunpack.c.l.b16 %v2748
    %v2759 = vunpack.c.l.b16 %v2749
    %v2760 = vunpack.c.l.b16 %v2750
    %v2761 = vunpack.c.l.b16 %v2751
    %v2762 = vpack.c.b16 %v2759, %v2758
    %v2763 = vpack.c.b16 %v2761, %v2760
    %v2767 = vsel %vm285, %v2744, 0
    %v2770 = vsel %vm285, %v2745, 0
    %v2773 = vsel %vm285, %v2746, 0
    %v2776 = vsel %vm285, %v2747, 0
    %2778 = vmatpush.bf16.msra.mxu0 0
    %2779 = vmatpush.bf16.msra.mxu0 0
    %2780 = vmatpush.bf16.msra.mxu0 0
    %2781 = vmatpush.bf16.msra.mxu0 0
    %2782 = vmatpush.bf16.msra.mxu0 0
    %2783 = vmatpush.bf16.msra.mxu0 0
    %2784 = vmatpush.bf16.msra.mxu0 %v2763
    %2785 = vmatpush.bf16.msra.mxu0 %v2762
    %2786 = vmatmul.bf16.gmra.mxu0 %v2767
    %v2787 = vpop.f32.mrf.mxu0
    %v2788 = vadd.f32 %v2753, %v2787
    %v2789 = vpop.f32.mrf.mxu0
    %v2790 = vadd.f32 %v2753, %v2789
    %2791 = vmatmul.bf16.gmra.mxu0 %v2770
    %v2792 = vpop.f32.mrf.mxu0
    %v2793 = vadd.f32 %v2753, %v2792
    %v2794 = vpop.f32.mrf.mxu0
    %v2795 = vadd.f32 %v2753, %v2794
    %2796 = vmatmul.bf16.gmra.mxu0 %v2773
    %v2797 = vpop.f32.mrf.mxu0
    %v2798 = vadd.f32 %v2753, %v2797
    %v2799 = vpop.f32.mrf.mxu0
    %v2800 = vadd.f32 %v2753, %v2799
    %2801 = vmatmul.bf16.gmra.mxu0 %v2776
    %v2802 = vpop.f32.mrf.mxu0
    %v2803 = vadd.f32 %v2753, %v2802
    %v2804 = vpop.f32.mrf.mxu0
    %v2805 = vadd.f32 %v2753, %v2804
    %2806 = vdwg.mxu0
    %v2807 = vadd.f32 %v1570, %v2788
    %v2808 = vadd.f32 %v1571, %v2790
    %v2809 = vadd.f32 %v1572, %v2793
    %v2810 = vadd.f32 %v1573, %v2795
    %v2811 = vadd.f32 %v1574, %v2798
    %v2812 = vadd.f32 %v1575, %v2800
    %v2813 = vadd.f32 %v1576, %v2803
    %v2814 = vadd.f32 %v1577, %v2805
    %v2815 = vsel %vm285, %v2807, 0.0
    %2816 = vadd.xlane.f32.xlu0 %v2815
    %v2817 = vpop.xlane.xlu0 %2816
    %v2818 = vsel %vm285, %v2808, 0.0
    %2819 = vadd.xlane.f32.xlu0 %v2818
    %v2820 = vpop.xlane.xlu0 %2819
    %v2821 = vsel %vm285, %v2809, 0.0
    %2822 = vadd.xlane.f32.xlu0 %v2821
    %v2823 = vpop.xlane.xlu0 %2822
    %v2824 = vsel %vm285, %v2810, 0.0
    %2825 = vadd.xlane.f32.xlu0 %v2824
    %v2826 = vpop.xlane.xlu0 %2825
    %v2827 = vsel %vm285, %v2811, 0.0
    %2828 = vadd.xlane.f32.xlu0 %v2827
    %v2829 = vpop.xlane.xlu0 %2828
    %v2830 = vsel %vm285, %v2812, 0.0
    %2831 = vadd.xlane.f32.xlu0 %v2830
    %v2832 = vpop.xlane.xlu0 %2831
    %v2833 = vsel %vm285, %v2813, 0.0
    %2834 = vadd.xlane.f32.xlu0 %v2833
    %v2835 = vpop.xlane.xlu0 %2834
    %v2836 = vsel %vm285, %v2814, 0.0
    %2837 = vadd.xlane.f32.xlu0 %v2836
    %v2838 = vpop.xlane.xlu0 %2837
    %v2839 = vmul.f32 %v2817, %v967
    %v2840 = vmul.f32 %v2820, %v967
    %v2841 = vmul.f32 %v2823, %v967
    %v2842 = vmul.f32 %v2826, %v967
    %v2843 = vmul.f32 %v2829, %v967
    %v2844 = vmul.f32 %v2832, %v967
    %v2845 = vmul.f32 %v2835, %v967
    %v2846 = vmul.f32 %v2838, %v967
    %v2847 = vsub.f32 %v2807, %v2839
    %v2848 = vsub.f32 %v2808, %v2840
    %v2849 = vsub.f32 %v2809, %v2841
    %v2850 = vsub.f32 %v2810, %v2842
    %v2851 = vsub.f32 %v2811, %v2843
    %v2852 = vsub.f32 %v2812, %v2844
    %v2853 = vsub.f32 %v2813, %v2845
    %v2854 = vsub.f32 %v2814, %v2846
    %v2855 = vmul.f32 %v2847, %v2847
    %v2856 = vmul.f32 %v2848, %v2848
    %v2857 = vmul.f32 %v2849, %v2849
    %v2858 = vmul.f32 %v2850, %v2850
    %v2859 = vmul.f32 %v2851, %v2851
    %v2860 = vmul.f32 %v2852, %v2852
    %v2861 = vmul.f32 %v2853, %v2853
    %v2862 = vmul.f32 %v2854, %v2854
    %v2863 = vsel %vm285, %v2855, 0.0
    %2864 = vadd.xlane.f32.xlu0 %v2863
    %v2865 = vpop.xlane.xlu0 %2864
    %v2866 = vsel %vm285, %v2856, 0.0
    %2867 = vadd.xlane.f32.xlu0 %v2866
    %v2868 = vpop.xlane.xlu0 %2867
    %v2869 = vsel %vm285, %v2857, 0.0
    %2870 = vadd.xlane.f32.xlu0 %v2869
    %v2871 = vpop.xlane.xlu0 %2870
    %v2872 = vsel %vm285, %v2858, 0.0
    %2873 = vadd.xlane.f32.xlu0 %v2872
    %v2874 = vpop.xlane.xlu0 %2873
    %v2875 = vsel %vm285, %v2859, 0.0
    %2876 = vadd.xlane.f32.xlu0 %v2875
    %v2877 = vpop.xlane.xlu0 %2876
    %v2878 = vsel %vm285, %v2860, 0.0
    %2879 = vadd.xlane.f32.xlu0 %v2878
    %v2880 = vpop.xlane.xlu0 %2879
    %v2881 = vsel %vm285, %v2861, 0.0
    %2882 = vadd.xlane.f32.xlu0 %v2881
    %v2883 = vpop.xlane.xlu0 %2882
    %v2884 = vsel %vm285, %v2862, 0.0
    %2885 = vadd.xlane.f32.xlu0 %v2884
    %v2886 = vpop.xlane.xlu0 %2885
    %v2887 = vmul.f32 %v2865, %v967
    %v2888 = vmul.f32 %v2868, %v967
    %v2889 = vmul.f32 %v2871, %v967
    %v2890 = vmul.f32 %v2874, %v967
    %v2891 = vmul.f32 %v2877, %v967
    %v2892 = vmul.f32 %v2880, %v967
    %v2893 = vmul.f32 %v2883, %v967
    %v2894 = vmul.f32 %v2886, %v967
    %v2895 = vadd.f32 %v2887, 1e-05
    %v2896 = vadd.f32 %v2888, 1e-05
    %v2897 = vadd.f32 %v2889, 1e-05
    %v2898 = vadd.f32 %v2890, 1e-05
    %v2899 = vadd.f32 %v2891, 1e-05
    %v2900 = vadd.f32 %v2892, 1e-05
    %v2901 = vadd.f32 %v2893, 1e-05
    %v2902 = vadd.f32 %v2894, 1e-05
    %v2903 = vrsqrt.pop %v2895
    %v2904 = vmul.f32 %v2903, %v2895
    %v2905 = vmul.f32 %v2904, %v2903
    %v2906 = vmul.f32 0.5, %v2905
    %v2907 = vsub.f32 1.5, %v2906
    %v2908 = vmul.f32 %v2903, %v2907
    %vm2909 = vweird.f32 %v2895
    %vm2910 = vweird.f32 %v2903
    %vm2911 = vmor %vm2909, %vm2910
    %v2912 = vsel %vm2911, %v2903, %v2908
    %v2913 = vrsqrt.pop %v2896
    %v2914 = vmul.f32 %v2913, %v2896
    %v2915 = vmul.f32 %v2914, %v2913
    %v2916 = vmul.f32 0.5, %v2915
    %v2917 = vsub.f32 1.5, %v2916
    %v2918 = vmul.f32 %v2913, %v2917
    %vm2919 = vweird.f32 %v2896
    %vm2920 = vweird.f32 %v2913
    %vm2921 = vmor %vm2919, %vm2920
    %v2922 = vsel %vm2921, %v2913, %v2918
    %v2923 = vrsqrt.pop %v2897
    %v2924 = vmul.f32 %v2923, %v2897
    %v2925 = vmul.f32 %v2924, %v2923
    %v2926 = vmul.f32 0.5, %v2925
    %v2927 = vsub.f32 1.5, %v2926
    %v2928 = vmul.f32 %v2923, %v2927
    %vm2929 = vweird.f32 %v2897
    %vm2930 = vweird.f32 %v2923
    %vm2931 = vmor %vm2929, %vm2930
    %v2932 = vsel %vm2931, %v2923, %v2928
    %v2933 = vrsqrt.pop %v2898
    %v2934 = vmul.f32 %v2933, %v2898
    %v2935 = vmul.f32 %v2934, %v2933
    %v2936 = vmul.f32 0.5, %v2935
    %v2937 = vsub.f32 1.5, %v2936
    %v2938 = vmul.f32 %v2933, %v2937
    %vm2939 = vweird.f32 %v2898
    %vm2940 = vweird.f32 %v2933
    %vm2941 = vmor %vm2939, %vm2940
    %v2942 = vsel %vm2941, %v2933, %v2938
    %v2943 = vrsqrt.pop %v2899
    %v2944 = vmul.f32 %v2943, %v2899
    %v2945 = vmul.f32 %v2944, %v2943
    %v2946 = vmul.f32 0.5, %v2945
    %v2947 = vsub.f32 1.5, %v2946
    %v2948 = vmul.f32 %v2943, %v2947
    %vm2949 = vweird.f32 %v2899
    %vm2950 = vweird.f32 %v2943
    %vm2951 = vmor %vm2949, %vm2950
    %v2952 = vsel %vm2951, %v2943, %v2948
    %v2953 = vrsqrt.pop %v2900
    %v2954 = vmul.f32 %v2953, %v2900
    %v2955 = vmul.f32 %v2954, %v2953
    %v2956 = vmul.f32 0.5, %v2955
    %v2957 = vsub.f32 1.5, %v2956
    %v2958 = vmul.f32 %v2953, %v2957
    %vm2959 = vweird.f32 %v2900
    %vm2960 = vweird.f32 %v2953
    %vm2961 = vmor %vm2959, %vm2960
    %v2962 = vsel %vm2961, %v2953, %v2958
    %v2963 = vrsqrt.pop %v2901
    %v2964 = vmul.f32 %v2963, %v2901
    %v2965 = vmul.f32 %v2964, %v2963
    %v2966 = vmul.f32 0.5, %v2965
    %v2967 = vsub.f32 1.5, %v2966
    %v2968 = vmul.f32 %v2963, %v2967
    %vm2969 = vweird.f32 %v2901
    %vm2970 = vweird.f32 %v2963
    %vm2971 = vmor %vm2969, %vm2970
    %v2972 = vsel %vm2971, %v2963, %v2968
    %v2973 = vrsqrt.pop %v2902
    %v2974 = vmul.f32 %v2973, %v2902
    %v2975 = vmul.f32 %v2974, %v2973
    %v2976 = vmul.f32 0.5, %v2975
    %v2977 = vsub.f32 1.5, %v2976
    %v2978 = vmul.f32 %v2973, %v2977
    %vm2979 = vweird.f32 %v2902
    %vm2980 = vweird.f32 %v2973
    %vm2981 = vmor %vm2979, %vm2980
    %v2982 = vsel %vm2981, %v2973, %v2978
    %v2983 = vmul.f32 %v2847, %v2912
    %v2984 = vmul.f32 %v2848, %v2922
    %v2985 = vmul.f32 %v2849, %v2932
    %v2986 = vmul.f32 %v2850, %v2942
    %v2987 = vmul.f32 %v2851, %v2952
    %v2988 = vmul.f32 %v2852, %v2962
    %v2989 = vmul.f32 %v2853, %v2972
    %v2990 = vmul.f32 %v2854, %v2982
    %v2991 = vld [vmem:[#allocation7 + $0x14] sm:$0x1]
    %v2992 = vperm.slane %v2991, 0
    %v2993 = vmul.f32 %v2983, %v2992
    %v2994 = vmul.f32 %v2984, %v2992
    %v2995 = vmul.f32 %v2985, %v2992
    %v2996 = vmul.f32 %v2986, %v2992
    %v2997 = vmul.f32 %v2987, %v2992
    %v2998 = vmul.f32 %v2988, %v2992
    %v2999 = vmul.f32 %v2989, %v2992
    %v3000 = vmul.f32 %v2990, %v2992
    %v3001 = vld [vmem:[#allocation7 + $0x15] sm:$0x1]
    %v3002 = vperm.slane %v3001, 0
    %v3003 = vadd.f32 %v2993, %v3002
    %v3004 = vadd.f32 %v2994, %v3002
    %v3005 = vadd.f32 %v2995, %v3002
    %v3006 = vadd.f32 %v2996, %v3002
    %v3007 = vadd.f32 %v2997, %v3002
    %v3008 = vadd.f32 %v2998, %v3002
    %v3009 = vadd.f32 %v2999, %v3002
    %v3010 = vadd.f32 %v3000, %v3002
    %v3011 = vpack.c.bf16 %v3004, %v3003
    %v3012 = vpack.c.bf16 %v3006, %v3005
    %v3013 = vpack.c.bf16 %v3008, %v3007
    %v3014 = vpack.c.bf16 %v3010, %v3009
    %v3015 = vld [vmem:[#allocation5 + $0xd0] sm:$0xf]
    %v3016 = vld [vmem:[#allocation5 + $0xd4] sm:$0xf]
    %v3017 = vld [vmem:[#allocation5 + $0xd8] sm:$0xf]
    %v3018 = vld [vmem:[#allocation5 + $0xdc] sm:$0xf]
    %v3019 = vld [vmem:[#allocation7 + $0xe] sm:$0x1]
    %v3020 = vperm.slane %v3019, 0
    %v3025 = vunpack.c.l.b16 %v3015
    %v3026 = vunpack.c.l.b16 %v3016
    %v3027 = vunpack.c.l.b16 %v3017
    %v3028 = vunpack.c.l.b16 %v3018
    %v3029 = vpack.c.b16 %v3026, %v3025
    %v3030 = vpack.c.b16 %v3028, %v3027
    %v3034 = vsel %vm285, %v3011, 0
    %v3037 = vsel %vm285, %v3012, 0
    %v3040 = vsel %vm285, %v3013, 0
    %v3043 = vsel %vm285, %v3014, 0
    %3045 = vmatpush.bf16.msra.mxu0 0
    %3046 = vmatpush.bf16.msra.mxu0 0
    %3047 = vmatpush.bf16.msra.mxu0 0
    %3048 = vmatpush.bf16.msra.mxu0 0
    %3049 = vmatpush.bf16.msra.mxu0 0
    %3050 = vmatpush.bf16.msra.mxu0 0
    %3051 = vmatpush.bf16.msra.mxu0 %v3030
    %3052 = vmatpush.bf16.msra.mxu0 %v3029
    %3053 = vmatmul.bf16.gmra.mxu0 %v3034
    %v3054 = vpop.f32.mrf.mxu0
    %v3055 = vadd.f32 %v3020, %v3054
    %v3056 = vpop.f32.mrf.mxu0
    %v3057 = vadd.f32 %v3020, %v3056
    %3058 = vmatmul.bf16.gmra.mxu0 %v3037
    %v3059 = vpop.f32.mrf.mxu0
    %v3060 = vadd.f32 %v3020, %v3059
    %v3061 = vpop.f32.mrf.mxu0
    %v3062 = vadd.f32 %v3020, %v3061
    %3063 = vmatmul.bf16.gmra.mxu0 %v3040
    %v3064 = vpop.f32.mrf.mxu0
    %v3065 = vadd.f32 %v3020, %v3064
    %v3066 = vpop.f32.mrf.mxu0
    %v3067 = vadd.f32 %v3020, %v3066
    %3068 = vmatmul.bf16.gmra.mxu0 %v3043
    %v3069 = vpop.f32.mrf.mxu0
    %v3070 = vadd.f32 %v3020, %v3069
    %v3071 = vpop.f32.mrf.mxu0
    %v3072 = vadd.f32 %v3020, %v3071
    %3073 = vdwg.mxu0
    %v3074 = vmul.f32 %v3055, 0.5
    %v3075 = vmul.f32 %v3057, 0.5
    %v3076 = vmul.f32 %v3060, 0.5
    %v3077 = vmul.f32 %v3062, 0.5
    %v3078 = vmul.f32 %v3065, 0.5
    %v3079 = vmul.f32 %v3067, 0.5
    %v3080 = vmul.f32 %v3070, 0.5
    %v3081 = vmul.f32 %v3072, 0.5
    %v3082 = vmul.f32 %v3055, 0.044715
    %v3083 = vmul.f32 %v3057, 0.044715
    %v3084 = vmul.f32 %v3060, 0.044715
    %v3085 = vmul.f32 %v3062, 0.044715
    %v3086 = vmul.f32 %v3065, 0.044715
    %v3087 = vmul.f32 %v3067, 0.044715
    %v3088 = vmul.f32 %v3070, 0.044715
    %v3089 = vmul.f32 %v3072, 0.044715
    %v3090 = vmul.f32 %v3082, %v3055
    %v3091 = vmul.f32 %v3083, %v3057
    %v3092 = vmul.f32 %v3084, %v3060
    %v3093 = vmul.f32 %v3085, %v3062
    %v3094 = vmul.f32 %v3086, %v3065
    %v3095 = vmul.f32 %v3087, %v3067
    %v3096 = vmul.f32 %v3088, %v3070
    %v3097 = vmul.f32 %v3089, %v3072
    %v3098 = vmul.f32 %v3090, %v3055
    %v3099 = vmul.f32 %v3091, %v3057
    %v3100 = vmul.f32 %v3092, %v3060
    %v3101 = vmul.f32 %v3093, %v3062
    %v3102 = vmul.f32 %v3094, %v3065
    %v3103 = vmul.f32 %v3095, %v3067
    %v3104 = vmul.f32 %v3096, %v3070
    %v3105 = vmul.f32 %v3097, %v3072
    %v3106 = vadd.f32 %v3055, %v3098
    %v3107 = vadd.f32 %v3057, %v3099
    %v3108 = vadd.f32 %v3060, %v3100
    %v3109 = vadd.f32 %v3062, %v3101
    %v3110 = vadd.f32 %v3065, %v3102
    %v3111 = vadd.f32 %v3067, %v3103
    %v3112 = vadd.f32 %v3070, %v3104
    %v3113 = vadd.f32 %v3072, %v3105
    %v3114 = vmul.f32 %v3106, 0.7978846
    %v3115 = vmul.f32 %v3107, 0.7978846
    %v3116 = vmul.f32 %v3108, 0.7978846
    %v3117 = vmul.f32 %v3109, 0.7978846
    %v3118 = vmul.f32 %v3110, 0.7978846
    %v3119 = vmul.f32 %v3111, 0.7978846
    %v3120 = vmul.f32 %v3112, 0.7978846
    %v3121 = vmul.f32 %v3113, 0.7978846
    %v3122 = vtanh.pop %v3114
    %v3123 = vtanh.pop %v3115
    %v3124 = vtanh.pop %v3116
    %v3125 = vtanh.pop %v3117
    %v3126 = vtanh.pop %v3118
    %v3127 = vtanh.pop %v3119
    %v3128 = vtanh.pop %v3120
    %v3129 = vtanh.pop %v3121
    %v3130 = vadd.f32 %v3122, 1.0
    %v3131 = vadd.f32 %v3123, 1.0
    %v3132 = vadd.f32 %v3124, 1.0
    %v3133 = vadd.f32 %v3125, 1.0
    %v3134 = vadd.f32 %v3126, 1.0
    %v3135 = vadd.f32 %v3127, 1.0
    %v3136 = vadd.f32 %v3128, 1.0
    %v3137 = vadd.f32 %v3129, 1.0
    %v3138 = vmul.f32 %v3074, %v3130
    %v3139 = vmul.f32 %v3075, %v3131
    %v3140 = vmul.f32 %v3076, %v3132
    %v3141 = vmul.f32 %v3077, %v3133
    %v3142 = vmul.f32 %v3078, %v3134
    %v3143 = vmul.f32 %v3079, %v3135
    %v3144 = vmul.f32 %v3080, %v3136
    %v3145 = vmul.f32 %v3081, %v3137
    %v3146 = vpack.c.bf16 %v3139, %v3138
    %v3147 = vpack.c.bf16 %v3141, %v3140
    %v3148 = vpack.c.bf16 %v3143, %v3142
    %v3149 = vpack.c.bf16 %v3145, %v3144
    %v3150 = vld [vmem:[#allocation5 + $0x120] sm:$0xf]
    %v3151 = vld [vmem:[#allocation5 + $0x124] sm:$0xf]
    %v3152 = vld [vmem:[#allocation5 + $0x128] sm:$0xf]
    %v3153 = vld [vmem:[#allocation5 + $0x12c] sm:$0xf]
    %v3154 = vld [vmem:[#allocation5 + $0x130] sm:$0xf]
    %v3155 = vld [vmem:[#allocation5 + $0x134] sm:$0xf]
    %v3156 = vld [vmem:[#allocation5 + $0x138] sm:$0xf]
    %v3157 = vld [vmem:[#allocation5 + $0x13c] sm:$0xf]
    %v3158 = vld [vmem:[#allocation5 + $0x140] sm:$0xf]
    %v3159 = vld [vmem:[#allocation5 + $0x144] sm:$0xf]
    %v3160 = vld [vmem:[#allocation5 + $0x148] sm:$0xf]
    %v3161 = vld [vmem:[#allocation5 + $0x14c] sm:$0xf]
    %v3162 = vld [vmem:[#allocation5 + $0x150] sm:$0xf]
    %v3163 = vld [vmem:[#allocation5 + $0x154] sm:$0xf]
    %v3164 = vld [vmem:[#allocation5 + $0x158] sm:$0xf]
    %v3165 = vld [vmem:[#allocation5 + $0x15c] sm:$0xf]
    %v3166 = vld [vmem:[#allocation7 + $0xf] sm:$0x1]
    %v3167 = vperm.slane %v3166, 0
    %v3184 = vunpack.c.l.b16 %v3150
    %v3185 = vunpack.c.l.b16 %v3151
    %v3186 = vunpack.c.l.b16 %v3152
    %v3187 = vunpack.c.l.b16 %v3153
    %v3188 = vunpack.c.l.b16 %v3154
    %v3189 = vunpack.c.l.b16 %v3155
    %v3190 = vunpack.c.l.b16 %v3156
    %v3191 = vunpack.c.l.b16 %v3157
    %v3192 = vunpack.c.l.b16 %v3158
    %v3193 = vunpack.c.l.b16 %v3159
    %v3194 = vunpack.c.l.b16 %v3160
    %v3195 = vunpack.c.l.b16 %v3161
    %v3196 = vunpack.c.l.b16 %v3162
    %v3197 = vunpack.c.l.b16 %v3163
    %v3198 = vunpack.c.l.b16 %v3164
    %v3199 = vunpack.c.l.b16 %v3165
    %v3200 = vpack.c.b16 %v3185, %v3184
    %v3201 = vpack.c.b16 %v3187, %v3186
    %v3202 = vpack.c.b16 %v3189, %v3188
    %v3203 = vpack.c.b16 %v3191, %v3190
    %v3204 = vpack.c.b16 %v3193, %v3192
    %v3205 = vpack.c.b16 %v3195, %v3194
    %v3206 = vpack.c.b16 %v3197, %v3196
    %v3207 = vpack.c.b16 %v3199, %v3198
    %3216 = vmatpush.bf16.msra.mxu0 %v3207
    %3217 = vmatpush.bf16.msra.mxu0 %v3206
    %3218 = vmatpush.bf16.msra.mxu0 %v3205
    %3219 = vmatpush.bf16.msra.mxu0 %v3204
    %3220 = vmatpush.bf16.msra.mxu0 %v3203
    %3221 = vmatpush.bf16.msra.mxu0 %v3202
    %3222 = vmatpush.bf16.msra.mxu0 %v3201
    %3223 = vmatpush.bf16.msra.mxu0 %v3200
    %3224 = vmatmul.bf16.gmra.mxu0 %v3146
    %v3225 = vpop.f32.mrf.mxu0
    %v3226 = vadd.f32 %v3167, %v3225
    %v3227 = vpop.f32.mrf.mxu0
    %v3228 = vadd.f32 %v3167, %v3227
    %3229 = vmatmul.bf16.gmra.mxu0 %v3147
    %v3230 = vpop.f32.mrf.mxu0
    %v3231 = vadd.f32 %v3167, %v3230
    %v3232 = vpop.f32.mrf.mxu0
    %v3233 = vadd.f32 %v3167, %v3232
    %3234 = vmatmul.bf16.gmra.mxu0 %v3148
    %v3235 = vpop.f32.mrf.mxu0
    %v3236 = vadd.f32 %v3167, %v3235
    %v3237 = vpop.f32.mrf.mxu0
    %v3238 = vadd.f32 %v3167, %v3237
    %3239 = vmatmul.bf16.gmra.mxu0 %v3149
    %v3240 = vpop.f32.mrf.mxu0
    %v3241 = vadd.f32 %v3167, %v3240
    %v3242 = vpop.f32.mrf.mxu0
    %v3243 = vadd.f32 %v3167, %v3242
    %3244 = vdwg.mxu0
    %v3245 = vadd.f32 %v3003, %v3226
    %v3246 = vadd.f32 %v3004, %v3228
    %v3247 = vadd.f32 %v3005, %v3231
    %v3248 = vadd.f32 %v3006, %v3233
    %v3249 = vadd.f32 %v3007, %v3236
    %v3250 = vadd.f32 %v3008, %v3238
    %v3251 = vadd.f32 %v3009, %v3241
    %v3252 = vadd.f32 %v3010, %v3243
    %v3253 = vsel %vm285, %v3245, 0.0
    %3254 = vadd.xlane.f32.xlu0 %v3253
    %v3255 = vpop.xlane.xlu0 %3254
    %v3256 = vsel %vm285, %v3246, 0.0
    %3257 = vadd.xlane.f32.xlu0 %v3256
    %v3258 = vpop.xlane.xlu0 %3257
    %v3259 = vsel %vm285, %v3247, 0.0
    %3260 = vadd.xlane.f32.xlu0 %v3259
    %v3261 = vpop.xlane.xlu0 %3260
    %v3262 = vsel %vm285, %v3248, 0.0
    %3263 = vadd.xlane.f32.xlu0 %v3262
    %v3264 = vpop.xlane.xlu0 %3263
    %v3265 = vsel %vm285, %v3249, 0.0
    %3266 = vadd.xlane.f32.xlu0 %v3265
    %v3267 = vpop.xlane.xlu0 %3266
    %v3268 = vsel %vm285, %v3250, 0.0
    %3269 = vadd.xlane.f32.xlu0 %v3268
    %v3270 = vpop.xlane.xlu0 %3269
    %v3271 = vsel %vm285, %v3251, 0.0
    %3272 = vadd.xlane.f32.xlu0 %v3271
    %v3273 = vpop.xlane.xlu0 %3272
    %v3274 = vsel %vm285, %v3252, 0.0
    %3275 = vadd.xlane.f32.xlu0 %v3274
    %v3276 = vpop.xlane.xlu0 %3275
    %v3277 = vmul.f32 %v3255, %v967
    %v3278 = vmul.f32 %v3258, %v967
    %v3279 = vmul.f32 %v3261, %v967
    %v3280 = vmul.f32 %v3264, %v967
    %v3281 = vmul.f32 %v3267, %v967
    %v3282 = vmul.f32 %v3270, %v967
    %v3283 = vmul.f32 %v3273, %v967
    %v3284 = vmul.f32 %v3276, %v967
    %v3285 = vsub.f32 %v3245, %v3277
    %v3286 = vsub.f32 %v3246, %v3278
    %v3287 = vsub.f32 %v3247, %v3279
    %v3288 = vsub.f32 %v3248, %v3280
    %v3289 = vsub.f32 %v3249, %v3281
    %v3290 = vsub.f32 %v3250, %v3282
    %v3291 = vsub.f32 %v3251, %v3283
    %v3292 = vsub.f32 %v3252, %v3284
    %v3293 = vmul.f32 %v3285, %v3285
    %v3294 = vmul.f32 %v3286, %v3286
    %v3295 = vmul.f32 %v3287, %v3287
    %v3296 = vmul.f32 %v3288, %v3288
    %v3297 = vmul.f32 %v3289, %v3289
    %v3298 = vmul.f32 %v3290, %v3290
    %v3299 = vmul.f32 %v3291, %v3291
    %v3300 = vmul.f32 %v3292, %v3292
    %v3301 = vsel %vm285, %v3293, 0.0
    %3302 = vadd.xlane.f32.xlu0 %v3301
    %v3303 = vpop.xlane.xlu0 %3302
    %v3304 = vsel %vm285, %v3294, 0.0
    %3305 = vadd.xlane.f32.xlu0 %v3304
    %v3306 = vpop.xlane.xlu0 %3305
    %v3307 = vsel %vm285, %v3295, 0.0
    %3308 = vadd.xlane.f32.xlu0 %v3307
    %v3309 = vpop.xlane.xlu0 %3308
    %v3310 = vsel %vm285, %v3296, 0.0
    %3311 = vadd.xlane.f32.xlu0 %v3310
    %v3312 = vpop.xlane.xlu0 %3311
    %v3313 = vsel %vm285, %v3297, 0.0
    %3314 = vadd.xlane.f32.xlu0 %v3313
    %v3315 = vpop.xlane.xlu0 %3314
    %v3316 = vsel %vm285, %v3298, 0.0
    %3317 = vadd.xlane.f32.xlu0 %v3316
    %v3318 = vpop.xlane.xlu0 %3317
    %v3319 = vsel %vm285, %v3299, 0.0
    %3320 = vadd.xlane.f32.xlu0 %v3319
    %v3321 = vpop.xlane.xlu0 %3320
    %v3322 = vsel %vm285, %v3300, 0.0
    %3323 = vadd.xlane.f32.xlu0 %v3322
    %v3324 = vpop.xlane.xlu0 %3323
    %v3325 = vmul.f32 %v3303, %v967
    %v3326 = vmul.f32 %v3306, %v967
    %v3327 = vmul.f32 %v3309, %v967
    %v3328 = vmul.f32 %v3312, %v967
    %v3329 = vmul.f32 %v3315, %v967
    %v3330 = vmul.f32 %v3318, %v967
    %v3331 = vmul.f32 %v3321, %v967
    %v3332 = vmul.f32 %v3324, %v967
    %v3333 = vadd.f32 %v3325, 1e-05
    %v3334 = vadd.f32 %v3326, 1e-05
    %v3335 = vadd.f32 %v3327, 1e-05
    %v3336 = vadd.f32 %v3328, 1e-05
    %v3337 = vadd.f32 %v3329, 1e-05
    %v3338 = vadd.f32 %v3330, 1e-05
    %v3339 = vadd.f32 %v3331, 1e-05
    %v3340 = vadd.f32 %v3332, 1e-05
    %v3341 = vrsqrt.pop %v3333
    %v3342 = vmul.f32 %v3341, %v3333
    %v3343 = vmul.f32 %v3342, %v3341
    %v3344 = vmul.f32 0.5, %v3343
    %v3345 = vsub.f32 1.5, %v3344
    %v3346 = vmul.f32 %v3341, %v3345
    %vm3347 = vweird.f32 %v3333
    %vm3348 = vweird.f32 %v3341
    %vm3349 = vmor %vm3347, %vm3348
    %v3350 = vsel %vm3349, %v3341, %v3346
    %v3351 = vrsqrt.pop %v3334
    %v3352 = vmul.f32 %v3351, %v3334
    %v3353 = vmul.f32 %v3352, %v3351
    %v3354 = vmul.f32 0.5, %v3353
    %v3355 = vsub.f32 1.5, %v3354
    %v3356 = vmul.f32 %v3351, %v3355
    %vm3357 = vweird.f32 %v3334
    %vm3358 = vweird.f32 %v3351
    %vm3359 = vmor %vm3357, %vm3358
    %v3360 = vsel %vm3359, %v3351, %v3356
    %v3361 = vrsqrt.pop %v3335
    %v3362 = vmul.f32 %v3361, %v3335
    %v3363 = vmul.f32 %v3362, %v3361
    %v3364 = vmul.f32 0.5, %v3363
    %v3365 = vsub.f32 1.5, %v3364
    %v3366 = vmul.f32 %v3361, %v3365
    %vm3367 = vweird.f32 %v3335
    %vm3368 = vweird.f32 %v3361
    %vm3369 = vmor %vm3367, %vm3368
    %v3370 = vsel %vm3369, %v3361, %v3366
    %v3371 = vrsqrt.pop %v3336
    %v3372 = vmul.f32 %v3371, %v3336
    %v3373 = vmul.f32 %v3372, %v3371
    %v3374 = vmul.f32 0.5, %v3373
    %v3375 = vsub.f32 1.5, %v3374
    %v3376 = vmul.f32 %v3371, %v3375
    %vm3377 = vweird.f32 %v3336
    %vm3378 = vweird.f32 %v3371
    %vm3379 = vmor %vm3377, %vm3378
    %v3380 = vsel %vm3379, %v3371, %v3376
    %v3381 = vrsqrt.pop %v3337
    %v3382 = vmul.f32 %v3381, %v3337
    %v3383 = vmul.f32 %v3382, %v3381
    %v3384 = vmul.f32 0.5, %v3383
    %v3385 = vsub.f32 1.5, %v3384
    %v3386 = vmul.f32 %v3381, %v3385
    %vm3387 = vweird.f32 %v3337
    %vm3388 = vweird.f32 %v3381
    %vm3389 = vmor %vm3387, %vm3388
    %v3390 = vsel %vm3389, %v3381, %v3386
    %v3391 = vrsqrt.pop %v3338
    %v3392 = vmul.f32 %v3391, %v3338
    %v3393 = vmul.f32 %v3392, %v3391
    %v3394 = vmul.f32 0.5, %v3393
    %v3395 = vsub.f32 1.5, %v3394
    %v3396 = vmul.f32 %v3391, %v3395
    %vm3397 = vweird.f32 %v3338
    %vm3398 = vweird.f32 %v3391
    %vm3399 = vmor %vm3397, %vm3398
    %v3400 = vsel %vm3399, %v3391, %v3396
    %v3401 = vrsqrt.pop %v3339
    %v3402 = vmul.f32 %v3401, %v3339
    %v3403 = vmul.f32 %v3402, %v3401
    %v3404 = vmul.f32 0.5, %v3403
    %v3405 = vsub.f32 1.5, %v3404
    %v3406 = vmul.f32 %v3401, %v3405
    %vm3407 = vweird.f32 %v3339
    %vm3408 = vweird.f32 %v3401
    %vm3409 = vmor %vm3407, %vm3408
    %v3410 = vsel %vm3409, %v3401, %v3406
    %v3411 = vrsqrt.pop %v3340
    %v3412 = vmul.f32 %v3411, %v3340
    %v3413 = vmul.f32 %v3412, %v3411
    %v3414 = vmul.f32 0.5, %v3413
    %v3415 = vsub.f32 1.5, %v3414
    %v3416 = vmul.f32 %v3411, %v3415
    %vm3417 = vweird.f32 %v3340
    %vm3418 = vweird.f32 %v3411
    %vm3419 = vmor %vm3417, %vm3418
    %v3420 = vsel %vm3419, %v3411, %v3416
    %v3421 = vmul.f32 %v3285, %v3350
    %v3422 = vmul.f32 %v3286, %v3360
    %v3423 = vmul.f32 %v3287, %v3370
    %v3424 = vmul.f32 %v3288, %v3380
    %v3425 = vmul.f32 %v3289, %v3390
    %v3426 = vmul.f32 %v3290, %v3400
    %v3427 = vmul.f32 %v3291, %v3410
    %v3428 = vmul.f32 %v3292, %v3420
    %v3429 = vld [vmem:[#allocation7 + $0x16] sm:$0x1]
    %v3430 = vperm.slane %v3429, 0
    %v3431 = vmul.f32 %v3421, %v3430
    %v3432 = vmul.f32 %v3422, %v3430
    %v3433 = vmul.f32 %v3423, %v3430
    %v3434 = vmul.f32 %v3424, %v3430
    %v3435 = vmul.f32 %v3425, %v3430
    %v3436 = vmul.f32 %v3426, %v3430
    %v3437 = vmul.f32 %v3427, %v3430
    %v3438 = vmul.f32 %v3428, %v3430
    %v3439 = vld [vmem:[#allocation7 + $0x17] sm:$0x1]
    %v3440 = vperm.slane %v3439, 0
    %v3441 = vadd.f32 %v3431, %v3440
    %v3442 = vadd.f32 %v3432, %v3440
    %v3443 = vadd.f32 %v3433, %v3440
    %v3444 = vadd.f32 %v3434, %v3440
    %v3445 = vadd.f32 %v3435, %v3440
    %v3446 = vadd.f32 %v3436, %v3440
    %v3447 = vadd.f32 %v3437, %v3440
    %v3448 = vadd.f32 %v3438, %v3440
    %3449 = vst.msk [vmem:[#allocation8] sm:$0xff] %vm285, %v3441
    %3450 = vst.msk [vmem:[#allocation8 + $0x8] sm:$0xff] %vm285, %v3442
    %3451 = vst.msk [vmem:[#allocation8 + $0x10] sm:$0xff] %vm285, %v3443
    %3452 = vst.msk [vmem:[#allocation8 + $0x18] sm:$0xff] %vm285, %v3444
    %3453 = vst.msk [vmem:[#allocation8 + $0x20] sm:$0xff] %vm285, %v3445
    %3454 = vst.msk [vmem:[#allocation8 + $0x28] sm:$0xff] %vm285, %v3446
    %3455 = vst.msk [vmem:[#allocation8 + $0x30] sm:$0xff] %vm285, %v3447
    %3456 = vst.msk [vmem:[#allocation8 + $0x38] sm:$0xff] %vm285, %v3448
    // Predicated region
    $region26: #{two_stage_attention_forward.1} parent=1 // pred_check
      _
    $region27: #{two_stage_attention_forward.1} parent=1 // pred_check_branch
      %3458 = sbr.rel (0) target = $region29
    $region28: #{two_stage_attention_forward.1} parent=1 // pred_region
      %3460 = vsyncadd [#allocation4], 0
      %s3461 = sshll.u32 [#allocation8], 4
      %s3462 = int_to_ptr.vmem [resolvable:$true] %s3461
      %s3463 = sshll.u32 %s3, 4
      %s3464 = int_to_ptr.hbm [resolvable:$true] %s3463
      %3469 = dma.vmem_to_hbm [thread:$0]  %s3462, 1024, %s3464, [#allocation4], 128, 128, 8
    $region29: #{two_stage_attention_forward.1} parent=1 // pred_fallthru
      _
    // Predicated region
    $region30: #{two_stage_attention_forward.1} parent=1 // pred_check
      _
    $region31: #{two_stage_attention_forward.1} parent=1 // pred_check_branch
      %3471 = sbr.rel (0) target = $region33
    $region32: #{two_stage_attention_forward.1} parent=1 // pred_region
      %3473 = dma.done [#allocation4], 1024
    $region33: #{two_stage_attention_forward.1} parent=1 // pred_fallthru
      _
    %3474 = vsyncpa [#allocation3], 1
    %3475 = vsyncpa [#allocation6], 1
    %3476 = vsyncpa [#allocation4], 1

</llo_original>
